<compile_context>
chip_gen: v6e
topology: v6e:2x2x1
jax: 0.10.0
libtpu: 0.0.40
codegen_flags: <defaults>
</compile_context>

<pallas_src>
import functools

import jax
import jax.numpy as jnp
import numpy as np
from jax import lax
from jax.experimental import pallas as pl
from jax.experimental.pallas import tpu as pltpu

# ----------------------- model hyper-parameters (small) -----------------------
DIM_MODEL = 32
NUM_HEAD = 4
NUM_BLOCK = 2
LEN_DIC = 50
BATCH = 2
SEQ = 8


# ===================== host-built constant selection matrices =====================

def _build_constants():
    B, L, D, H = BATCH, SEQ, DIM_MODEL, NUM_HEAD
    dh = D // H
    HL = H * L
    BL = B * L
    BHL = B * HL

    # REP[R, i] = 1 iff activation row i == (r // H)*B + b feeds head-major row R = b*HL + r.
    rep = np.zeros((BHL, BL), np.float32)
    # MASK3[R, :] keeps only the owned feature chunk (r % H) in each of the q|k|v D-wide segments.
    mask3 = np.zeros((BHL, 3 * D), np.float32)
    # WIDEMASK[R, :] = owned-chunk mask over a single D-wide segment.
    widemask = np.zeros((BHL, D), np.float32)
    for R in range(BHL):
        b, r = divmod(R, HL)
        lx = r // H
        c0 = r % H
        rep[R, lx * B + b] = 1.0
        widemask[R, c0 * dh:(c0 + 1) * dh] = 1.0
        for seg in range(3):
            mask3[R, seg * D + c0 * dh: seg * D + (c0 + 1) * dh] = 1.0

    # Chunk-compaction matrices: sum the owned chunk of each segment into lanes [0, dh)
    # (CQ / CK), or tile it across all D lanes (CVE, value path kept D-wide).
    cq = np.zeros((3 * D, dh), np.float32)
    ck = np.zeros((3 * D, dh), np.float32)
    cve = np.zeros((3 * D, D), np.float32)
    for f in range(D):
        cq[f, f % dh] = 1.0
        ck[D + f, f % dh] = 1.0
        for g in range(D):
            if f % dh == g % dh:
                cve[2 * D + f, g] = 1.0

    # Additive block-diagonal mask for the fused (BHL, BHL) score matrix.
    negmask = np.full((BHL, BHL), -1e30, np.float32)
    for blk in range(B * H):
        negmask[blk * L:(blk + 1) * L, blk * L:(blk + 1) * L] = 0.0

    # GSUM[i, R] = 1 iff head-major row R belongs to query row i (inverse head-reshape gather;
    # combined with WIDEMASK it reproduces the raw (H,L,dh)->(L,D) reshape).
    gsum = np.zeros((BL, BHL), np.float32)
    for i in range(BL):
        l, b = divmod(i, B)
        for c in range(H):
            gsum[i, b * HL + l * H + c] = 1.0

    return rep, mask3, cq, ck, cve, negmask, widemask, gsum


_CONSTS = _build_constants()


# ================================ fused Pallas kernel ================================

def encoder_kernel(x_ref, wqkv_ref, bqkv_ref, wcat_ref, whh_ref, bgate_ref,
                   rep_ref, mask3_ref, cq_ref, ck_ref, cve_ref,
                   negmask_ref, widemask_ref, gsum_ref,
                   out_ref, dist_ref,
                   *, num_block, seq, dim_model, batch):
    f32 = jnp.float32
    D, L, B = dim_model, seq, batch

    REP = rep_ref[...]            # (BHL, BL)
    MASK3 = mask3_ref[...]        # (BHL, 3D)
    CQ = cq_ref[...]              # (3D, dh)
    CK = ck_ref[...]              # (3D, dh)
    CVE = cve_ref[...]            # (3D, D)
    NEGMASK = negmask_ref[...]    # (BHL, BHL)
    WIDEMASK = widemask_ref[...]  # (BHL, D)
    GSUM = gsum_ref[...]          # (BL, BHL)

    x = x_ref[...]                # (B*L, D), time-major rows (l*B + b)

    for blk in range(num_block):
        wqkv = wqkv_ref[blk]      # (D, 3D)   (Wq pre-scaled by 2/dh)
        bqkv = bqkv_ref[blk]      # (1, 3D)
        wcat = wcat_ref[blk]      # (2D, 4D)  (= [Wih_x ; Wo^T @ Wih_attn^T])
        whh = whh_ref[blk]        # (D, 4D)
        bgate = bgate_ref[blk]    # (1, 4D)   (= bih + bhh + bo @ Wih_attn^T)

        # ---- fused Q/K/V projection + head-major layout (all MXU) ----
        qkv = jnp.dot(x, wqkv, preferred_element_type=f32) + bqkv       # (BL, 3D)
        rep = jnp.dot(REP, qkv, preferred_element_type=f32)             # (BHL, 3D)
        masked = rep * MASK3                                            # (BHL, 3D)
        qh = jnp.dot(masked, CQ, preferred_element_type=f32)            # (BHL, dh), pre-scaled
        kh = jnp.dot(masked, CK, preferred_element_type=f32)            # (BHL, dh)
        vhw = jnp.dot(masked, CVE, preferred_element_type=f32)          # (BHL, D) (tiled chunks)

        # ---- block-diagonal scores + softmax over all (b, h) blocks at once ----
        s = lax.dot_general(qh, kh, (((1,), (1,)), ((), ())),
                            preferred_element_type=f32) + NEGMASK       # (BHL, BHL)
        s = s - jnp.max(s, axis=-1, keepdims=True)
        e = jnp.exp(s)
        p = e * pl.reciprocal(jnp.sum(e, axis=-1, keepdims=True), approx=True)

        if blk == num_block - 1:                # only last block's dist is live in the reference
            dist_ref[...] = p                   # one contiguous slab store

        # ---- attention values + inverse head-reshape (out-proj folded into LSTM weights) ----
        attnw = jnp.dot(p, vhw, preferred_element_type=f32) * WIDEMASK  # (BHL, D)
        gathered = jnp.dot(GSUM, attnw, preferred_element_type=f32)     # (BL, D)

        # ---- fused LSTM input projection ----
        xg = jnp.concatenate([x, gathered], axis=1)                     # (BL, 2D)
        gates = jnp.dot(xg, wcat, preferred_element_type=f32) + bgate   # (BL, 4D)

        # ---- LSTM recurrence, batched over B, fully unrolled (L = 8) ----
        h = jnp.zeros((B, D), f32)
        c = jnp.zeros((B, D), f32)
        hs = []
        for t in range(L):
            g = gates[t * B:(t + 1) * B, :] + jnp.dot(h, whh, preferred_element_type=f32)
            sg = jax.nn.sigmoid(g)                  # one 128-lane sigmoid for i/f/o gates
            gg = jnp.tanh(g[:, 2 * D:3 * D])
            c = sg[:, D:2 * D] * c + sg[:, 0:D] * gg
            h = sg[:, 3 * D:4 * D] * jnp.tanh(c)
            hs.append(h)
        x = jnp.concatenate(hs, axis=0)             # (BL, D), time-major -> next block input

    out_ref[...] = x


# ================================ model wrapper ================================

def _build_block_params(params):
    """Pre-transpose / pre-fold per-block weights and stack along a leading block axis."""
    D = DIM_MODEL
    dh = D // NUM_HEAD
    scale = 2.0 / dh  # reproduces torch's `dim_head ** 1 / 2` (== dh / 2) score divisor
    wqkv, bqkv, wcat, whh, bgate = [], [], [], [], []
    for bp in params["blocks"]:
        wqkv.append(jnp.concatenate([bp["wq"].T * scale, bp["wk"].T, bp["wv"].T], axis=1))
        bqkv.append(jnp.concatenate([bp["bq"] * scale, bp["bk"], bp["bv"]])[None, :])
        wih_x = bp["wih"][:, :D].T                      # (D, 4D)
        wih_a = bp["wih"][:, D:]                        # (4D, D)
        w_ag = bp["wo"].T @ wih_a.T                     # (D, 4D)  out-proj folded into LSTM
        wcat.append(jnp.concatenate([wih_x, w_ag], axis=0))           # (2D, 4D)
        whh.append(bp["whh"].T)                                        # (D, 4D)
        bgate.append((bp["bih"] + bp["bhh"] + bp["bo"] @ wih_a.T)[None, :])  # (1, 4D)
    stk = lambda xs: jnp.stack(xs, axis=0)
    return tuple(map(stk, (wqkv, bqkv, wcat, whh, bgate)))


@jax.jit
def encoder_forward(x_ids, params):
    B, L = x_ids.shape
    D, H, NB = DIM_MODEL, NUM_HEAD, NUM_BLOCK
    BL, BHL = B * L, B * H * L

    emb = jnp.take(params["emb"], x_ids, axis=0).astype(jnp.float32)    # (B, L, D)
    # TODO(synk): Dropout is treated as identity (eval mode); training-mode dropout is stochastic.
    x0 = emb.transpose(1, 0, 2).reshape(BL, D)                          # time-major rows (l*B+b)

    wqkv, bqkv, wcat, whh, bgate = _build_block_params(params)
    rep, mask3, cq, ck, cve, negmask, widemask, gsum = _CONSTS

    kernel = functools.partial(encoder_kernel, num_block=NB, seq=L, dim_model=D, batch=B)

    def fspec(shape):
        nd = len(shape)
        return pl.BlockSpec(shape, lambda i, nd=nd: (0,) * nd)

    inputs = (x0, wqkv, bqkv, wcat, whh, bgate,
              rep, mask3, cq, ck, cve, negmask, widemask, gsum)

    out_tm, p_full = pl.pallas_call(
        kernel,
        out_shape=(jax.ShapeDtypeStruct((BL, D), jnp.float32),
                   jax.ShapeDtypeStruct((BHL, BHL), jnp.float32)),
        grid=(1,),
        in_specs=[fspec(np.shape(a)) for a in inputs],
        out_specs=(fspec((BL, D)), fspec((BHL, BHL))),
        compiler_params=pltpu.CompilerParams(dimension_semantics=("arbitrary",)),
    )(*inputs)

    out = out_tm.reshape(L, B, D).transpose(1, 0, 2)                    # (B, L, D)
    last_state = out[:, -1, :][None, :, :]                              # nn.LSTM h_n: (1, B, D)

    # extract per-(b,h) diagonal (L, L) blocks of the fused attention distribution
    p4 = p_full.reshape(B * H, L, B * H, L)
    idx = jnp.arange(B * H)
    dist = p4[idx, :, idx, :].reshape(B, H, L, L)
    return out, last_state, dist


# ============================= pure-JAX reference =============================

def ref_forward(x_ids, params):
    D, H = DIM_MODEL, NUM_HEAD
    dh = D // H
    out = jnp.take(params["emb"], x_ids, axis=0)
    last_state = None
    dist = None
    for bp in params["blocks"]:
        B, L, _ = out.shape
        q = out @ bp["wq"].T + bp["bq"]
        k = out @ bp["wk"].T + bp["bk"]
        v = out @ bp["wv"].T + bp["bv"]
        qh, kh, vh = (a.reshape(B, H, L, dh) for a in (q, k, v))
        s = jnp.einsum("bhqd,bhkd->bhqk", qh, kh) / (dh / 2.0)
        dist = jax.nn.softmax(s, axis=-1)
        attn = jnp.einsum("bhqk,bhkd->bhqd", dist, vh).reshape(B, L, D)
        attn = attn @ bp["wo"].T + bp["bo"]
        inp = jnp.concatenate([out, attn], axis=-1)
        h = jnp.zeros((B, D), jnp.float32)
        c = jnp.zeros((B, D), jnp.float32)
        hs = []
        for t in range(L):
            gates = inp[:, t] @ bp["wih"].T + bp["bih"] + h @ bp["whh"].T + bp["bhh"]
            i_g = jax.nn.sigmoid(gates[:, :D])
            f_g = jax.nn.sigmoid(gates[:, D:2 * D])
            g_g = jnp.tanh(gates[:, 2 * D:3 * D])
            o_g = jax.nn.sigmoid(gates[:, 3 * D:])
            c = f_g * c + i_g * g_g
            h = o_g * jnp.tanh(c)
            hs.append(h)
        out = jnp.stack(hs, axis=1)
        last_state = h[None]
    return out, last_state, dist


# =================================== params ===================================

def init_params(key):
    D = DIM_MODEL
    params = {"blocks": []}
    key, k_emb = jax.random.split(key)
    params["emb"] = 0.1 * jax.random.normal(k_emb, (LEN_DIC, D), jnp.float32)
    for _ in range(NUM_BLOCK):
        keys = jax.random.split(key, 13)
        key = keys[0]
        bp = {
            "wq": 0.1 * jax.random.normal(keys[1], (D, D), jnp.float32),
            "bq": 0.1 * jax.random.normal(keys[2], (D,), jnp.float32),
            "wk": 0.1 * jax.random.normal(keys[3], (D, D), jnp.float32),
            "bk": 0.1 * jax.random.normal(keys[4], (D,), jnp.float32),
            "wv": 0.1 * jax.random.normal(keys[5], (D, D), jnp.float32),
            "bv": 0.1 * jax.random.normal(keys[6], (D,), jnp.float32),
            "wo": 0.1 * jax.random.normal(keys[7], (D, D), jnp.float32),
            "bo": 0.1 * jax.random.normal(keys[8], (D,), jnp.float32),
            "wih": 0.1 * jax.random.normal(keys[9], (4 * D, 2 * D), jnp.float32),
            "whh": 0.1 * jax.random.normal(keys[10], (4 * D, D), jnp.float32),
            "bih": 0.1 * jax.random.normal(keys[11], (4 * D,), jnp.float32),
            "bhh": 0.1 * jax.random.normal(keys[12], (4 * D,), jnp.float32),
        }
        params["blocks"].append(bp)
    return params


# ==================================== main ====================================

if __name__ == "__main__":
    root = jax.random.PRNGKey(0)
    k_ids, k_params = jax.random.split(root)
    x_ids = jax.random.randint(k_ids, (BATCH, SEQ), 0, LEN_DIC, dtype=jnp.int32)
    params = init_params(k_params)

    out, last_state, self_attn = encoder_forward(x_ids, params)
    jax.block_until_ready((out, last_state, self_attn))

    # correctness check vs pure-JAX reference (tolerance allows the EUP approx-reciprocal softmax)
    out_r, last_r, attn_r = ref_forward(x_ids, params)
    assert out.shape == (BATCH, SEQ, DIM_MODEL)
    assert last_state.shape == (1, BATCH, DIM_MODEL)
    assert self_attn.shape == (BATCH, NUM_HEAD, SEQ, SEQ)
    np.testing.assert_allclose(np.asarray(out), np.asarray(out_r), rtol=2e-3, atol=3e-4)
    np.testing.assert_allclose(np.asarray(last_state), np.asarray(last_r), rtol=2e-3, atol=3e-4)
    np.testing.assert_allclose(np.asarray(self_attn), np.asarray(attn_r), rtol=2e-3, atol=3e-4)

    print("KERNEL_OK")
</pallas_src>

<mosaic_0001>
module attributes {stable_mosaic.version = 11 : i64} {
  func.func @encoder_kernel(%arg0: i32, %arg1: memref<16x32xf32, #tpu.memory_space<vmem>>, %arg2: memref<2x32x96xf32, #tpu.memory_space<vmem>>, %arg3: memref<2x1x96xf32, #tpu.memory_space<vmem>>, %arg4: memref<2x64x128xf32, #tpu.memory_space<vmem>>, %arg5: memref<2x32x128xf32, #tpu.memory_space<vmem>>, %arg6: memref<2x1x128xf32, #tpu.memory_space<vmem>>, %arg7: memref<64x16xf32, #tpu.memory_space<vmem>>, %arg8: memref<64x96xf32, #tpu.memory_space<vmem>>, %arg9: memref<96x8xf32, #tpu.memory_space<vmem>>, %arg10: memref<96x8xf32, #tpu.memory_space<vmem>>, %arg11: memref<96x32xf32, #tpu.memory_space<vmem>>, %arg12: memref<64x64xf32, #tpu.memory_space<vmem>>, %arg13: memref<64x32xf32, #tpu.memory_space<vmem>>, %arg14: memref<16x64xf32, #tpu.memory_space<vmem>>, %arg15: memref<16x32xf32, #tpu.memory_space<vmem>>, %arg16: memref<64x64xf32, #tpu.memory_space<vmem>>) attributes {dimension_semantics = [#tpu.dimension_semantics<arbitrary>], iteration_bounds = array<i64: 1>, scalar_prefetch = 0 : i64, scratch_operands = 0 : i64, tpu.core_type = #tpu.core_type<tc>, window_params = [{pipeline_mode = #tpu.pipeline_mode<synchronous>, transform_indices = @transform_0, window_bounds = array<i64: 16, 32>}, {pipeline_mode = #tpu.pipeline_mode<synchronous>, transform_indices = @transform_1, window_bounds = array<i64: 2, 32, 96>}, {pipeline_mode = #tpu.pipeline_mode<synchronous>, transform_indices = @transform_2, window_bounds = array<i64: 2, 1, 96>}, {pipeline_mode = #tpu.pipeline_mode<synchronous>, transform_indices = @transform_3, window_bounds = array<i64: 2, 64, 128>}, {pipeline_mode = #tpu.pipeline_mode<synchronous>, transform_indices = @transform_4, window_bounds = array<i64: 2, 32, 128>}, {pipeline_mode = #tpu.pipeline_mode<synchronous>, transform_indices = @transform_5, window_bounds = array<i64: 2, 1, 128>}, {pipeline_mode = #tpu.pipeline_mode<synchronous>, transform_indices = @transform_6, window_bounds = array<i64: 64, 16>}, {pipeline_mode = #tpu.pipeline_mode<synchronous>, transform_indices = @transform_7, window_bounds = array<i64: 64, 96>}, {pipeline_mode = #tpu.pipeline_mode<synchronous>, transform_indices = @transform_8, window_bounds = array<i64: 96, 8>}, {pipeline_mode = #tpu.pipeline_mode<synchronous>, transform_indices = @transform_9, window_bounds = array<i64: 96, 8>}, {pipeline_mode = #tpu.pipeline_mode<synchronous>, transform_indices = @transform_10, window_bounds = array<i64: 96, 32>}, {pipeline_mode = #tpu.pipeline_mode<synchronous>, transform_indices = @transform_11, window_bounds = array<i64: 64, 64>}, {pipeline_mode = #tpu.pipeline_mode<synchronous>, transform_indices = @transform_12, window_bounds = array<i64: 64, 32>}, {pipeline_mode = #tpu.pipeline_mode<synchronous>, transform_indices = @transform_13, window_bounds = array<i64: 16, 64>}, {pipeline_mode = #tpu.pipeline_mode<synchronous>, transform_indices = @transform_14, window_bounds = array<i64: 16, 32>}, {pipeline_mode = #tpu.pipeline_mode<synchronous>, transform_indices = @transform_15, window_bounds = array<i64: 64, 64>}]} {
    %c0 = arith.constant 0 : index
    %c0_0 = arith.constant 0 : index
    %0 = vector.load %arg7[%c0, %c0_0] : memref<64x16xf32, #tpu.memory_space<vmem>>, vector<64x16xf32>
    %c0_1 = arith.constant 0 : index
    %c0_2 = arith.constant 0 : index
    %1 = vector.load %arg8[%c0_1, %c0_2] : memref<64x96xf32, #tpu.memory_space<vmem>>, vector<64x96xf32>
    %c0_3 = arith.constant 0 : index
    %c0_4 = arith.constant 0 : index
    %2 = vector.load %arg9[%c0_3, %c0_4] : memref<96x8xf32, #tpu.memory_space<vmem>>, vector<96x8xf32>
    %c0_5 = arith.constant 0 : index
    %c0_6 = arith.constant 0 : index
    %3 = vector.load %arg10[%c0_5, %c0_6] : memref<96x8xf32, #tpu.memory_space<vmem>>, vector<96x8xf32>
    %c0_7 = arith.constant 0 : index
    %c0_8 = arith.constant 0 : index
    %4 = vector.load %arg11[%c0_7, %c0_8] : memref<96x32xf32, #tpu.memory_space<vmem>>, vector<96x32xf32>
    %c0_9 = arith.constant 0 : index
    %c0_10 = arith.constant 0 : index
    %5 = vector.load %arg12[%c0_9, %c0_10] : memref<64x64xf32, #tpu.memory_space<vmem>>, vector<64x64xf32>
    %c0_11 = arith.constant 0 : index
    %c0_12 = arith.constant 0 : index
    %6 = vector.load %arg13[%c0_11, %c0_12] : memref<64x32xf32, #tpu.memory_space<vmem>>, vector<64x32xf32>
    %c0_13 = arith.constant 0 : index
    %c0_14 = arith.constant 0 : index
    %7 = vector.load %arg14[%c0_13, %c0_14] : memref<16x64xf32, #tpu.memory_space<vmem>>, vector<16x64xf32>
    %c0_15 = arith.constant 0 : index
    %c0_16 = arith.constant 0 : index
    %8 = vector.load %arg1[%c0_15, %c0_16] : memref<16x32xf32, #tpu.memory_space<vmem>>, vector<16x32xf32>
    %c0_17 = arith.constant 0 : index
    %c0_18 = arith.constant 0 : index
    %c0_19 = arith.constant 0 : index
    %9 = vector.load %arg2[%c0_17, %c0_18, %c0_19] : memref<2x32x96xf32, #tpu.memory_space<vmem>>, vector<1x32x96xf32>
    %10 = vector.shape_cast %9 : vector<1x32x96xf32> to vector<32x96xf32>
    %c0_20 = arith.constant 0 : index
    %c0_21 = arith.constant 0 : index
    %c0_22 = arith.constant 0 : index
    %11 = vector.load %arg3[%c0_20, %c0_21, %c0_22] : memref<2x1x96xf32, #tpu.memory_space<vmem>>, vector<1x1x96xf32>
    %12 = vector.shape_cast %11 : vector<1x1x96xf32> to vector<1x96xf32>
    %c0_23 = arith.constant 0 : index
    %c0_24 = arith.constant 0 : index
    %c0_25 = arith.constant 0 : index
    %13 = vector.load %arg4[%c0_23, %c0_24, %c0_25] : memref<2x64x128xf32, #tpu.memory_space<vmem>>, vector<1x64x128xf32>
    %14 = vector.shape_cast %13 : vector<1x64x128xf32> to vector<64x128xf32>
    %c0_26 = arith.constant 0 : index
    %c0_27 = arith.constant 0 : index
    %c0_28 = arith.constant 0 : index
    %15 = vector.load %arg5[%c0_26, %c0_27, %c0_28] : memref<2x32x128xf32, #tpu.memory_space<vmem>>, vector<1x32x128xf32>
    %16 = vector.shape_cast %15 : vector<1x32x128xf32> to vector<32x128xf32>
    %c0_29 = arith.constant 0 : index
    %c0_30 = arith.constant 0 : index
    %c0_31 = arith.constant 0 : index
    %17 = vector.load %arg6[%c0_29, %c0_30, %c0_31] : memref<2x1x128xf32, #tpu.memory_space<vmem>>, vector<1x1x128xf32>
    %18 = vector.shape_cast %17 : vector<1x1x128xf32> to vector<1x128xf32>
    %cst = arith.constant dense<0.000000e+00> : vector<16x96xf32>
    %19 = tpu.matmul %8, %10, %cst {dimension_numbers = #tpu.dot_dimension_numbers<[1], [0], [0], [1], [0, 0, 1, 1], [], []>} : vector<16x32xf32>, vector<32x96xf32>, vector<16x96xf32> -> vector<16x96xf32>
    %20 = vector.broadcast %12 : vector<1x96xf32> to vector<16x96xf32>
    %21 = arith.addf %19, %20 : vector<16x96xf32>
    %cst_32 = arith.constant dense<0.000000e+00> : vector<64x96xf32>
    %22 = tpu.matmul %0, %21, %cst_32 {dimension_numbers = #tpu.dot_dimension_numbers<[1], [0], [0], [1], [0, 0, 1, 1], [], []>} : vector<64x16xf32>, vector<16x96xf32>, vector<64x96xf32> -> vector<64x96xf32>
    %23 = arith.mulf %22, %1 : vector<64x96xf32>
    %cst_33 = arith.constant dense<0.000000e+00> : vector<64x8xf32>
    %24 = tpu.matmul %23, %2, %cst_33 {dimension_numbers = #tpu.dot_dimension_numbers<[1], [0], [0], [1], [0, 0, 1, 1], [], []>} : vector<64x96xf32>, vector<96x8xf32>, vector<64x8xf32> -> vector<64x8xf32>
    %cst_34 = arith.constant dense<0.000000e+00> : vector<64x8xf32>
    %25 = tpu.matmul %23, %3, %cst_34 {dimension_numbers = #tpu.dot_dimension_numbers<[1], [0], [0], [1], [0, 0, 1, 1], [], []>} : vector<64x96xf32>, vector<96x8xf32>, vector<64x8xf32> -> vector<64x8xf32>
    %cst_35 = arith.constant dense<0.000000e+00> : vector<64x32xf32>
    %26 = tpu.matmul %23, %4, %cst_35 {dimension_numbers = #tpu.dot_dimension_numbers<[1], [0], [0], [1], [0, 0, 1, 1], [], []>} : vector<64x96xf32>, vector<96x32xf32>, vector<64x32xf32> -> vector<64x32xf32>
    %cst_36 = arith.constant dense<0.000000e+00> : vector<64x64xf32>
    %27 = tpu.matmul %24, %25, %cst_36 {dimension_numbers = #tpu.dot_dimension_numbers<[1], [1], [0], [0], [0, 0, 1, 0], [], []>} : vector<64x8xf32>, vector<64x8xf32>, vector<64x64xf32> -> vector<64x64xf32>
    %28 = arith.addf %27, %5 : vector<64x64xf32>
    %cst_37 = arith.constant dense<0xFF800000> : vector<64xf32>
    %29 = vector.multi_reduction <maximumf>, %28, %cst_37 [1] : vector<64x64xf32> to vector<64xf32>
    %30 = vector.shape_cast %29 : vector<64xf32> to vector<64x1xf32>
    %31 = vector.broadcast %30 : vector<64x1xf32> to vector<64x64xf32>
    %32 = arith.subf %28, %31 : vector<64x64xf32>
    %33 = math.exp %32 : vector<64x64xf32>
    %cst_38 = arith.constant dense<0.000000e+00> : vector<64xf32>
    %34 = vector.multi_reduction <add>, %33, %cst_38 [1] : vector<64x64xf32> to vector<64xf32>
    %35 = vector.shape_cast %34 : vector<64xf32> to vector<64x1xf32>
    %36 = tpu.reciprocal %35 {approx = true} : vector<64x1xf32> -> vector<64x1xf32>
    %37 = vector.broadcast %36 : vector<64x1xf32> to vector<64x64xf32>
    %38 = arith.mulf %33, %37 : vector<64x64xf32>
    %cst_39 = arith.constant dense<0.000000e+00> : vector<64x32xf32>
    %39 = tpu.matmul %38, %26, %cst_39 {dimension_numbers = #tpu.dot_dimension_numbers<[1], [0], [0], [1], [0, 0, 1, 1], [], []>} : vector<64x64xf32>, vector<64x32xf32>, vector<64x32xf32> -> vector<64x32xf32>
    %40 = arith.mulf %39, %6 : vector<64x32xf32>
    %cst_40 = arith.constant dense<0.000000e+00> : vector<16x32xf32>
    %41 = tpu.matmul %7, %40, %cst_40 {dimension_numbers = #tpu.dot_dimension_numbers<[1], [0], [0], [1], [0, 0, 1, 1], [], []>} : vector<16x64xf32>, vector<64x32xf32>, vector<16x32xf32> -> vector<16x32xf32>
    %42 = tpu.concatenate %8, %41 in 1 : vector<16x32xf32>, vector<16x32xf32> -> vector<16x64xf32>
    %cst_41 = arith.constant dense<0.000000e+00> : vector<16x128xf32>
    %43 = tpu.matmul %42, %14, %cst_41 {dimension_numbers = #tpu.dot_dimension_numbers<[1], [0], [0], [1], [0, 0, 1, 1], [], []>} : vector<16x64xf32>, vector<64x128xf32>, vector<16x128xf32> -> vector<16x128xf32>
    %44 = vector.broadcast %18 : vector<1x128xf32> to vector<16x128xf32>
    %45 = arith.addf %43, %44 : vector<16x128xf32>
    %cst_42 = arith.constant 0.000000e+00 : f32
    %46 = vector.broadcast %cst_42 : f32 to vector<2x32xf32>
    %cst_43 = arith.constant 0.000000e+00 : f32
    %47 = vector.broadcast %cst_43 : f32 to vector<2x32xf32>
    %48 = vector.extract_strided_slice %45 {offsets = [0, 0], sizes = [2, 128], strides = [1, 1]} : vector<16x128xf32> to vector<2x128xf32>
    %cst_44 = arith.constant dense<0.000000e+00> : vector<2x128xf32>
    %49 = tpu.matmul %46, %16, %cst_44 {dimension_numbers = #tpu.dot_dimension_numbers<[1], [0], [0], [1], [0, 0, 1, 1], [], []>} : vector<2x32xf32>, vector<32x128xf32>, vector<2x128xf32> -> vector<2x128xf32>
    %50 = arith.addf %48, %49 : vector<2x128xf32>
    %51 = arith.negf %50 : vector<2x128xf32>
    %52 = math.exp %51 : vector<2x128xf32>
    %cst_45 = arith.constant 1.000000e+00 : f32
    %53 = vector.broadcast %cst_45 : f32 to vector<2x128xf32>
    %54 = arith.addf %53, %52 : vector<2x128xf32>
    %55 = arith.divf %53, %54 : vector<2x128xf32>
    %56 = vector.extract_strided_slice %50 {offsets = [0, 64], sizes = [2, 32], strides = [1, 1]} : vector<2x128xf32> to vector<2x32xf32>
    %57 = math.tanh %56 : vector<2x32xf32>
    %58 = vector.extract_strided_slice %55 {offsets = [0, 32], sizes = [2, 32], strides = [1, 1]} : vector<2x128xf32> to vector<2x32xf32>
    %59 = arith.mulf %58, %47 : vector<2x32xf32>
    %60 = vector.extract_strided_slice %55 {offsets = [0, 0], sizes = [2, 32], strides = [1, 1]} : vector<2x128xf32> to vector<2x32xf32>
    %61 = arith.mulf %60, %57 : vector<2x32xf32>
    %62 = arith.addf %59, %61 : vector<2x32xf32>
    %63 = vector.extract_strided_slice %55 {offsets = [0, 96], sizes = [2, 32], strides = [1, 1]} : vector<2x128xf32> to vector<2x32xf32>
    %64 = math.tanh %62 : vector<2x32xf32>
    %65 = arith.mulf %63, %64 : vector<2x32xf32>
    %66 = vector.extract_strided_slice %45 {offsets = [2, 0], sizes = [2, 128], strides = [1, 1]} : vector<16x128xf32> to vector<2x128xf32>
    %cst_46 = arith.constant dense<0.000000e+00> : vector<2x128xf32>
    %67 = tpu.matmul %65, %16, %cst_46 {dimension_numbers = #tpu.dot_dimension_numbers<[1], [0], [0], [1], [0, 0, 1, 1], [], []>} : vector<2x32xf32>, vector<32x128xf32>, vector<2x128xf32> -> vector<2x128xf32>
    %68 = arith.addf %66, %67 : vector<2x128xf32>
    %69 = arith.negf %68 : vector<2x128xf32>
    %70 = math.exp %69 : vector<2x128xf32>
    %cst_47 = arith.constant 1.000000e+00 : f32
    %71 = vector.broadcast %cst_47 : f32 to vector<2x128xf32>
    %72 = arith.addf %71, %70 : vector<2x128xf32>
    %73 = arith.divf %71, %72 : vector<2x128xf32>
    %74 = vector.extract_strided_slice %68 {offsets = [0, 64], sizes = [2, 32], strides = [1, 1]} : vector<2x128xf32> to vector<2x32xf32>
    %75 = math.tanh %74 : vector<2x32xf32>
    %76 = vector.extract_strided_slice %73 {offsets = [0, 32], sizes = [2, 32], strides = [1, 1]} : vector<2x128xf32> to vector<2x32xf32>
    %77 = arith.mulf %76, %62 : vector<2x32xf32>
    %78 = vector.extract_strided_slice %73 {offsets = [0, 0], sizes = [2, 32], strides = [1, 1]} : vector<2x128xf32> to vector<2x32xf32>
    %79 = arith.mulf %78, %75 : vector<2x32xf32>
    %80 = arith.addf %77, %79 : vector<2x32xf32>
    %81 = vector.extract_strided_slice %73 {offsets = [0, 96], sizes = [2, 32], strides = [1, 1]} : vector<2x128xf32> to vector<2x32xf32>
    %82 = math.tanh %80 : vector<2x32xf32>
    %83 = arith.mulf %81, %82 : vector<2x32xf32>
    %84 = vector.extract_strided_slice %45 {offsets = [4, 0], sizes = [2, 128], strides = [1, 1]} : vector<16x128xf32> to vector<2x128xf32>
    %cst_48 = arith.constant dense<0.000000e+00> : vector<2x128xf32>
    %85 = tpu.matmul %83, %16, %cst_48 {dimension_numbers = #tpu.dot_dimension_numbers<[1], [0], [0], [1], [0, 0, 1, 1], [], []>} : vector<2x32xf32>, vector<32x128xf32>, vector<2x128xf32> -> vector<2x128xf32>
    %86 = arith.addf %84, %85 : vector<2x128xf32>
    %87 = arith.negf %86 : vector<2x128xf32>
    %88 = math.exp %87 : vector<2x128xf32>
    %cst_49 = arith.constant 1.000000e+00 : f32
    %89 = vector.broadcast %cst_49 : f32 to vector<2x128xf32>
    %90 = arith.addf %89, %88 : vector<2x128xf32>
    %91 = arith.divf %89, %90 : vector<2x128xf32>
    %92 = vector.extract_strided_slice %86 {offsets = [0, 64], sizes = [2, 32], strides = [1, 1]} : vector<2x128xf32> to vector<2x32xf32>
    %93 = math.tanh %92 : vector<2x32xf32>
    %94 = vector.extract_strided_slice %91 {offsets = [0, 32], sizes = [2, 32], strides = [1, 1]} : vector<2x128xf32> to vector<2x32xf32>
    %95 = arith.mulf %94, %80 : vector<2x32xf32>
    %96 = vector.extract_strided_slice %91 {offsets = [0, 0], sizes = [2, 32], strides = [1, 1]} : vector<2x128xf32> to vector<2x32xf32>
    %97 = arith.mulf %96, %93 : vector<2x32xf32>
    %98 = arith.addf %95, %97 : vector<2x32xf32>
    %99 = vector.extract_strided_slice %91 {offsets = [0, 96], sizes = [2, 32], strides = [1, 1]} : vector<2x128xf32> to vector<2x32xf32>
    %100 = math.tanh %98 : vector<2x32xf32>
    %101 = arith.mulf %99, %100 : vector<2x32xf32>
    %102 = vector.extract_strided_slice %45 {offsets = [6, 0], sizes = [2, 128], strides = [1, 1]} : vector<16x128xf32> to vector<2x128xf32>
    %cst_50 = arith.constant dense<0.000000e+00> : vector<2x128xf32>
    %103 = tpu.matmul %101, %16, %cst_50 {dimension_numbers = #tpu.dot_dimension_numbers<[1], [0], [0], [1], [0, 0, 1, 1], [], []>} : vector<2x32xf32>, vector<32x128xf32>, vector<2x128xf32> -> vector<2x128xf32>
    %104 = arith.addf %102, %103 : vector<2x128xf32>
    %105 = arith.negf %104 : vector<2x128xf32>
    %106 = math.exp %105 : vector<2x128xf32>
    %cst_51 = arith.constant 1.000000e+00 : f32
    %107 = vector.broadcast %cst_51 : f32 to vector<2x128xf32>
    %108 = arith.addf %107, %106 : vector<2x128xf32>
    %109 = arith.divf %107, %108 : vector<2x128xf32>
    %110 = vector.extract_strided_slice %104 {offsets = [0, 64], sizes = [2, 32], strides = [1, 1]} : vector<2x128xf32> to vector<2x32xf32>
    %111 = math.tanh %110 : vector<2x32xf32>
    %112 = vector.extract_strided_slice %109 {offsets = [0, 32], sizes = [2, 32], strides = [1, 1]} : vector<2x128xf32> to vector<2x32xf32>
    %113 = arith.mulf %112, %98 : vector<2x32xf32>
    %114 = vector.extract_strided_slice %109 {offsets = [0, 0], sizes = [2, 32], strides = [1, 1]} : vector<2x128xf32> to vector<2x32xf32>
    %115 = arith.mulf %114, %111 : vector<2x32xf32>
    %116 = arith.addf %113, %115 : vector<2x32xf32>
    %117 = vector.extract_strided_slice %109 {offsets = [0, 96], sizes = [2, 32], strides = [1, 1]} : vector<2x128xf32> to vector<2x32xf32>
    %118 = math.tanh %116 : vector<2x32xf32>
    %119 = arith.mulf %117, %118 : vector<2x32xf32>
    %120 = vector.extract_strided_slice %45 {offsets = [8, 0], sizes = [2, 128], strides = [1, 1]} : vector<16x128xf32> to vector<2x128xf32>
    %cst_52 = arith.constant dense<0.000000e+00> : vector<2x128xf32>
    %121 = tpu.matmul %119, %16, %cst_52 {dimension_numbers = #tpu.dot_dimension_numbers<[1], [0], [0], [1], [0, 0, 1, 1], [], []>} : vector<2x32xf32>, vector<32x128xf32>, vector<2x128xf32> -> vector<2x128xf32>
    %122 = arith.addf %120, %121 : vector<2x128xf32>
    %123 = arith.negf %122 : vector<2x128xf32>
    %124 = math.exp %123 : vector<2x128xf32>
    %cst_53 = arith.constant 1.000000e+00 : f32
    %125 = vector.broadcast %cst_53 : f32 to vector<2x128xf32>
    %126 = arith.addf %125, %124 : vector<2x128xf32>
    %127 = arith.divf %125, %126 : vector<2x128xf32>
    %128 = vector.extract_strided_slice %122 {offsets = [0, 64], sizes = [2, 32], strides = [1, 1]} : vector<2x128xf32> to vector<2x32xf32>
    %129 = math.tanh %128 : vector<2x32xf32>
    %130 = vector.extract_strided_slice %127 {offsets = [0, 32], sizes = [2, 32], strides = [1, 1]} : vector<2x128xf32> to vector<2x32xf32>
    %131 = arith.mulf %130, %116 : vector<2x32xf32>
    %132 = vector.extract_strided_slice %127 {offsets = [0, 0], sizes = [2, 32], strides = [1, 1]} : vector<2x128xf32> to vector<2x32xf32>
    %133 = arith.mulf %132, %129 : vector<2x32xf32>
    %134 = arith.addf %131, %133 : vector<2x32xf32>
    %135 = vector.extract_strided_slice %127 {offsets = [0, 96], sizes = [2, 32], strides = [1, 1]} : vector<2x128xf32> to vector<2x32xf32>
    %136 = math.tanh %134 : vector<2x32xf32>
    %137 = arith.mulf %135, %136 : vector<2x32xf32>
    %138 = vector.extract_strided_slice %45 {offsets = [10, 0], sizes = [2, 128], strides = [1, 1]} : vector<16x128xf32> to vector<2x128xf32>
    %cst_54 = arith.constant dense<0.000000e+00> : vector<2x128xf32>
    %139 = tpu.matmul %137, %16, %cst_54 {dimension_numbers = #tpu.dot_dimension_numbers<[1], [0], [0], [1], [0, 0, 1, 1], [], []>} : vector<2x32xf32>, vector<32x128xf32>, vector<2x128xf32> -> vector<2x128xf32>
    %140 = arith.addf %138, %139 : vector<2x128xf32>
    %141 = arith.negf %140 : vector<2x128xf32>
    %142 = math.exp %141 : vector<2x128xf32>
    %cst_55 = arith.constant 1.000000e+00 : f32
    %143 = vector.broadcast %cst_55 : f32 to vector<2x128xf32>
    %144 = arith.addf %143, %142 : vector<2x128xf32>
    %145 = arith.divf %143, %144 : vector<2x128xf32>
    %146 = vector.extract_strided_slice %140 {offsets = [0, 64], sizes = [2, 32], strides = [1, 1]} : vector<2x128xf32> to vector<2x32xf32>
    %147 = math.tanh %146 : vector<2x32xf32>
    %148 = vector.extract_strided_slice %145 {offsets = [0, 32], sizes = [2, 32], strides = [1, 1]} : vector<2x128xf32> to vector<2x32xf32>
    %149 = arith.mulf %148, %134 : vector<2x32xf32>
    %150 = vector.extract_strided_slice %145 {offsets = [0, 0], sizes = [2, 32], strides = [1, 1]} : vector<2x128xf32> to vector<2x32xf32>
    %151 = arith.mulf %150, %147 : vector<2x32xf32>
    %152 = arith.addf %149, %151 : vector<2x32xf32>
    %153 = vector.extract_strided_slice %145 {offsets = [0, 96], sizes = [2, 32], strides = [1, 1]} : vector<2x128xf32> to vector<2x32xf32>
    %154 = math.tanh %152 : vector<2x32xf32>
    %155 = arith.mulf %153, %154 : vector<2x32xf32>
    %156 = vector.extract_strided_slice %45 {offsets = [12, 0], sizes = [2, 128], strides = [1, 1]} : vector<16x128xf32> to vector<2x128xf32>
    %cst_56 = arith.constant dense<0.000000e+00> : vector<2x128xf32>
    %157 = tpu.matmul %155, %16, %cst_56 {dimension_numbers = #tpu.dot_dimension_numbers<[1], [0], [0], [1], [0, 0, 1, 1], [], []>} : vector<2x32xf32>, vector<32x128xf32>, vector<2x128xf32> -> vector<2x128xf32>
    %158 = arith.addf %156, %157 : vector<2x128xf32>
    %159 = arith.negf %158 : vector<2x128xf32>
    %160 = math.exp %159 : vector<2x128xf32>
    %cst_57 = arith.constant 1.000000e+00 : f32
    %161 = vector.broadcast %cst_57 : f32 to vector<2x128xf32>
    %162 = arith.addf %161, %160 : vector<2x128xf32>
    %163 = arith.divf %161, %162 : vector<2x128xf32>
    %164 = vector.extract_strided_slice %158 {offsets = [0, 64], sizes = [2, 32], strides = [1, 1]} : vector<2x128xf32> to vector<2x32xf32>
    %165 = math.tanh %164 : vector<2x32xf32>
    %166 = vector.extract_strided_slice %163 {offsets = [0, 32], sizes = [2, 32], strides = [1, 1]} : vector<2x128xf32> to vector<2x32xf32>
    %167 = arith.mulf %166, %152 : vector<2x32xf32>
    %168 = vector.extract_strided_slice %163 {offsets = [0, 0], sizes = [2, 32], strides = [1, 1]} : vector<2x128xf32> to vector<2x32xf32>
    %169 = arith.mulf %168, %165 : vector<2x32xf32>
    %170 = arith.addf %167, %169 : vector<2x32xf32>
    %171 = vector.extract_strided_slice %163 {offsets = [0, 96], sizes = [2, 32], strides = [1, 1]} : vector<2x128xf32> to vector<2x32xf32>
    %172 = math.tanh %170 : vector<2x32xf32>
    %173 = arith.mulf %171, %172 : vector<2x32xf32>
    %174 = vector.extract_strided_slice %45 {offsets = [14, 0], sizes = [2, 128], strides = [1, 1]} : vector<16x128xf32> to vector<2x128xf32>
    %cst_58 = arith.constant dense<0.000000e+00> : vector<2x128xf32>
    %175 = tpu.matmul %173, %16, %cst_58 {dimension_numbers = #tpu.dot_dimension_numbers<[1], [0], [0], [1], [0, 0, 1, 1], [], []>} : vector<2x32xf32>, vector<32x128xf32>, vector<2x128xf32> -> vector<2x128xf32>
    %176 = arith.addf %174, %175 : vector<2x128xf32>
    %177 = arith.negf %176 : vector<2x128xf32>
    %178 = math.exp %177 : vector<2x128xf32>
    %cst_59 = arith.constant 1.000000e+00 : f32
    %179 = vector.broadcast %cst_59 : f32 to vector<2x128xf32>
    %180 = arith.addf %179, %178 : vector<2x128xf32>
    %181 = arith.divf %179, %180 : vector<2x128xf32>
    %182 = vector.extract_strided_slice %176 {offsets = [0, 64], sizes = [2, 32], strides = [1, 1]} : vector<2x128xf32> to vector<2x32xf32>
    %183 = math.tanh %182 : vector<2x32xf32>
    %184 = vector.extract_strided_slice %181 {offsets = [0, 32], sizes = [2, 32], strides = [1, 1]} : vector<2x128xf32> to vector<2x32xf32>
    %185 = arith.mulf %184, %170 : vector<2x32xf32>
    %186 = vector.extract_strided_slice %181 {offsets = [0, 0], sizes = [2, 32], strides = [1, 1]} : vector<2x128xf32> to vector<2x32xf32>
    %187 = arith.mulf %186, %183 : vector<2x32xf32>
    %188 = arith.addf %185, %187 : vector<2x32xf32>
    %189 = vector.extract_strided_slice %181 {offsets = [0, 96], sizes = [2, 32], strides = [1, 1]} : vector<2x128xf32> to vector<2x32xf32>
    %190 = math.tanh %188 : vector<2x32xf32>
    %191 = arith.mulf %189, %190 : vector<2x32xf32>
    %192 = tpu.concatenate %65, %83, %101, %119, %137, %155, %173, %191 in 0 : vector<2x32xf32>, vector<2x32xf32>, vector<2x32xf32>, vector<2x32xf32>, vector<2x32xf32>, vector<2x32xf32>, vector<2x32xf32>, vector<2x32xf32> -> vector<16x32xf32>
    %c1 = arith.constant 1 : index
    %c0_60 = arith.constant 0 : index
    %c0_61 = arith.constant 0 : index
    %193 = vector.load %arg2[%c1, %c0_60, %c0_61] : memref<2x32x96xf32, #tpu.memory_space<vmem>>, vector<1x32x96xf32>
    %194 = vector.shape_cast %193 : vector<1x32x96xf32> to vector<32x96xf32>
    %c1_62 = arith.constant 1 : index
    %c0_63 = arith.constant 0 : index
    %c0_64 = arith.constant 0 : index
    %195 = vector.load %arg3[%c1_62, %c0_63, %c0_64] : memref<2x1x96xf32, #tpu.memory_space<vmem>>, vector<1x1x96xf32>
    %196 = vector.shape_cast %195 : vector<1x1x96xf32> to vector<1x96xf32>
    %c1_65 = arith.constant 1 : index
    %c0_66 = arith.constant 0 : index
    %c0_67 = arith.constant 0 : index
    %197 = vector.load %arg4[%c1_65, %c0_66, %c0_67] : memref<2x64x128xf32, #tpu.memory_space<vmem>>, vector<1x64x128xf32>
    %198 = vector.shape_cast %197 : vector<1x64x128xf32> to vector<64x128xf32>
    %c1_68 = arith.constant 1 : index
    %c0_69 = arith.constant 0 : index
    %c0_70 = arith.constant 0 : index
    %199 = vector.load %arg5[%c1_68, %c0_69, %c0_70] : memref<2x32x128xf32, #tpu.memory_space<vmem>>, vector<1x32x128xf32>
    %200 = vector.shape_cast %199 : vector<1x32x128xf32> to vector<32x128xf32>
    %c1_71 = arith.constant 1 : index
    %c0_72 = arith.constant 0 : index
    %c0_73 = arith.constant 0 : index
    %201 = vector.load %arg6[%c1_71, %c0_72, %c0_73] : memref<2x1x128xf32, #tpu.memory_space<vmem>>, vector<1x1x128xf32>
    %202 = vector.shape_cast %201 : vector<1x1x128xf32> to vector<1x128xf32>
    %cst_74 = arith.constant dense<0.000000e+00> : vector<16x96xf32>
    %203 = tpu.matmul %192, %194, %cst_74 {dimension_numbers = #tpu.dot_dimension_numbers<[1], [0], [0], [1], [0, 0, 1, 1], [], []>} : vector<16x32xf32>, vector<32x96xf32>, vector<16x96xf32> -> vector<16x96xf32>
    %204 = vector.broadcast %196 : vector<1x96xf32> to vector<16x96xf32>
    %205 = arith.addf %203, %204 : vector<16x96xf32>
    %cst_75 = arith.constant dense<0.000000e+00> : vector<64x96xf32>
    %206 = tpu.matmul %0, %205, %cst_75 {dimension_numbers = #tpu.dot_dimension_numbers<[1], [0], [0], [1], [0, 0, 1, 1], [], []>} : vector<64x16xf32>, vector<16x96xf32>, vector<64x96xf32> -> vector<64x96xf32>
    %207 = arith.mulf %206, %1 : vector<64x96xf32>
    %cst_76 = arith.constant dense<0.000000e+00> : vector<64x8xf32>
    %208 = tpu.matmul %207, %2, %cst_76 {dimension_numbers = #tpu.dot_dimension_numbers<[1], [0], [0], [1], [0, 0, 1, 1], [], []>} : vector<64x96xf32>, vector<96x8xf32>, vector<64x8xf32> -> vector<64x8xf32>
    %cst_77 = arith.constant dense<0.000000e+00> : vector<64x8xf32>
    %209 = tpu.matmul %207, %3, %cst_77 {dimension_numbers = #tpu.dot_dimension_numbers<[1], [0], [0], [1], [0, 0, 1, 1], [], []>} : vector<64x96xf32>, vector<96x8xf32>, vector<64x8xf32> -> vector<64x8xf32>
    %cst_78 = arith.constant dense<0.000000e+00> : vector<64x32xf32>
    %210 = tpu.matmul %207, %4, %cst_78 {dimension_numbers = #tpu.dot_dimension_numbers<[1], [0], [0], [1], [0, 0, 1, 1], [], []>} : vector<64x96xf32>, vector<96x32xf32>, vector<64x32xf32> -> vector<64x32xf32>
    %cst_79 = arith.constant dense<0.000000e+00> : vector<64x64xf32>
    %211 = tpu.matmul %208, %209, %cst_79 {dimension_numbers = #tpu.dot_dimension_numbers<[1], [1], [0], [0], [0, 0, 1, 0], [], []>} : vector<64x8xf32>, vector<64x8xf32>, vector<64x64xf32> -> vector<64x64xf32>
    %212 = arith.addf %211, %5 : vector<64x64xf32>
    %cst_80 = arith.constant dense<0xFF800000> : vector<64xf32>
    %213 = vector.multi_reduction <maximumf>, %212, %cst_80 [1] : vector<64x64xf32> to vector<64xf32>
    %214 = vector.shape_cast %213 : vector<64xf32> to vector<64x1xf32>
    %215 = vector.broadcast %214 : vector<64x1xf32> to vector<64x64xf32>
    %216 = arith.subf %212, %215 : vector<64x64xf32>
    %217 = math.exp %216 : vector<64x64xf32>
    %cst_81 = arith.constant dense<0.000000e+00> : vector<64xf32>
    %218 = vector.multi_reduction <add>, %217, %cst_81 [1] : vector<64x64xf32> to vector<64xf32>
    %219 = vector.shape_cast %218 : vector<64xf32> to vector<64x1xf32>
    %220 = tpu.reciprocal %219 {approx = true} : vector<64x1xf32> -> vector<64x1xf32>
    %221 = vector.broadcast %220 : vector<64x1xf32> to vector<64x64xf32>
    %222 = arith.mulf %217, %221 : vector<64x64xf32>
    %c0_82 = arith.constant 0 : index
    %c0_83 = arith.constant 0 : index
    %223 = vector.load %arg16[%c0_82, %c0_83] : memref<64x64xf32, #tpu.memory_space<vmem>>, vector<64x64xf32>
    tpu.vector_store %arg16[%c0_82, %c0_83], %222 {strides = array<i32>} : memref<64x64xf32, #tpu.memory_space<vmem>>, vector<64x64xf32>,
    %cst_84 = arith.constant dense<0.000000e+00> : vector<64x32xf32>
    %224 = tpu.matmul %222, %210, %cst_84 {dimension_numbers = #tpu.dot_dimension_numbers<[1], [0], [0], [1], [0, 0, 1, 1], [], []>} : vector<64x64xf32>, vector<64x32xf32>, vector<64x32xf32> -> vector<64x32xf32>
    %225 = arith.mulf %224, %6 : vector<64x32xf32>
    %cst_85 = arith.constant dense<0.000000e+00> : vector<16x32xf32>
    %226 = tpu.matmul %7, %225, %cst_85 {dimension_numbers = #tpu.dot_dimension_numbers<[1], [0], [0], [1], [0, 0, 1, 1], [], []>} : vector<16x64xf32>, vector<64x32xf32>, vector<16x32xf32> -> vector<16x32xf32>
    %227 = tpu.concatenate %192, %226 in 1 : vector<16x32xf32>, vector<16x32xf32> -> vector<16x64xf32>
    %cst_86 = arith.constant dense<0.000000e+00> : vector<16x128xf32>
    %228 = tpu.matmul %227, %198, %cst_86 {dimension_numbers = #tpu.dot_dimension_numbers<[1], [0], [0], [1], [0, 0, 1, 1], [], []>} : vector<16x64xf32>, vector<64x128xf32>, vector<16x128xf32> -> vector<16x128xf32>
    %229 = vector.broadcast %202 : vector<1x128xf32> to vector<16x128xf32>
    %230 = arith.addf %228, %229 : vector<16x128xf32>
    %cst_87 = arith.constant 0.000000e+00 : f32
    %231 = vector.broadcast %cst_87 : f32 to vector<2x32xf32>
    %cst_88 = arith.constant 0.000000e+00 : f32
    %232 = vector.broadcast %cst_88 : f32 to vector<2x32xf32>
    %233 = vector.extract_strided_slice %230 {offsets = [0, 0], sizes = [2, 128], strides = [1, 1]} : vector<16x128xf32> to vector<2x128xf32>
    %cst_89 = arith.constant dense<0.000000e+00> : vector<2x128xf32>
    %234 = tpu.matmul %231, %200, %cst_89 {dimension_numbers = #tpu.dot_dimension_numbers<[1], [0], [0], [1], [0, 0, 1, 1], [], []>} : vector<2x32xf32>, vector<32x128xf32>, vector<2x128xf32> -> vector<2x128xf32>
    %235 = arith.addf %233, %234 : vector<2x128xf32>
    %236 = arith.negf %235 : vector<2x128xf32>
    %237 = math.exp %236 : vector<2x128xf32>
    %cst_90 = arith.constant 1.000000e+00 : f32
    %238 = vector.broadcast %cst_90 : f32 to vector<2x128xf32>
    %239 = arith.addf %238, %237 : vector<2x128xf32>
    %240 = arith.divf %238, %239 : vector<2x128xf32>
    %241 = vector.extract_strided_slice %235 {offsets = [0, 64], sizes = [2, 32], strides = [1, 1]} : vector<2x128xf32> to vector<2x32xf32>
    %242 = math.tanh %241 : vector<2x32xf32>
    %243 = vector.extract_strided_slice %240 {offsets = [0, 32], sizes = [2, 32], strides = [1, 1]} : vector<2x128xf32> to vector<2x32xf32>
    %244 = arith.mulf %243, %232 : vector<2x32xf32>
    %245 = vector.extract_strided_slice %240 {offsets = [0, 0], sizes = [2, 32], strides = [1, 1]} : vector<2x128xf32> to vector<2x32xf32>
    %246 = arith.mulf %245, %242 : vector<2x32xf32>
    %247 = arith.addf %244, %246 : vector<2x32xf32>
    %248 = vector.extract_strided_slice %240 {offsets = [0, 96], sizes = [2, 32], strides = [1, 1]} : vector<2x128xf32> to vector<2x32xf32>
    %249 = math.tanh %247 : vector<2x32xf32>
    %250 = arith.mulf %248, %249 : vector<2x32xf32>
    %251 = vector.extract_strided_slice %230 {offsets = [2, 0], sizes = [2, 128], strides = [1, 1]} : vector<16x128xf32> to vector<2x128xf32>
    %cst_91 = arith.constant dense<0.000000e+00> : vector<2x128xf32>
    %252 = tpu.matmul %250, %200, %cst_91 {dimension_numbers = #tpu.dot_dimension_numbers<[1], [0], [0], [1], [0, 0, 1, 1], [], []>} : vector<2x32xf32>, vector<32x128xf32>, vector<2x128xf32> -> vector<2x128xf32>
    %253 = arith.addf %251, %252 : vector<2x128xf32>
    %254 = arith.negf %253 : vector<2x128xf32>
    %255 = math.exp %254 : vector<2x128xf32>
    %cst_92 = arith.constant 1.000000e+00 : f32
    %256 = vector.broadcast %cst_92 : f32 to vector<2x128xf32>
    %257 = arith.addf %256, %255 : vector<2x128xf32>
    %258 = arith.divf %256, %257 : vector<2x128xf32>
    %259 = vector.extract_strided_slice %253 {offsets = [0, 64], sizes = [2, 32], strides = [1, 1]} : vector<2x128xf32> to vector<2x32xf32>
    %260 = math.tanh %259 : vector<2x32xf32>
    %261 = vector.extract_strided_slice %258 {offsets = [0, 32], sizes = [2, 32], strides = [1, 1]} : vector<2x128xf32> to vector<2x32xf32>
    %262 = arith.mulf %261, %247 : vector<2x32xf32>
    %263 = vector.extract_strided_slice %258 {offsets = [0, 0], sizes = [2, 32], strides = [1, 1]} : vector<2x128xf32> to vector<2x32xf32>
    %264 = arith.mulf %263, %260 : vector<2x32xf32>
    %265 = arith.addf %262, %264 : vector<2x32xf32>
    %266 = vector.extract_strided_slice %258 {offsets = [0, 96], sizes = [2, 32], strides = [1, 1]} : vector<2x128xf32> to vector<2x32xf32>
    %267 = math.tanh %265 : vector<2x32xf32>
    %268 = arith.mulf %266, %267 : vector<2x32xf32>
    %269 = vector.extract_strided_slice %230 {offsets = [4, 0], sizes = [2, 128], strides = [1, 1]} : vector<16x128xf32> to vector<2x128xf32>
    %cst_93 = arith.constant dense<0.000000e+00> : vector<2x128xf32>
    %270 = tpu.matmul %268, %200, %cst_93 {dimension_numbers = #tpu.dot_dimension_numbers<[1], [0], [0], [1], [0, 0, 1, 1], [], []>} : vector<2x32xf32>, vector<32x128xf32>, vector<2x128xf32> -> vector<2x128xf32>
    %271 = arith.addf %269, %270 : vector<2x128xf32>
    %272 = arith.negf %271 : vector<2x128xf32>
    %273 = math.exp %272 : vector<2x128xf32>
    %cst_94 = arith.constant 1.000000e+00 : f32
    %274 = vector.broadcast %cst_94 : f32 to vector<2x128xf32>
    %275 = arith.addf %274, %273 : vector<2x128xf32>
    %276 = arith.divf %274, %275 : vector<2x128xf32>
    %277 = vector.extract_strided_slice %271 {offsets = [0, 64], sizes = [2, 32], strides = [1, 1]} : vector<2x128xf32> to vector<2x32xf32>
    %278 = math.tanh %277 : vector<2x32xf32>
    %279 = vector.extract_strided_slice %276 {offsets = [0, 32], sizes = [2, 32], strides = [1, 1]} : vector<2x128xf32> to vector<2x32xf32>
    %280 = arith.mulf %279, %265 : vector<2x32xf32>
    %281 = vector.extract_strided_slice %276 {offsets = [0, 0], sizes = [2, 32], strides = [1, 1]} : vector<2x128xf32> to vector<2x32xf32>
    %282 = arith.mulf %281, %278 : vector<2x32xf32>
    %283 = arith.addf %280, %282 : vector<2x32xf32>
    %284 = vector.extract_strided_slice %276 {offsets = [0, 96], sizes = [2, 32], strides = [1, 1]} : vector<2x128xf32> to vector<2x32xf32>
    %285 = math.tanh %283 : vector<2x32xf32>
    %286 = arith.mulf %284, %285 : vector<2x32xf32>
    %287 = vector.extract_strided_slice %230 {offsets = [6, 0], sizes = [2, 128], strides = [1, 1]} : vector<16x128xf32> to vector<2x128xf32>
    %cst_95 = arith.constant dense<0.000000e+00> : vector<2x128xf32>
    %288 = tpu.matmul %286, %200, %cst_95 {dimension_numbers = #tpu.dot_dimension_numbers<[1], [0], [0], [1], [0, 0, 1, 1], [], []>} : vector<2x32xf32>, vector<32x128xf32>, vector<2x128xf32> -> vector<2x128xf32>
    %289 = arith.addf %287, %288 : vector<2x128xf32>
    %290 = arith.negf %289 : vector<2x128xf32>
    %291 = math.exp %290 : vector<2x128xf32>
    %cst_96 = arith.constant 1.000000e+00 : f32
    %292 = vector.broadcast %cst_96 : f32 to vector<2x128xf32>
    %293 = arith.addf %292, %291 : vector<2x128xf32>
    %294 = arith.divf %292, %293 : vector<2x128xf32>
    %295 = vector.extract_strided_slice %289 {offsets = [0, 64], sizes = [2, 32], strides = [1, 1]} : vector<2x128xf32> to vector<2x32xf32>
    %296 = math.tanh %295 : vector<2x32xf32>
    %297 = vector.extract_strided_slice %294 {offsets = [0, 32], sizes = [2, 32], strides = [1, 1]} : vector<2x128xf32> to vector<2x32xf32>
    %298 = arith.mulf %297, %283 : vector<2x32xf32>
    %299 = vector.extract_strided_slice %294 {offsets = [0, 0], sizes = [2, 32], strides = [1, 1]} : vector<2x128xf32> to vector<2x32xf32>
    %300 = arith.mulf %299, %296 : vector<2x32xf32>
    %301 = arith.addf %298, %300 : vector<2x32xf32>
    %302 = vector.extract_strided_slice %294 {offsets = [0, 96], sizes = [2, 32], strides = [1, 1]} : vector<2x128xf32> to vector<2x32xf32>
    %303 = math.tanh %301 : vector<2x32xf32>
    %304 = arith.mulf %302, %303 : vector<2x32xf32>
    %305 = vector.extract_strided_slice %230 {offsets = [8, 0], sizes = [2, 128], strides = [1, 1]} : vector<16x128xf32> to vector<2x128xf32>
    %cst_97 = arith.constant dense<0.000000e+00> : vector<2x128xf32>
    %306 = tpu.matmul %304, %200, %cst_97 {dimension_numbers = #tpu.dot_dimension_numbers<[1], [0], [0], [1], [0, 0, 1, 1], [], []>} : vector<2x32xf32>, vector<32x128xf32>, vector<2x128xf32> -> vector<2x128xf32>
    %307 = arith.addf %305, %306 : vector<2x128xf32>
    %308 = arith.negf %307 : vector<2x128xf32>
    %309 = math.exp %308 : vector<2x128xf32>
    %cst_98 = arith.constant 1.000000e+00 : f32
    %310 = vector.broadcast %cst_98 : f32 to vector<2x128xf32>
    %311 = arith.addf %310, %309 : vector<2x128xf32>
    %312 = arith.divf %310, %311 : vector<2x128xf32>
    %313 = vector.extract_strided_slice %307 {offsets = [0, 64], sizes = [2, 32], strides = [1, 1]} : vector<2x128xf32> to vector<2x32xf32>
    %314 = math.tanh %313 : vector<2x32xf32>
    %315 = vector.extract_strided_slice %312 {offsets = [0, 32], sizes = [2, 32], strides = [1, 1]} : vector<2x128xf32> to vector<2x32xf32>
    %316 = arith.mulf %315, %301 : vector<2x32xf32>
    %317 = vector.extract_strided_slice %312 {offsets = [0, 0], sizes = [2, 32], strides = [1, 1]} : vector<2x128xf32> to vector<2x32xf32>
    %318 = arith.mulf %317, %314 : vector<2x32xf32>
    %319 = arith.addf %316, %318 : vector<2x32xf32>
    %320 = vector.extract_strided_slice %312 {offsets = [0, 96], sizes = [2, 32], strides = [1, 1]} : vector<2x128xf32> to vector<2x32xf32>
    %321 = math.tanh %319 : vector<2x32xf32>
    %322 = arith.mulf %320, %321 : vector<2x32xf32>
    %323 = vector.extract_strided_slice %230 {offsets = [10, 0], sizes = [2, 128], strides = [1, 1]} : vector<16x128xf32> to vector<2x128xf32>
    %cst_99 = arith.constant dense<0.000000e+00> : vector<2x128xf32>
    %324 = tpu.matmul %322, %200, %cst_99 {dimension_numbers = #tpu.dot_dimension_numbers<[1], [0], [0], [1], [0, 0, 1, 1], [], []>} : vector<2x32xf32>, vector<32x128xf32>, vector<2x128xf32> -> vector<2x128xf32>
    %325 = arith.addf %323, %324 : vector<2x128xf32>
    %326 = arith.negf %325 : vector<2x128xf32>
    %327 = math.exp %326 : vector<2x128xf32>
    %cst_100 = arith.constant 1.000000e+00 : f32
    %328 = vector.broadcast %cst_100 : f32 to vector<2x128xf32>
    %329 = arith.addf %328, %327 : vector<2x128xf32>
    %330 = arith.divf %328, %329 : vector<2x128xf32>
    %331 = vector.extract_strided_slice %325 {offsets = [0, 64], sizes = [2, 32], strides = [1, 1]} : vector<2x128xf32> to vector<2x32xf32>
    %332 = math.tanh %331 : vector<2x32xf32>
    %333 = vector.extract_strided_slice %330 {offsets = [0, 32], sizes = [2, 32], strides = [1, 1]} : vector<2x128xf32> to vector<2x32xf32>
    %334 = arith.mulf %333, %319 : vector<2x32xf32>
    %335 = vector.extract_strided_slice %330 {offsets = [0, 0], sizes = [2, 32], strides = [1, 1]} : vector<2x128xf32> to vector<2x32xf32>
    %336 = arith.mulf %335, %332 : vector<2x32xf32>
    %337 = arith.addf %334, %336 : vector<2x32xf32>
    %338 = vector.extract_strided_slice %330 {offsets = [0, 96], sizes = [2, 32], strides = [1, 1]} : vector<2x128xf32> to vector<2x32xf32>
    %339 = math.tanh %337 : vector<2x32xf32>
    %340 = arith.mulf %338, %339 : vector<2x32xf32>
    %341 = vector.extract_strided_slice %230 {offsets = [12, 0], sizes = [2, 128], strides = [1, 1]} : vector<16x128xf32> to vector<2x128xf32>
    %cst_101 = arith.constant dense<0.000000e+00> : vector<2x128xf32>
    %342 = tpu.matmul %340, %200, %cst_101 {dimension_numbers = #tpu.dot_dimension_numbers<[1], [0], [0], [1], [0, 0, 1, 1], [], []>} : vector<2x32xf32>, vector<32x128xf32>, vector<2x128xf32> -> vector<2x128xf32>
    %343 = arith.addf %341, %342 : vector<2x128xf32>
    %344 = arith.negf %343 : vector<2x128xf32>
    %345 = math.exp %344 : vector<2x128xf32>
    %cst_102 = arith.constant 1.000000e+00 : f32
    %346 = vector.broadcast %cst_102 : f32 to vector<2x128xf32>
    %347 = arith.addf %346, %345 : vector<2x128xf32>
    %348 = arith.divf %346, %347 : vector<2x128xf32>
    %349 = vector.extract_strided_slice %343 {offsets = [0, 64], sizes = [2, 32], strides = [1, 1]} : vector<2x128xf32> to vector<2x32xf32>
    %350 = math.tanh %349 : vector<2x32xf32>
    %351 = vector.extract_strided_slice %348 {offsets = [0, 32], sizes = [2, 32], strides = [1, 1]} : vector<2x128xf32> to vector<2x32xf32>
    %352 = arith.mulf %351, %337 : vector<2x32xf32>
    %353 = vector.extract_strided_slice %348 {offsets = [0, 0], sizes = [2, 32], strides = [1, 1]} : vector<2x128xf32> to vector<2x32xf32>
    %354 = arith.mulf %353, %350 : vector<2x32xf32>
    %355 = arith.addf %352, %354 : vector<2x32xf32>
    %356 = vector.extract_strided_slice %348 {offsets = [0, 96], sizes = [2, 32], strides = [1, 1]} : vector<2x128xf32> to vector<2x32xf32>
    %357 = math.tanh %355 : vector<2x32xf32>
    %358 = arith.mulf %356, %357 : vector<2x32xf32>
    %359 = vector.extract_strided_slice %230 {offsets = [14, 0], sizes = [2, 128], strides = [1, 1]} : vector<16x128xf32> to vector<2x128xf32>
    %cst_103 = arith.constant dense<0.000000e+00> : vector<2x128xf32>
    %360 = tpu.matmul %358, %200, %cst_103 {dimension_numbers = #tpu.dot_dimension_numbers<[1], [0], [0], [1], [0, 0, 1, 1], [], []>} : vector<2x32xf32>, vector<32x128xf32>, vector<2x128xf32> -> vector<2x128xf32>
    %361 = arith.addf %359, %360 : vector<2x128xf32>
    %362 = arith.negf %361 : vector<2x128xf32>
    %363 = math.exp %362 : vector<2x128xf32>
    %cst_104 = arith.constant 1.000000e+00 : f32
    %364 = vector.broadcast %cst_104 : f32 to vector<2x128xf32>
    %365 = arith.addf %364, %363 : vector<2x128xf32>
    %366 = arith.divf %364, %365 : vector<2x128xf32>
    %367 = vector.extract_strided_slice %361 {offsets = [0, 64], sizes = [2, 32], strides = [1, 1]} : vector<2x128xf32> to vector<2x32xf32>
    %368 = math.tanh %367 : vector<2x32xf32>
    %369 = vector.extract_strided_slice %366 {offsets = [0, 32], sizes = [2, 32], strides = [1, 1]} : vector<2x128xf32> to vector<2x32xf32>
    %370 = arith.mulf %369, %355 : vector<2x32xf32>
    %371 = vector.extract_strided_slice %366 {offsets = [0, 0], sizes = [2, 32], strides = [1, 1]} : vector<2x128xf32> to vector<2x32xf32>
    %372 = arith.mulf %371, %368 : vector<2x32xf32>
    %373 = arith.addf %370, %372 : vector<2x32xf32>
    %374 = vector.extract_strided_slice %366 {offsets = [0, 96], sizes = [2, 32], strides = [1, 1]} : vector<2x128xf32> to vector<2x32xf32>
    %375 = math.tanh %373 : vector<2x32xf32>
    %376 = arith.mulf %374, %375 : vector<2x32xf32>
    %377 = tpu.concatenate %250, %268, %286, %304, %322, %340, %358, %376 in 0 : vector<2x32xf32>, vector<2x32xf32>, vector<2x32xf32>, vector<2x32xf32>, vector<2x32xf32>, vector<2x32xf32>, vector<2x32xf32>, vector<2x32xf32> -> vector<16x32xf32>
    %c0_105 = arith.constant 0 : index
    %c0_106 = arith.constant 0 : index
    %378 = vector.load %arg15[%c0_105, %c0_106] : memref<16x32xf32, #tpu.memory_space<vmem>>, vector<16x32xf32>
    tpu.vector_store %arg15[%c0_105, %c0_106], %377 {strides = array<i32>} : memref<16x32xf32, #tpu.memory_space<vmem>>, vector<16x32xf32>,
    return
  }
  func.func @transform_0(%arg0: i32) -> (i32, i32) {
    %c0_i32 = arith.constant 0 : i32
    %c0_i32_0 = arith.constant 0 : i32
    %c0_i32_1 = arith.constant 0 : i32
    return %c0_i32, %c0_i32_0 : i32, i32
  }
  func.func @transform_1(%arg0: i32) -> (i32, i32, i32) {
    %c0_i32 = arith.constant 0 : i32
    %c0_i32_0 = arith.constant 0 : i32
    %c0_i32_1 = arith.constant 0 : i32
    %c0_i32_2 = arith.constant 0 : i32
    return %c0_i32, %c0_i32_0, %c0_i32_1 : i32, i32, i32
  }
  func.func @transform_2(%arg0: i32) -> (i32, i32, i32) {
    %c0_i32 = arith.constant 0 : i32
    %c0_i32_0 = arith.constant 0 : i32
    %c0_i32_1 = arith.constant 0 : i32
    %c0_i32_2 = arith.constant 0 : i32
    return %c0_i32, %c0_i32_0, %c0_i32_1 : i32, i32, i32
  }
  func.func @transform_3(%arg0: i32) -> (i32, i32, i32) {
    %c0_i32 = arith.constant 0 : i32
    %c0_i32_0 = arith.constant 0 : i32
    %c0_i32_1 = arith.constant 0 : i32
    %c0_i32_2 = arith.constant 0 : i32
    return %c0_i32, %c0_i32_0, %c0_i32_1 : i32, i32, i32
  }
  func.func @transform_4(%arg0: i32) -> (i32, i32, i32) {
    %c0_i32 = arith.constant 0 : i32
    %c0_i32_0 = arith.constant 0 : i32
    %c0_i32_1 = arith.constant 0 : i32
    %c0_i32_2 = arith.constant 0 : i32
    return %c0_i32, %c0_i32_0, %c0_i32_1 : i32, i32, i32
  }
  func.func @transform_5(%arg0: i32) -> (i32, i32, i32) {
    %c0_i32 = arith.constant 0 : i32
    %c0_i32_0 = arith.constant 0 : i32
    %c0_i32_1 = arith.constant 0 : i32
    %c0_i32_2 = arith.constant 0 : i32
    return %c0_i32, %c0_i32_0, %c0_i32_1 : i32, i32, i32
  }
  func.func @transform_6(%arg0: i32) -> (i32, i32) {
    %c0_i32 = arith.constant 0 : i32
    %c0_i32_0 = arith.constant 0 : i32
    %c0_i32_1 = arith.constant 0 : i32
    return %c0_i32, %c0_i32_0 : i32, i32
  }
  func.func @transform_7(%arg0: i32) -> (i32, i32) {
    %c0_i32 = arith.constant 0 : i32
    %c0_i32_0 = arith.constant 0 : i32
    %c0_i32_1 = arith.constant 0 : i32
    return %c0_i32, %c0_i32_0 : i32, i32
  }
  func.func @transform_8(%arg0: i32) -> (i32, i32) {
    %c0_i32 = arith.constant 0 : i32
    %c0_i32_0 = arith.constant 0 : i32
    %c0_i32_1 = arith.constant 0 : i32
    return %c0_i32, %c0_i32_0 : i32, i32
  }
  func.func @transform_9(%arg0: i32) -> (i32, i32) {
    %c0_i32 = arith.constant 0 : i32
    %c0_i32_0 = arith.constant 0 : i32
    %c0_i32_1 = arith.constant 0 : i32
    return %c0_i32, %c0_i32_0 : i32, i32
  }
  func.func @transform_10(%arg0: i32) -> (i32, i32) {
    %c0_i32 = arith.constant 0 : i32
    %c0_i32_0 = arith.constant 0 : i32
    %c0_i32_1 = arith.constant 0 : i32
    return %c0_i32, %c0_i32_0 : i32, i32
  }
  func.func @transform_11(%arg0: i32) -> (i32, i32) {
    %c0_i32 = arith.constant 0 : i32
    %c0_i32_0 = arith.constant 0 : i32
    %c0_i32_1 = arith.constant 0 : i32
    return %c0_i32, %c0_i32_0 : i32, i32
  }
  func.func @transform_12(%arg0: i32) -> (i32, i32) {
    %c0_i32 = arith.constant 0 : i32
    %c0_i32_0 = arith.constant 0 : i32
    %c0_i32_1 = arith.constant 0 : i32
    return %c0_i32, %c0_i32_0 : i32, i32
  }
  func.func @transform_13(%arg0: i32) -> (i32, i32) {
    %c0_i32 = arith.constant 0 : i32
    %c0_i32_0 = arith.constant 0 : i32
    %c0_i32_1 = arith.constant 0 : i32
    return %c0_i32, %c0_i32_0 : i32, i32
  }
  func.func @transform_14(%arg0: i32) -> (i32, i32) {
    %c0_i32 = arith.constant 0 : i32
    %c0_i32_0 = arith.constant 0 : i32
    %c0_i32_1 = arith.constant 0 : i32
    return %c0_i32, %c0_i32_0 : i32, i32
  }
  func.func @transform_15(%arg0: i32) -> (i32, i32) {
    %c0_i32 = arith.constant 0 : i32
    %c0_i32_0 = arith.constant 0 : i32
    %c0_i32_1 = arith.constant 0 : i32
    return %c0_i32, %c0_i32_0 : i32, i32
  }
}

</mosaic_0001>

<llo_original>
// kernel: encoder_forward.1
$region0: #{encoder_forward.1}
  #allocation0 [shape = 'u32[]', space=smem, size = 0x4, offset = 0x4, fixed_abs, tag = 'smem constant byte address 0x4 - core index']
  #allocation1 [shape = 'u32[144,128]{1,0:T(1,128)}', space=vmem, size = 0x12000, scoped, tag = 'internal scratch']
  %s0 = inlined_call_operand.vmem [shape: f32[16,32], index: 0, kind: input, shape index: {}]
  %s1 = inlined_call_operand.vmem [shape: f32[2,32,96], index: 1, kind: input, shape index: {}]
  %s2 = inlined_call_operand.vmem [shape: f32[2,1,96], index: 2, kind: input, shape index: {}]
  %s3 = inlined_call_operand.vmem [shape: f32[2,64,128], index: 3, kind: input, shape index: {}]
  %s4 = inlined_call_operand.vmem [shape: f32[2,32,128], index: 4, kind: input, shape index: {}]
  %s5 = inlined_call_operand.vmem [shape: f32[2,1,128], index: 5, kind: input, shape index: {}]
  %s6 = inlined_call_operand.vmem [shape: f32[64,16], index: 6, kind: input, shape index: {}]
  %s7 = inlined_call_operand.vmem [shape: f32[64,96], index: 7, kind: input, shape index: {}]
  %s8 = inlined_call_operand.vmem [shape: f32[96,8], index: 8, kind: input, shape index: {}]
  %s9 = inlined_call_operand.vmem [shape: f32[96,8], index: 9, kind: input, shape index: {}]
  %s10 = inlined_call_operand.vmem [shape: f32[96,32], index: 10, kind: input, shape index: {}]
  %s11 = inlined_call_operand.vmem [shape: f32[64,64], index: 11, kind: input, shape index: {}]
  %s12 = inlined_call_operand.vmem [shape: f32[64,32], index: 12, kind: input, shape index: {}]
  %s13 = inlined_call_operand.vmem [shape: f32[16,64], index: 13, kind: input, shape index: {}]
  %s14 = inlined_call_operand.vmem [shape: f32[16,32], index: 14, kind: output, shape index: {0}]
  %s15 = inlined_call_operand.vmem [shape: f32[64,64], index: 15, kind: output, shape index: {1}]
  %16 = xla_tuple %s14, %s15
  %s17 = sld [smem:[#allocation0]]
  $region74: #{encoder_forward.1} parent=0
    _
  %s19 = ssub.s32 1, %s17
  %s20 = scalar_select 0, %s19, %s17
  // Predicated region
  $region2: #{encoder_forward.1} parent=0 // pred_check
    _
  $region3: #{encoder_forward.1} parent=0 // pred_check_branch
    %22 = sbr.rel (0) target = $region5
  $region4: #{encoder_forward.1} parent=0 // pred_region
    _
  $region5: #{encoder_forward.1} parent=0 // pred_fallthru
    _
  // Predicated region
  $region6: #{encoder_forward.1} parent=0 // pred_check
    _
  $region7: #{encoder_forward.1} parent=0 // pred_check_branch
    %24 = sbr.rel (0) target = $region9
  $region8: #{encoder_forward.1} parent=0 // pred_region
    _
  $region9: #{encoder_forward.1} parent=0 // pred_fallthru
    _
  // Predicated region
  $region10: #{encoder_forward.1} parent=0 // pred_check
    _
  $region11: #{encoder_forward.1} parent=0 // pred_check_branch
    %26 = sbr.rel (0) target = $region13
  $region12: #{encoder_forward.1} parent=0 // pred_region
    _
  $region13: #{encoder_forward.1} parent=0 // pred_fallthru
    _
  // Predicated region
  $region14: #{encoder_forward.1} parent=0 // pred_check
    _
  $region15: #{encoder_forward.1} parent=0 // pred_check_branch
    %28 = sbr.rel (0) target = $region17
  $region16: #{encoder_forward.1} parent=0 // pred_region
    _
  $region17: #{encoder_forward.1} parent=0 // pred_fallthru
    _
  // Predicated region
  $region18: #{encoder_forward.1} parent=0 // pred_check
    _
  $region19: #{encoder_forward.1} parent=0 // pred_check_branch
    %30 = sbr.rel (0) target = $region21
  $region20: #{encoder_forward.1} parent=0 // pred_region
    _
  $region21: #{encoder_forward.1} parent=0 // pred_fallthru
    _
  // Predicated region
  $region22: #{encoder_forward.1} parent=0 // pred_check
    _
  $region23: #{encoder_forward.1} parent=0 // pred_check_branch
    %32 = sbr.rel (0) target = $region25
  $region24: #{encoder_forward.1} parent=0 // pred_region
    _
  $region25: #{encoder_forward.1} parent=0 // pred_fallthru
    _
  // Predicated region
  $region26: #{encoder_forward.1} parent=0 // pred_check
    _
  $region27: #{encoder_forward.1} parent=0 // pred_check_branch
    %34 = sbr.rel (0) target = $region29
  $region28: #{encoder_forward.1} parent=0 // pred_region
    _
  $region29: #{encoder_forward.1} parent=0 // pred_fallthru
    _
  // Predicated region
  $region30: #{encoder_forward.1} parent=0 // pred_check
    _
  $region31: #{encoder_forward.1} parent=0 // pred_check_branch
    %36 = sbr.rel (0) target = $region33
  $region32: #{encoder_forward.1} parent=0 // pred_region
    _
  $region33: #{encoder_forward.1} parent=0 // pred_fallthru
    _
  // Predicated region
  $region34: #{encoder_forward.1} parent=0 // pred_check
    _
  $region35: #{encoder_forward.1} parent=0 // pred_check_branch
    %38 = sbr.rel (0) target = $region37
  $region36: #{encoder_forward.1} parent=0 // pred_region
    _
  $region37: #{encoder_forward.1} parent=0 // pred_fallthru
    _
  // Predicated region
  $region38: #{encoder_forward.1} parent=0 // pred_check
    _
  $region39: #{encoder_forward.1} parent=0 // pred_check_branch
    %40 = sbr.rel (0) target = $region41
  $region40: #{encoder_forward.1} parent=0 // pred_region
    _
  $region41: #{encoder_forward.1} parent=0 // pred_fallthru
    _
  // Predicated region
  $region42: #{encoder_forward.1} parent=0 // pred_check
    _
  $region43: #{encoder_forward.1} parent=0 // pred_check_branch
    %42 = sbr.rel (0) target = $region45
  $region44: #{encoder_forward.1} parent=0 // pred_region
    _
  $region45: #{encoder_forward.1} parent=0 // pred_fallthru
    _
  // Predicated region
  $region46: #{encoder_forward.1} parent=0 // pred_check
    _
  $region47: #{encoder_forward.1} parent=0 // pred_check_branch
    %44 = sbr.rel (0) target = $region49
  $region48: #{encoder_forward.1} parent=0 // pred_region
    _
  $region49: #{encoder_forward.1} parent=0 // pred_fallthru
    _
  // Predicated region
  $region50: #{encoder_forward.1} parent=0 // pred_check
    _
  $region51: #{encoder_forward.1} parent=0 // pred_check_branch
    %46 = sbr.rel (0) target = $region53
  $region52: #{encoder_forward.1} parent=0 // pred_region
    _
  $region53: #{encoder_forward.1} parent=0 // pred_fallthru
    _
  // Predicated region
  $region54: #{encoder_forward.1} parent=0 // pred_check
    _
  $region55: #{encoder_forward.1} parent=0 // pred_check_branch
    %48 = sbr.rel (0) target = $region57
  $region56: #{encoder_forward.1} parent=0 // pred_region
    _
  $region57: #{encoder_forward.1} parent=0 // pred_fallthru
    _
  %v49 = vld [vmem:[%s6] sm:$0xff]
  %v50 = vld [vmem:[%s6 + $0x8] sm:$0xff]
  %v51 = vld [vmem:[%s6 + $0x10] sm:$0xff]
  %v52 = vld [vmem:[%s6 + $0x18] sm:$0xff]
  %v53 = vld [vmem:[%s6 + $0x20] sm:$0xff]
  %v54 = vld [vmem:[%s6 + $0x28] sm:$0xff]
  %v55 = vld [vmem:[%s6 + $0x30] sm:$0xff]
  %v56 = vld [vmem:[%s6 + $0x38] sm:$0xff]
  %v57 = vld [vmem:[%s7] sm:$0xff]
  %v58 = vld [vmem:[%s7 + $0x8] sm:$0xff]
  %v59 = vld [vmem:[%s7 + $0x10] sm:$0xff]
  %v60 = vld [vmem:[%s7 + $0x18] sm:$0xff]
  %v61 = vld [vmem:[%s7 + $0x20] sm:$0xff]
  %v62 = vld [vmem:[%s7 + $0x28] sm:$0xff]
  %v63 = vld [vmem:[%s7 + $0x30] sm:$0xff]
  %v64 = vld [vmem:[%s7 + $0x38] sm:$0xff]
  %v65 = vld [vmem:[%s8] sm:$0xff]
  %v66 = vld [vmem:[%s8 + $0x8] sm:$0xff]
  %v67 = vld [vmem:[%s8 + $0x10] sm:$0xff]
  %v68 = vld [vmem:[%s8 + $0x18] sm:$0xff]
  %v69 = vld [vmem:[%s8 + $0x20] sm:$0xff]
  %v70 = vld [vmem:[%s8 + $0x28] sm:$0xff]
  %v71 = vld [vmem:[%s8 + $0x30] sm:$0xff]
  %v72 = vld [vmem:[%s8 + $0x38] sm:$0xff]
  %v73 = vld [vmem:[%s8 + $0x40] sm:$0xff]
  %v74 = vld [vmem:[%s8 + $0x48] sm:$0xff]
  %v75 = vld [vmem:[%s8 + $0x50] sm:$0xff]
  %v76 = vld [vmem:[%s8 + $0x58] sm:$0xff]
  %v77 = vld [vmem:[%s9] sm:$0xff]
  %v78 = vld [vmem:[%s9 + $0x8] sm:$0xff]
  %v79 = vld [vmem:[%s9 + $0x10] sm:$0xff]
  %v80 = vld [vmem:[%s9 + $0x18] sm:$0xff]
  %v81 = vld [vmem:[%s9 + $0x20] sm:$0xff]
  %v82 = vld [vmem:[%s9 + $0x28] sm:$0xff]
  %v83 = vld [vmem:[%s9 + $0x30] sm:$0xff]
  %v84 = vld [vmem:[%s9 + $0x38] sm:$0xff]
  %v85 = vld [vmem:[%s9 + $0x40] sm:$0xff]
  %v86 = vld [vmem:[%s9 + $0x48] sm:$0xff]
  %v87 = vld [vmem:[%s9 + $0x50] sm:$0xff]
  %v88 = vld [vmem:[%s9 + $0x58] sm:$0xff]
  %v89 = vld [vmem:[%s10] sm:$0xff]
  %v90 = vld [vmem:[%s10 + $0x8] sm:$0xff]
  %v91 = vld [vmem:[%s10 + $0x10] sm:$0xff]
  %v92 = vld [vmem:[%s10 + $0x18] sm:$0xff]
  %v93 = vld [vmem:[%s10 + $0x20] sm:$0xff]
  %v94 = vld [vmem:[%s10 + $0x28] sm:$0xff]
  %v95 = vld [vmem:[%s10 + $0x30] sm:$0xff]
  %v96 = vld [vmem:[%s10 + $0x38] sm:$0xff]
  %v97 = vld [vmem:[%s10 + $0x40] sm:$0xff]
  %v98 = vld [vmem:[%s10 + $0x48] sm:$0xff]
  %v99 = vld [vmem:[%s10 + $0x50] sm:$0xff]
  %v100 = vld [vmem:[%s10 + $0x58] sm:$0xff]
  %v101 = vld [vmem:[%s11] sm:$0xff]
  %v102 = vld [vmem:[%s11 + $0x8] sm:$0xff]
  %v103 = vld [vmem:[%s11 + $0x10] sm:$0xff]
  %v104 = vld [vmem:[%s11 + $0x18] sm:$0xff]
  %v105 = vld [vmem:[%s11 + $0x20] sm:$0xff]
  %v106 = vld [vmem:[%s11 + $0x28] sm:$0xff]
  %v107 = vld [vmem:[%s11 + $0x30] sm:$0xff]
  %v108 = vld [vmem:[%s11 + $0x38] sm:$0xff]
  %v109 = vld [vmem:[%s12] sm:$0xff]
  %v110 = vld [vmem:[%s12 + $0x8] sm:$0xff]
  %v111 = vld [vmem:[%s12 + $0x10] sm:$0xff]
  %v112 = vld [vmem:[%s12 + $0x18] sm:$0xff]
  %v113 = vld [vmem:[%s12 + $0x20] sm:$0xff]
  %v114 = vld [vmem:[%s12 + $0x28] sm:$0xff]
  %v115 = vld [vmem:[%s12 + $0x30] sm:$0xff]
  %v116 = vld [vmem:[%s12 + $0x38] sm:$0xff]
  %v117 = vld [vmem:[%s13] sm:$0xff]
  %v118 = vld [vmem:[%s13 + $0x8] sm:$0xff]
  %v119 = vld [vmem:[%s0] sm:$0xff]
  %v120 = vld [vmem:[%s0 + $0x8] sm:$0xff]
  %v121 = vld [vmem:[%s1] sm:$0xff]
  %v122 = vld [vmem:[%s1 + $0x8] sm:$0xff]
  %v123 = vld [vmem:[%s1 + $0x10] sm:$0xff]
  %v124 = vld [vmem:[%s1 + $0x18] sm:$0xff]
  %v125 = vld [vmem:[%s2] sm:$0x1]
  %v126 = vld [vmem:[%s3] sm:$0xff]
  %v127 = vld [vmem:[%s3 + $0x8] sm:$0xff]
  %v128 = vld [vmem:[%s3 + $0x10] sm:$0xff]
  %v129 = vld [vmem:[%s3 + $0x18] sm:$0xff]
  %v130 = vld [vmem:[%s3 + $0x20] sm:$0xff]
  %v131 = vld [vmem:[%s3 + $0x28] sm:$0xff]
  %v132 = vld [vmem:[%s3 + $0x30] sm:$0xff]
  %v133 = vld [vmem:[%s3 + $0x38] sm:$0xff]
  %v134 = vld [vmem:[%s4] sm:$0xff]
  %v135 = vld [vmem:[%s4 + $0x8] sm:$0xff]
  %v136 = vld [vmem:[%s4 + $0x10] sm:$0xff]
  %v137 = vld [vmem:[%s4 + $0x18] sm:$0xff]
  %v138 = vld [vmem:[%s5] sm:$0x1]
  %v140 = vlaneseq
  %v141 = vshrl.u32 %v140, 7
  %v142 = vsub.s32 0, %v141
  %v143 = vrot.slane %v125, %v142
  %vm145 = vcmask 261120
  %v147 = vsel %vm145, %v119, 0
  %v150 = vsel %vm145, %v120, 0
  %152 = vmatprep.subr.mxu0 0.0
  %153 = vmatpush1.msra.mxu0 0.0
  %154 = vmatprep.subr.mxu0 0.0
  %155 = vmatpush1.msra.mxu0 0.0
  %156 = vmatprep.subr.mxu0 0.0
  %157 = vmatpush1.msra.mxu0 0.0
  %158 = vmatprep.subr.mxu0 0.0
  %159 = vmatpush1.msra.mxu0 0.0
  %160 = vmatprep.subr.mxu0 0.0
  %161 = vmatpush1.msra.mxu0 0.0
  %162 = vmatprep.subr.mxu0 0.0
  %163 = vmatpush1.msra.mxu0 0.0
  %164 = vmatprep.subr.mxu0 0.0
  %165 = vmatpush1.msra.mxu0 0.0
  %166 = vmatprep.subr.mxu0 0.0
  %167 = vmatpush1.msra.mxu0 0.0
  %168 = vmatprep.subr.mxu0 0.0
  %169 = vmatpush1.msra.mxu0 0.0
  %170 = vmatprep.subr.mxu0 0.0
  %171 = vmatpush1.msra.mxu0 0.0
  %172 = vmatprep.subr.mxu0 0.0
  %173 = vmatpush1.msra.mxu0 0.0
  %174 = vmatprep.subr.mxu0 0.0
  %175 = vmatpush1.msra.mxu0 0.0
  %176 = vmatprep.subr.mxu0 0.0
  %177 = vmatpush1.msra.mxu0 %v124
  %178 = vmatprep.subr.mxu0 0.0
  %179 = vmatpush1.msra.mxu0 %v123
  %180 = vmatprep.subr.mxu0 0.0
  %181 = vmatpush1.msra.mxu0 %v122
  %182 = vmatprep.subr.mxu0 0.0
  %183 = vmatpush1.msra.mxu0 %v121
  %184 = vmatprep.subr.mxu0 0.0
  %185 = vmatpush2.msra.mxu0 0.0
  %186 = vmatprep.subr.mxu0 0.0
  %187 = vmatpush2.msra.mxu0 0.0
  %188 = vmatprep.subr.mxu0 0.0
  %189 = vmatpush2.msra.mxu0 0.0
  %190 = vmatprep.subr.mxu0 0.0
  %191 = vmatpush2.msra.mxu0 0.0
  %192 = vmatprep.subr.mxu0 0.0
  %193 = vmatpush2.msra.mxu0 0.0
  %194 = vmatprep.subr.mxu0 0.0
  %195 = vmatpush2.msra.mxu0 0.0
  %196 = vmatprep.subr.mxu0 0.0
  %197 = vmatpush2.msra.mxu0 0.0
  %198 = vmatprep.subr.mxu0 0.0
  %199 = vmatpush2.msra.mxu0 0.0
  %200 = vmatprep.subr.mxu0 0.0
  %201 = vmatpush2.msra.mxu0 0.0
  %202 = vmatprep.subr.mxu0 0.0
  %203 = vmatpush2.msra.mxu0 0.0
  %204 = vmatprep.subr.mxu0 0.0
  %205 = vmatpush2.msra.mxu0 0.0
  %206 = vmatprep.subr.mxu0 0.0
  %207 = vmatpush2.msra.mxu0 0.0
  %208 = vmatprep.subr.mxu0 0.0
  %209 = vmatpush2.msra.mxu0 0.0
  %210 = vmatprep.subr.mxu0 0.0
  %211 = vmatpush2.msra.mxu0 0.0
  %212 = vmatprep.subr.mxu0 0.0
  %213 = vmatpush2.msra.mxu0 0.0
  %214 = vmatprep.subr.mxu0 0.0
  %215 = vmatpush2.msra.mxu0 0.0
  %216 = vmatprep.mubr.f32.mxu0 0.0
  %217 = vmatmul.mubr.f32.gmra.mxu0 %v147
  %v218 = vpop.f32.mrf.mxu0
  %v219 = vadd.f32 %v143, %v218
  %v220 = vpop.f32.mrf.mxu0
  %221 = vmatprep.mubr.f32.mxu0 0.0
  %222 = vmatmul.mubr.f32.gmra.mxu0 %v150
  %v223 = vpop.f32.mrf.mxu0
  %v224 = vadd.f32 %v143, %v223
  %v225 = vpop.f32.mrf.mxu0
  %226 = vdwg.mxu0
  %vm227 = vcmask 130048
  %v229 = vsel %vm227, %v49, 0
  %v232 = vsel %vm227, %v50, 0
  %v235 = vsel %vm227, %v51, 0
  %v238 = vsel %vm227, %v52, 0
  %v241 = vsel %vm227, %v53, 0
  %v244 = vsel %vm227, %v54, 0
  %v247 = vsel %vm227, %v55, 0
  %v250 = vsel %vm227, %v56, 0
  %252 = vmatprep.subr.mxu0 0.0
  %253 = vmatpush1.msra.mxu0 0.0
  %254 = vmatprep.subr.mxu0 0.0
  %255 = vmatpush1.msra.mxu0 0.0
  %256 = vmatprep.subr.mxu0 0.0
  %257 = vmatpush1.msra.mxu0 0.0
  %258 = vmatprep.subr.mxu0 0.0
  %259 = vmatpush1.msra.mxu0 0.0
  %260 = vmatprep.subr.mxu0 0.0
  %261 = vmatpush1.msra.mxu0 0.0
  %262 = vmatprep.subr.mxu0 0.0
  %263 = vmatpush1.msra.mxu0 0.0
  %264 = vmatprep.subr.mxu0 0.0
  %265 = vmatpush1.msra.mxu0 0.0
  %266 = vmatprep.subr.mxu0 0.0
  %267 = vmatpush1.msra.mxu0 0.0
  %268 = vmatprep.subr.mxu0 0.0
  %269 = vmatpush1.msra.mxu0 0.0
  %270 = vmatprep.subr.mxu0 0.0
  %271 = vmatpush1.msra.mxu0 0.0
  %272 = vmatprep.subr.mxu0 0.0
  %273 = vmatpush1.msra.mxu0 0.0
  %274 = vmatprep.subr.mxu0 0.0
  %275 = vmatpush1.msra.mxu0 0.0
  %276 = vmatprep.subr.mxu0 0.0
  %277 = vmatpush1.msra.mxu0 0.0
  %278 = vmatprep.subr.mxu0 0.0
  %279 = vmatpush1.msra.mxu0 0.0
  %280 = vmatprep.subr.mxu0 0.0
  %281 = vmatpush1.msra.mxu0 %v224
  %282 = vmatprep.subr.mxu0 0.0
  %283 = vmatpush1.msra.mxu0 %v219
  %284 = vmatprep.subr.mxu0 0.0
  %285 = vmatpush2.msra.mxu0 0.0
  %286 = vmatprep.subr.mxu0 0.0
  %287 = vmatpush2.msra.mxu0 0.0
  %288 = vmatprep.subr.mxu0 0.0
  %289 = vmatpush2.msra.mxu0 0.0
  %290 = vmatprep.subr.mxu0 0.0
  %291 = vmatpush2.msra.mxu0 0.0
  %292 = vmatprep.subr.mxu0 0.0
  %293 = vmatpush2.msra.mxu0 0.0
  %294 = vmatprep.subr.mxu0 0.0
  %295 = vmatpush2.msra.mxu0 0.0
  %296 = vmatprep.subr.mxu0 0.0
  %297 = vmatpush2.msra.mxu0 0.0
  %298 = vmatprep.subr.mxu0 0.0
  %299 = vmatpush2.msra.mxu0 0.0
  %300 = vmatprep.subr.mxu0 0.0
  %301 = vmatpush2.msra.mxu0 0.0
  %302 = vmatprep.subr.mxu0 0.0
  %303 = vmatpush2.msra.mxu0 0.0
  %304 = vmatprep.subr.mxu0 0.0
  %305 = vmatpush2.msra.mxu0 0.0
  %306 = vmatprep.subr.mxu0 0.0
  %307 = vmatpush2.msra.mxu0 0.0
  %308 = vmatprep.subr.mxu0 0.0
  %309 = vmatpush2.msra.mxu0 0.0
  %310 = vmatprep.subr.mxu0 0.0
  %311 = vmatpush2.msra.mxu0 0.0
  %312 = vmatprep.subr.mxu0 0.0
  %313 = vmatpush2.msra.mxu0 0.0
  %314 = vmatprep.subr.mxu0 0.0
  %315 = vmatpush2.msra.mxu0 0.0
  %316 = vmatprep.mubr.f32.mxu0 0.0
  %317 = vmatmul.mubr.f32.gmra.mxu0 %v229
  %v318 = vpop.f32.mrf.mxu0
  %v319 = vadd.f32 0.0, %v318
  %v320 = vpop.f32.mrf.mxu0
  %321 = vmatprep.mubr.f32.mxu0 0.0
  %322 = vmatmul.mubr.f32.gmra.mxu0 %v232
  %v323 = vpop.f32.mrf.mxu0
  %v324 = vadd.f32 0.0, %v323
  %v325 = vpop.f32.mrf.mxu0
  %326 = vmatprep.mubr.f32.mxu0 0.0
  %327 = vmatmul.mubr.f32.gmra.mxu0 %v235
  %v328 = vpop.f32.mrf.mxu0
  %v329 = vadd.f32 0.0, %v328
  %v330 = vpop.f32.mrf.mxu0
  %331 = vmatprep.mubr.f32.mxu0 0.0
  %332 = vmatmul.mubr.f32.gmra.mxu0 %v238
  %v333 = vpop.f32.mrf.mxu0
  %v334 = vadd.f32 0.0, %v333
  %v335 = vpop.f32.mrf.mxu0
  %336 = vmatprep.mubr.f32.mxu0 0.0
  %337 = vmatmul.mubr.f32.gmra.mxu0 %v241
  %v338 = vpop.f32.mrf.mxu0
  %v339 = vadd.f32 0.0, %v338
  %v340 = vpop.f32.mrf.mxu0
  %341 = vmatprep.mubr.f32.mxu0 0.0
  %342 = vmatmul.mubr.f32.gmra.mxu0 %v244
  %v343 = vpop.f32.mrf.mxu0
  %v344 = vadd.f32 0.0, %v343
  %v345 = vpop.f32.mrf.mxu0
  %346 = vmatprep.mubr.f32.mxu0 0.0
  %347 = vmatmul.mubr.f32.gmra.mxu0 %v247
  %v348 = vpop.f32.mrf.mxu0
  %v349 = vadd.f32 0.0, %v348
  %v350 = vpop.f32.mrf.mxu0
  %351 = vmatprep.mubr.f32.mxu0 0.0
  %352 = vmatmul.mubr.f32.gmra.mxu0 %v250
  %v353 = vpop.f32.mrf.mxu0
  %v354 = vadd.f32 0.0, %v353
  %v355 = vpop.f32.mrf.mxu0
  %356 = vdwg.mxu0
  %v357 = vmul.f32 %v319, %v57
  %v358 = vmul.f32 %v324, %v58
  %v359 = vmul.f32 %v329, %v59
  %v360 = vmul.f32 %v334, %v60
  %v361 = vmul.f32 %v339, %v61
  %v362 = vmul.f32 %v344, %v62
  %v363 = vmul.f32 %v349, %v63
  %v364 = vmul.f32 %v354, %v64
  %vm365 = vcmask 785408
  %v367 = vsel %vm365, %v357, 0
  %v370 = vsel %vm365, %v358, 0
  %v373 = vsel %vm365, %v359, 0
  %v376 = vsel %vm365, %v360, 0
  %v379 = vsel %vm365, %v361, 0
  %v382 = vsel %vm365, %v362, 0
  %v385 = vsel %vm365, %v363, 0
  %v388 = vsel %vm365, %v364, 0
  %390 = vmatprep.subr.mxu0 0.0
  %391 = vmatpush1.msra.mxu0 0.0
  %392 = vmatprep.subr.mxu0 0.0
  %393 = vmatpush1.msra.mxu0 0.0
  %394 = vmatprep.subr.mxu0 0.0
  %395 = vmatpush1.msra.mxu0 0.0
  %396 = vmatprep.subr.mxu0 0.0
  %397 = vmatpush1.msra.mxu0 0.0
  %398 = vmatprep.subr.mxu0 0.0
  %399 = vmatpush1.msra.mxu0 %v76
  %400 = vmatprep.subr.mxu0 0.0
  %401 = vmatpush1.msra.mxu0 %v75
  %402 = vmatprep.subr.mxu0 0.0
  %403 = vmatpush1.msra.mxu0 %v74
  %404 = vmatprep.subr.mxu0 0.0
  %405 = vmatpush1.msra.mxu0 %v73
  %406 = vmatprep.subr.mxu0 0.0
  %407 = vmatpush1.msra.mxu0 %v72
  %408 = vmatprep.subr.mxu0 0.0
  %409 = vmatpush1.msra.mxu0 %v71
  %410 = vmatprep.subr.mxu0 0.0
  %411 = vmatpush1.msra.mxu0 %v70
  %412 = vmatprep.subr.mxu0 0.0
  %413 = vmatpush1.msra.mxu0 %v69
  %414 = vmatprep.subr.mxu0 0.0
  %415 = vmatpush1.msra.mxu0 %v68
  %416 = vmatprep.subr.mxu0 0.0
  %417 = vmatpush1.msra.mxu0 %v67
  %418 = vmatprep.subr.mxu0 0.0
  %419 = vmatpush1.msra.mxu0 %v66
  %420 = vmatprep.subr.mxu0 0.0
  %421 = vmatpush1.msra.mxu0 %v65
  %422 = vmatprep.subr.mxu0 0.0
  %423 = vmatpush2.msra.mxu0 0.0
  %424 = vmatprep.subr.mxu0 0.0
  %425 = vmatpush2.msra.mxu0 0.0
  %426 = vmatprep.subr.mxu0 0.0
  %427 = vmatpush2.msra.mxu0 0.0
  %428 = vmatprep.subr.mxu0 0.0
  %429 = vmatpush2.msra.mxu0 0.0
  %430 = vmatprep.subr.mxu0 0.0
  %431 = vmatpush2.msra.mxu0 0.0
  %432 = vmatprep.subr.mxu0 0.0
  %433 = vmatpush2.msra.mxu0 0.0
  %434 = vmatprep.subr.mxu0 0.0
  %435 = vmatpush2.msra.mxu0 0.0
  %436 = vmatprep.subr.mxu0 0.0
  %437 = vmatpush2.msra.mxu0 0.0
  %438 = vmatprep.subr.mxu0 0.0
  %439 = vmatpush2.msra.mxu0 0.0
  %440 = vmatprep.subr.mxu0 0.0
  %441 = vmatpush2.msra.mxu0 0.0
  %442 = vmatprep.subr.mxu0 0.0
  %443 = vmatpush2.msra.mxu0 0.0
  %444 = vmatprep.subr.mxu0 0.0
  %445 = vmatpush2.msra.mxu0 0.0
  %446 = vmatprep.subr.mxu0 0.0
  %447 = vmatpush2.msra.mxu0 0.0
  %448 = vmatprep.subr.mxu0 0.0
  %449 = vmatpush2.msra.mxu0 0.0
  %450 = vmatprep.subr.mxu0 0.0
  %451 = vmatpush2.msra.mxu0 0.0
  %452 = vmatprep.subr.mxu0 0.0
  %453 = vmatpush2.msra.mxu0 0.0
  %454 = vmatprep.mubr.f32.mxu0 0.0
  %455 = vmatmul.mubr.f32.gmra.mxu0 %v367
  %v456 = vpop.f32.mrf.mxu0
  %v457 = vadd.f32 0.0, %v456
  %v458 = vpop.f32.mrf.mxu0
  %459 = vmatprep.mubr.f32.mxu0 0.0
  %460 = vmatmul.mubr.f32.gmra.mxu0 %v370
  %v461 = vpop.f32.mrf.mxu0
  %v462 = vadd.f32 0.0, %v461
  %v463 = vpop.f32.mrf.mxu0
  %464 = vmatprep.mubr.f32.mxu0 0.0
  %465 = vmatmul.mubr.f32.gmra.mxu0 %v373
  %v466 = vpop.f32.mrf.mxu0
  %v467 = vadd.f32 0.0, %v466
  %v468 = vpop.f32.mrf.mxu0
  %469 = vmatprep.mubr.f32.mxu0 0.0
  %470 = vmatmul.mubr.f32.gmra.mxu0 %v376
  %v471 = vpop.f32.mrf.mxu0
  %v472 = vadd.f32 0.0, %v471
  %v473 = vpop.f32.mrf.mxu0
  %474 = vmatprep.mubr.f32.mxu0 0.0
  %475 = vmatmul.mubr.f32.gmra.mxu0 %v379
  %v476 = vpop.f32.mrf.mxu0
  %v477 = vadd.f32 0.0, %v476
  %v478 = vpop.f32.mrf.mxu0
  %479 = vmatprep.mubr.f32.mxu0 0.0
  %480 = vmatmul.mubr.f32.gmra.mxu0 %v382
  %v481 = vpop.f32.mrf.mxu0
  %v482 = vadd.f32 0.0, %v481
  %v483 = vpop.f32.mrf.mxu0
  %484 = vmatprep.mubr.f32.mxu0 0.0
  %485 = vmatmul.mubr.f32.gmra.mxu0 %v385
  %v486 = vpop.f32.mrf.mxu0
  %v487 = vadd.f32 0.0, %v486
  %v488 = vpop.f32.mrf.mxu0
  %489 = vmatprep.mubr.f32.mxu0 0.0
  %490 = vmatmul.mubr.f32.gmra.mxu0 %v388
  %v491 = vpop.f32.mrf.mxu0
  %v492 = vadd.f32 0.0, %v491
  %v493 = vpop.f32.mrf.mxu0
  %494 = vdwg.mxu0
  %495 = vmatprep.subr.mxu0 0.0
  %496 = vmatpush1.msra.mxu0 0.0
  %497 = vmatprep.subr.mxu0 0.0
  %498 = vmatpush1.msra.mxu0 0.0
  %499 = vmatprep.subr.mxu0 0.0
  %500 = vmatpush1.msra.mxu0 0.0
  %501 = vmatprep.subr.mxu0 0.0
  %502 = vmatpush1.msra.mxu0 0.0
  %503 = vmatprep.subr.mxu0 0.0
  %504 = vmatpush1.msra.mxu0 %v88
  %505 = vmatprep.subr.mxu0 0.0
  %506 = vmatpush1.msra.mxu0 %v87
  %507 = vmatprep.subr.mxu0 0.0
  %508 = vmatpush1.msra.mxu0 %v86
  %509 = vmatprep.subr.mxu0 0.0
  %510 = vmatpush1.msra.mxu0 %v85
  %511 = vmatprep.subr.mxu0 0.0
  %512 = vmatpush1.msra.mxu0 %v84
  %513 = vmatprep.subr.mxu0 0.0
  %514 = vmatpush1.msra.mxu0 %v83
  %515 = vmatprep.subr.mxu0 0.0
  %516 = vmatpush1.msra.mxu0 %v82
  %517 = vmatprep.subr.mxu0 0.0
  %518 = vmatpush1.msra.mxu0 %v81
  %519 = vmatprep.subr.mxu0 0.0
  %520 = vmatpush1.msra.mxu0 %v80
  %521 = vmatprep.subr.mxu0 0.0
  %522 = vmatpush1.msra.mxu0 %v79
  %523 = vmatprep.subr.mxu0 0.0
  %524 = vmatpush1.msra.mxu0 %v78
  %525 = vmatprep.subr.mxu0 0.0
  %526 = vmatpush1.msra.mxu0 %v77
  %527 = vmatprep.subr.mxu0 0.0
  %528 = vmatpush2.msra.mxu0 0.0
  %529 = vmatprep.subr.mxu0 0.0
  %530 = vmatpush2.msra.mxu0 0.0
  %531 = vmatprep.subr.mxu0 0.0
  %532 = vmatpush2.msra.mxu0 0.0
  %533 = vmatprep.subr.mxu0 0.0
  %534 = vmatpush2.msra.mxu0 0.0
  %535 = vmatprep.subr.mxu0 0.0
  %536 = vmatpush2.msra.mxu0 0.0
  %537 = vmatprep.subr.mxu0 0.0
  %538 = vmatpush2.msra.mxu0 0.0
  %539 = vmatprep.subr.mxu0 0.0
  %540 = vmatpush2.msra.mxu0 0.0
  %541 = vmatprep.subr.mxu0 0.0
  %542 = vmatpush2.msra.mxu0 0.0
  %543 = vmatprep.subr.mxu0 0.0
  %544 = vmatpush2.msra.mxu0 0.0
  %545 = vmatprep.subr.mxu0 0.0
  %546 = vmatpush2.msra.mxu0 0.0
  %547 = vmatprep.subr.mxu0 0.0
  %548 = vmatpush2.msra.mxu0 0.0
  %549 = vmatprep.subr.mxu0 0.0
  %550 = vmatpush2.msra.mxu0 0.0
  %551 = vmatprep.subr.mxu0 0.0
  %552 = vmatpush2.msra.mxu0 0.0
  %553 = vmatprep.subr.mxu0 0.0
  %554 = vmatpush2.msra.mxu0 0.0
  %555 = vmatprep.subr.mxu0 0.0
  %556 = vmatpush2.msra.mxu0 0.0
  %557 = vmatprep.subr.mxu0 0.0
  %558 = vmatpush2.msra.mxu0 0.0
  %559 = vmatprep.mubr.f32.mxu0 0.0
  %560 = vmatmul.mubr.f32.gmra.mxu0 %v367
  %v561 = vpop.f32.mrf.mxu0
  %v562 = vadd.f32 0.0, %v561
  %v563 = vpop.f32.mrf.mxu0
  %564 = vmatprep.mubr.f32.mxu0 0.0
  %565 = vmatmul.mubr.f32.gmra.mxu0 %v370
  %v566 = vpop.f32.mrf.mxu0
  %v567 = vadd.f32 0.0, %v566
  %v568 = vpop.f32.mrf.mxu0
  %569 = vmatprep.mubr.f32.mxu0 0.0
  %570 = vmatmul.mubr.f32.gmra.mxu0 %v373
  %v571 = vpop.f32.mrf.mxu0
  %v572 = vadd.f32 0.0, %v571
  %v573 = vpop.f32.mrf.mxu0
  %574 = vmatprep.mubr.f32.mxu0 0.0
  %575 = vmatmul.mubr.f32.gmra.mxu0 %v376
  %v576 = vpop.f32.mrf.mxu0
  %v577 = vadd.f32 0.0, %v576
  %v578 = vpop.f32.mrf.mxu0
  %579 = vmatprep.mubr.f32.mxu0 0.0
  %580 = vmatmul.mubr.f32.gmra.mxu0 %v379
  %v581 = vpop.f32.mrf.mxu0
  %v582 = vadd.f32 0.0, %v581
  %v583 = vpop.f32.mrf.mxu0
  %584 = vmatprep.mubr.f32.mxu0 0.0
  %585 = vmatmul.mubr.f32.gmra.mxu0 %v382
  %v586 = vpop.f32.mrf.mxu0
  %v587 = vadd.f32 0.0, %v586
  %v588 = vpop.f32.mrf.mxu0
  %589 = vmatprep.mubr.f32.mxu0 0.0
  %590 = vmatmul.mubr.f32.gmra.mxu0 %v385
  %v591 = vpop.f32.mrf.mxu0
  %v592 = vadd.f32 0.0, %v591
  %v593 = vpop.f32.mrf.mxu0
  %594 = vmatprep.mubr.f32.mxu0 0.0
  %595 = vmatmul.mubr.f32.gmra.mxu0 %v388
  %v596 = vpop.f32.mrf.mxu0
  %v597 = vadd.f32 0.0, %v596
  %v598 = vpop.f32.mrf.mxu0
  %599 = vdwg.mxu0
  %600 = vmatprep.subr.mxu0 0.0
  %601 = vmatpush1.msra.mxu0 0.0
  %602 = vmatprep.subr.mxu0 0.0
  %603 = vmatpush1.msra.mxu0 0.0
  %604 = vmatprep.subr.mxu0 0.0
  %605 = vmatpush1.msra.mxu0 0.0
  %606 = vmatprep.subr.mxu0 0.0
  %607 = vmatpush1.msra.mxu0 0.0
  %608 = vmatprep.subr.mxu0 0.0
  %609 = vmatpush1.msra.mxu0 %v100
  %610 = vmatprep.subr.mxu0 0.0
  %611 = vmatpush1.msra.mxu0 %v99
  %612 = vmatprep.subr.mxu0 0.0
  %613 = vmatpush1.msra.mxu0 %v98
  %614 = vmatprep.subr.mxu0 0.0
  %615 = vmatpush1.msra.mxu0 %v97
  %616 = vmatprep.subr.mxu0 0.0
  %617 = vmatpush1.msra.mxu0 %v96
  %618 = vmatprep.subr.mxu0 0.0
  %619 = vmatpush1.msra.mxu0 %v95
  %620 = vmatprep.subr.mxu0 0.0
  %621 = vmatpush1.msra.mxu0 %v94
  %622 = vmatprep.subr.mxu0 0.0
  %623 = vmatpush1.msra.mxu0 %v93
  %624 = vmatprep.subr.mxu0 0.0
  %625 = vmatpush1.msra.mxu0 %v92
  %626 = vmatprep.subr.mxu0 0.0
  %627 = vmatpush1.msra.mxu0 %v91
  %628 = vmatprep.subr.mxu0 0.0
  %629 = vmatpush1.msra.mxu0 %v90
  %630 = vmatprep.subr.mxu0 0.0
  %631 = vmatpush1.msra.mxu0 %v89
  %632 = vmatprep.subr.mxu0 0.0
  %633 = vmatpush2.msra.mxu0 0.0
  %634 = vmatprep.subr.mxu0 0.0
  %635 = vmatpush2.msra.mxu0 0.0
  %636 = vmatprep.subr.mxu0 0.0
  %637 = vmatpush2.msra.mxu0 0.0
  %638 = vmatprep.subr.mxu0 0.0
  %639 = vmatpush2.msra.mxu0 0.0
  %640 = vmatprep.subr.mxu0 0.0
  %641 = vmatpush2.msra.mxu0 0.0
  %642 = vmatprep.subr.mxu0 0.0
  %643 = vmatpush2.msra.mxu0 0.0
  %644 = vmatprep.subr.mxu0 0.0
  %645 = vmatpush2.msra.mxu0 0.0
  %646 = vmatprep.subr.mxu0 0.0
  %647 = vmatpush2.msra.mxu0 0.0
  %648 = vmatprep.subr.mxu0 0.0
  %649 = vmatpush2.msra.mxu0 0.0
  %650 = vmatprep.subr.mxu0 0.0
  %651 = vmatpush2.msra.mxu0 0.0
  %652 = vmatprep.subr.mxu0 0.0
  %653 = vmatpush2.msra.mxu0 0.0
  %654 = vmatprep.subr.mxu0 0.0
  %655 = vmatpush2.msra.mxu0 0.0
  %656 = vmatprep.subr.mxu0 0.0
  %657 = vmatpush2.msra.mxu0 0.0
  %658 = vmatprep.subr.mxu0 0.0
  %659 = vmatpush2.msra.mxu0 0.0
  %660 = vmatprep.subr.mxu0 0.0
  %661 = vmatpush2.msra.mxu0 0.0
  %662 = vmatprep.subr.mxu0 0.0
  %663 = vmatpush2.msra.mxu0 0.0
  %664 = vmatprep.mubr.f32.mxu0 0.0
  %665 = vmatmul.mubr.f32.gmra.mxu0 %v367
  %v666 = vpop.f32.mrf.mxu0
  %v667 = vadd.f32 0.0, %v666
  %v668 = vpop.f32.mrf.mxu0
  %669 = vmatprep.mubr.f32.mxu0 0.0
  %670 = vmatmul.mubr.f32.gmra.mxu0 %v370
  %v671 = vpop.f32.mrf.mxu0
  %v672 = vadd.f32 0.0, %v671
  %v673 = vpop.f32.mrf.mxu0
  %674 = vmatprep.mubr.f32.mxu0 0.0
  %675 = vmatmul.mubr.f32.gmra.mxu0 %v373
  %v676 = vpop.f32.mrf.mxu0
  %v677 = vadd.f32 0.0, %v676
  %v678 = vpop.f32.mrf.mxu0
  %679 = vmatprep.mubr.f32.mxu0 0.0
  %680 = vmatmul.mubr.f32.gmra.mxu0 %v376
  %v681 = vpop.f32.mrf.mxu0
  %v682 = vadd.f32 0.0, %v681
  %v683 = vpop.f32.mrf.mxu0
  %684 = vmatprep.mubr.f32.mxu0 0.0
  %685 = vmatmul.mubr.f32.gmra.mxu0 %v379
  %v686 = vpop.f32.mrf.mxu0
  %v687 = vadd.f32 0.0, %v686
  %v688 = vpop.f32.mrf.mxu0
  %689 = vmatprep.mubr.f32.mxu0 0.0
  %690 = vmatmul.mubr.f32.gmra.mxu0 %v382
  %v691 = vpop.f32.mrf.mxu0
  %v692 = vadd.f32 0.0, %v691
  %v693 = vpop.f32.mrf.mxu0
  %694 = vmatprep.mubr.f32.mxu0 0.0
  %695 = vmatmul.mubr.f32.gmra.mxu0 %v385
  %v696 = vpop.f32.mrf.mxu0
  %v697 = vadd.f32 0.0, %v696
  %v698 = vpop.f32.mrf.mxu0
  %699 = vmatprep.mubr.f32.mxu0 0.0
  %700 = vmatmul.mubr.f32.gmra.mxu0 %v388
  %v701 = vpop.f32.mrf.mxu0
  %v702 = vadd.f32 0.0, %v701
  %v703 = vpop.f32.mrf.mxu0
  %704 = vdwg.mxu0
  %vm705 = vcmask 64512
  %v707 = vsel %vm705, %v457, 0
  %v710 = vsel %vm705, %v462, 0
  %v713 = vsel %vm705, %v467, 0
  %v716 = vsel %vm705, %v472, 0
  %v719 = vsel %vm705, %v477, 0
  %v722 = vsel %vm705, %v482, 0
  %v725 = vsel %vm705, %v487, 0
  %v728 = vsel %vm705, %v492, 0
  %v731 = vsel %vm705, %v562, 0
  %v734 = vsel %vm705, %v567, 0
  %v737 = vsel %vm705, %v572, 0
  %v740 = vsel %vm705, %v577, 0
  %v743 = vsel %vm705, %v582, 0
  %v746 = vsel %vm705, %v587, 0
  %v749 = vsel %vm705, %v592, 0
  %v752 = vsel %vm705, %v597, 0
  %754 = vmatprep.subr.mxu0 0.0
  %755 = vmatpush1.xpose.msra.mxu0 0.0
  %756 = vmatprep.subr.mxu0 0.0
  %757 = vmatpush1.xpose.msra.mxu0 0.0
  %758 = vmatprep.subr.mxu0 0.0
  %759 = vmatpush1.xpose.msra.mxu0 0.0
  %760 = vmatprep.subr.mxu0 0.0
  %761 = vmatpush1.xpose.msra.mxu0 0.0
  %762 = vmatprep.subr.mxu0 0.0
  %763 = vmatpush1.xpose.msra.mxu0 0.0
  %764 = vmatprep.subr.mxu0 0.0
  %765 = vmatpush1.xpose.msra.mxu0 0.0
  %766 = vmatprep.subr.mxu0 0.0
  %767 = vmatpush1.xpose.msra.mxu0 0.0
  %768 = vmatprep.subr.mxu0 0.0
  %769 = vmatpush1.xpose.msra.mxu0 0.0
  %770 = vmatprep.subr.mxu0 0.0
  %771 = vmatpush1.xpose.msra.mxu0 %v752
  %772 = vmatprep.subr.mxu0 0.0
  %773 = vmatpush1.xpose.msra.mxu0 %v749
  %774 = vmatprep.subr.mxu0 0.0
  %775 = vmatpush1.xpose.msra.mxu0 %v746
  %776 = vmatprep.subr.mxu0 0.0
  %777 = vmatpush1.xpose.msra.mxu0 %v743
  %778 = vmatprep.subr.mxu0 0.0
  %779 = vmatpush1.xpose.msra.mxu0 %v740
  %780 = vmatprep.subr.mxu0 0.0
  %781 = vmatpush1.xpose.msra.mxu0 %v737
  %782 = vmatprep.subr.mxu0 0.0
  %783 = vmatpush1.xpose.msra.mxu0 %v734
  %784 = vmatprep.subr.mxu0 0.0
  %785 = vmatpush1.xpose.msra.mxu0 %v731
  %786 = vmatprep.subr.mxu0 0.0
  %787 = vmatpush2.xpose.msra.mxu0 0.0
  %788 = vmatprep.subr.mxu0 0.0
  %789 = vmatpush2.xpose.msra.mxu0 0.0
  %790 = vmatprep.subr.mxu0 0.0
  %791 = vmatpush2.xpose.msra.mxu0 0.0
  %792 = vmatprep.subr.mxu0 0.0
  %793 = vmatpush2.xpose.msra.mxu0 0.0
  %794 = vmatprep.subr.mxu0 0.0
  %795 = vmatpush2.xpose.msra.mxu0 0.0
  %796 = vmatprep.subr.mxu0 0.0
  %797 = vmatpush2.xpose.msra.mxu0 0.0
  %798 = vmatprep.subr.mxu0 0.0
  %799 = vmatpush2.xpose.msra.mxu0 0.0
  %800 = vmatprep.subr.mxu0 0.0
  %801 = vmatpush2.xpose.msra.mxu0 0.0
  %802 = vmatprep.subr.mxu0 0.0
  %803 = vmatpush2.xpose.msra.mxu0 0.0
  %804 = vmatprep.subr.mxu0 0.0
  %805 = vmatpush2.xpose.msra.mxu0 0.0
  %806 = vmatprep.subr.mxu0 0.0
  %807 = vmatpush2.xpose.msra.mxu0 0.0
  %808 = vmatprep.subr.mxu0 0.0
  %809 = vmatpush2.xpose.msra.mxu0 0.0
  %810 = vmatprep.subr.mxu0 0.0
  %811 = vmatpush2.xpose.msra.mxu0 0.0
  %812 = vmatprep.subr.mxu0 0.0
  %813 = vmatpush2.xpose.msra.mxu0 0.0
  %814 = vmatprep.subr.mxu0 0.0
  %815 = vmatpush2.xpose.msra.mxu0 0.0
  %816 = vmatprep.subr.mxu0 0.0
  %817 = vmatpush2.xpose.msra.mxu0 0.0
  %818 = vmatprep.mubr.f32.mxu0 0.0
  %819 = vmatmul.mubr.f32.gmra.mxu0 %v707
  %v820 = vpop.f32.mrf.mxu0
  %v821 = vadd.f32 %v101, %v820
  %v822 = vpop.f32.mrf.mxu0
  %823 = vmatprep.mubr.f32.mxu0 0.0
  %824 = vmatmul.mubr.f32.gmra.mxu0 %v710
  %v825 = vpop.f32.mrf.mxu0
  %v826 = vadd.f32 %v102, %v825
  %v827 = vpop.f32.mrf.mxu0
  %828 = vmatprep.mubr.f32.mxu0 0.0
  %829 = vmatmul.mubr.f32.gmra.mxu0 %v713
  %v830 = vpop.f32.mrf.mxu0
  %v831 = vadd.f32 %v103, %v830
  %v832 = vpop.f32.mrf.mxu0
  %833 = vmatprep.mubr.f32.mxu0 0.0
  %834 = vmatmul.mubr.f32.gmra.mxu0 %v716
  %v835 = vpop.f32.mrf.mxu0
  %v836 = vadd.f32 %v104, %v835
  %v837 = vpop.f32.mrf.mxu0
  %838 = vmatprep.mubr.f32.mxu0 0.0
  %839 = vmatmul.mubr.f32.gmra.mxu0 %v719
  %v840 = vpop.f32.mrf.mxu0
  %v841 = vadd.f32 %v105, %v840
  %v842 = vpop.f32.mrf.mxu0
  %843 = vmatprep.mubr.f32.mxu0 0.0
  %844 = vmatmul.mubr.f32.gmra.mxu0 %v722
  %v845 = vpop.f32.mrf.mxu0
  %v846 = vadd.f32 %v106, %v845
  %v847 = vpop.f32.mrf.mxu0
  %848 = vmatprep.mubr.f32.mxu0 0.0
  %849 = vmatmul.mubr.f32.gmra.mxu0 %v725
  %v850 = vpop.f32.mrf.mxu0
  %v851 = vadd.f32 %v107, %v850
  %v852 = vpop.f32.mrf.mxu0
  %853 = vmatprep.mubr.f32.mxu0 0.0
  %854 = vmatmul.mubr.f32.gmra.mxu0 %v728
  %v855 = vpop.f32.mrf.mxu0
  %v856 = vadd.f32 %v108, %v855
  %v857 = vpop.f32.mrf.mxu0
  %858 = vdwg.mxu0
  %vm859 = vcmask 523264
  %v860 = vsel %vm859, %v821, -inf
  %861 = vmax.xlane.f32.xlu0 %v860
  %v862 = vpop.xlane.xlu0 %861
  %v863 = vsel %vm859, %v826, -inf
  %864 = vmax.xlane.f32.xlu0 %v863
  %v865 = vpop.xlane.xlu0 %864
  %v866 = vsel %vm859, %v831, -inf
  %867 = vmax.xlane.f32.xlu0 %v866
  %v868 = vpop.xlane.xlu0 %867
  %v869 = vsel %vm859, %v836, -inf
  %870 = vmax.xlane.f32.xlu0 %v869
  %v871 = vpop.xlane.xlu0 %870
  %v872 = vsel %vm859, %v841, -inf
  %873 = vmax.xlane.f32.xlu0 %v872
  %v874 = vpop.xlane.xlu0 %873
  %v875 = vsel %vm859, %v846, -inf
  %876 = vmax.xlane.f32.xlu0 %v875
  %v877 = vpop.xlane.xlu0 %876
  %v878 = vsel %vm859, %v851, -inf
  %879 = vmax.xlane.f32.xlu0 %v878
  %v880 = vpop.xlane.xlu0 %879
  %v881 = vsel %vm859, %v856, -inf
  %882 = vmax.xlane.f32.xlu0 %v881
  %v883 = vpop.xlane.xlu0 %882
  %v884 = vsub.f32 %v821, %v862
  %v885 = vsub.f32 %v826, %v865
  %v886 = vsub.f32 %v831, %v868
  %v887 = vsub.f32 %v836, %v871
  %v888 = vsub.f32 %v841, %v874
  %v889 = vsub.f32 %v846, %v877
  %v890 = vsub.f32 %v851, %v880
  %v891 = vsub.f32 %v856, %v883
  %v892 = vmul.f32 %v884, 1.442695
  %v893 = vpow.pop %v892
  %v894 = vmul.f32 %v885, 1.442695
  %v895 = vpow.pop %v894
  %v896 = vmul.f32 %v886, 1.442695
  %v897 = vpow.pop %v896
  %v898 = vmul.f32 %v887, 1.442695
  %v899 = vpow.pop %v898
  %v900 = vmul.f32 %v888, 1.442695
  %v901 = vpow.pop %v900
  %v902 = vmul.f32 %v889, 1.442695
  %v903 = vpow.pop %v902
  %v904 = vmul.f32 %v890, 1.442695
  %v905 = vpow.pop %v904
  %v906 = vmul.f32 %v891, 1.442695
  %v907 = vpow.pop %v906
  %v908 = vsel %vm859, %v893, 0.0
  %909 = vadd.xlane.f32.xlu0 %v908
  %v910 = vpop.xlane.xlu0 %909
  %v911 = vsel %vm859, %v895, 0.0
  %912 = vadd.xlane.f32.xlu0 %v911
  %v913 = vpop.xlane.xlu0 %912
  %v914 = vsel %vm859, %v897, 0.0
  %915 = vadd.xlane.f32.xlu0 %v914
  %v916 = vpop.xlane.xlu0 %915
  %v917 = vsel %vm859, %v899, 0.0
  %918 = vadd.xlane.f32.xlu0 %v917
  %v919 = vpop.xlane.xlu0 %918
  %v920 = vsel %vm859, %v901, 0.0
  %921 = vadd.xlane.f32.xlu0 %v920
  %v922 = vpop.xlane.xlu0 %921
  %v923 = vsel %vm859, %v903, 0.0
  %924 = vadd.xlane.f32.xlu0 %v923
  %v925 = vpop.xlane.xlu0 %924
  %v926 = vsel %vm859, %v905, 0.0
  %927 = vadd.xlane.f32.xlu0 %v926
  %v928 = vpop.xlane.xlu0 %927
  %v929 = vsel %vm859, %v907, 0.0
  %930 = vadd.xlane.f32.xlu0 %v929
  %v931 = vpop.xlane.xlu0 %930
  %v932 = vrcp.pop %v910
  %v933 = vrcp.pop %v913
  %v934 = vrcp.pop %v916
  %v935 = vrcp.pop %v919
  %v936 = vrcp.pop %v922
  %v937 = vrcp.pop %v925
  %v938 = vrcp.pop %v928
  %v939 = vrcp.pop %v931
  %v940 = vmul.f32 %v893, %v932
  %v941 = vmul.f32 %v895, %v933
  %v942 = vmul.f32 %v897, %v934
  %v943 = vmul.f32 %v899, %v935
  %v944 = vmul.f32 %v901, %v936
  %v945 = vmul.f32 %v903, %v937
  %v946 = vmul.f32 %v905, %v938
  %v947 = vmul.f32 %v907, %v939
  %v949 = vsel %vm859, %v940, 0
  %v952 = vsel %vm859, %v941, 0
  %v955 = vsel %vm859, %v942, 0
  %v958 = vsel %vm859, %v943, 0
  %v961 = vsel %vm859, %v944, 0
  %v964 = vsel %vm859, %v945, 0
  %v967 = vsel %vm859, %v946, 0
  %v970 = vsel %vm859, %v947, 0
  %972 = vmatprep.subr.mxu0 0.0
  %973 = vmatpush1.msra.mxu0 0.0
  %974 = vmatprep.subr.mxu0 0.0
  %975 = vmatpush1.msra.mxu0 0.0
  %976 = vmatprep.subr.mxu0 0.0
  %977 = vmatpush1.msra.mxu0 0.0
  %978 = vmatprep.subr.mxu0 0.0
  %979 = vmatpush1.msra.mxu0 0.0
  %980 = vmatprep.subr.mxu0 0.0
  %981 = vmatpush1.msra.mxu0 0.0
  %982 = vmatprep.subr.mxu0 0.0
  %983 = vmatpush1.msra.mxu0 0.0
  %984 = vmatprep.subr.mxu0 0.0
  %985 = vmatpush1.msra.mxu0 0.0
  %986 = vmatprep.subr.mxu0 0.0
  %987 = vmatpush1.msra.mxu0 0.0
  %988 = vmatprep.subr.mxu0 0.0
  %989 = vmatpush1.msra.mxu0 %v702
  %990 = vmatprep.subr.mxu0 0.0
  %991 = vmatpush1.msra.mxu0 %v697
  %992 = vmatprep.subr.mxu0 0.0
  %993 = vmatpush1.msra.mxu0 %v692
  %994 = vmatprep.subr.mxu0 0.0
  %995 = vmatpush1.msra.mxu0 %v687
  %996 = vmatprep.subr.mxu0 0.0
  %997 = vmatpush1.msra.mxu0 %v682
  %998 = vmatprep.subr.mxu0 0.0
  %999 = vmatpush1.msra.mxu0 %v677
  %1000 = vmatprep.subr.mxu0 0.0
  %1001 = vmatpush1.msra.mxu0 %v672
  %1002 = vmatprep.subr.mxu0 0.0
  %1003 = vmatpush1.msra.mxu0 %v667
  %1004 = vmatprep.subr.mxu0 0.0
  %1005 = vmatpush2.msra.mxu0 0.0
  %1006 = vmatprep.subr.mxu0 0.0
  %1007 = vmatpush2.msra.mxu0 0.0
  %1008 = vmatprep.subr.mxu0 0.0
  %1009 = vmatpush2.msra.mxu0 0.0
  %1010 = vmatprep.subr.mxu0 0.0
  %1011 = vmatpush2.msra.mxu0 0.0
  %1012 = vmatprep.subr.mxu0 0.0
  %1013 = vmatpush2.msra.mxu0 0.0
  %1014 = vmatprep.subr.mxu0 0.0
  %1015 = vmatpush2.msra.mxu0 0.0
  %1016 = vmatprep.subr.mxu0 0.0
  %1017 = vmatpush2.msra.mxu0 0.0
  %1018 = vmatprep.subr.mxu0 0.0
  %1019 = vmatpush2.msra.mxu0 0.0
  %1020 = vmatprep.subr.mxu0 0.0
  %1021 = vmatpush2.msra.mxu0 0.0
  %1022 = vmatprep.subr.mxu0 0.0
  %1023 = vmatpush2.msra.mxu0 0.0
  %1024 = vmatprep.subr.mxu0 0.0
  %1025 = vmatpush2.msra.mxu0 0.0
  %1026 = vmatprep.subr.mxu0 0.0
  %1027 = vmatpush2.msra.mxu0 0.0
  %1028 = vmatprep.subr.mxu0 0.0
  %1029 = vmatpush2.msra.mxu0 0.0
  %1030 = vmatprep.subr.mxu0 0.0
  %1031 = vmatpush2.msra.mxu0 0.0
  %1032 = vmatprep.subr.mxu0 0.0
  %1033 = vmatpush2.msra.mxu0 0.0
  %1034 = vmatprep.subr.mxu0 0.0
  %1035 = vmatpush2.msra.mxu0 0.0
  %1036 = vmatprep.mubr.f32.mxu0 0.0
  %1037 = vmatmul.mubr.f32.gmra.mxu0 %v949
  %v1038 = vpop.f32.mrf.mxu0
  %v1039 = vadd.f32 0.0, %v1038
  %v1040 = vpop.f32.mrf.mxu0
  %1041 = vmatprep.mubr.f32.mxu0 0.0
  %1042 = vmatmul.mubr.f32.gmra.mxu0 %v952
  %v1043 = vpop.f32.mrf.mxu0
  %v1044 = vadd.f32 0.0, %v1043
  %v1045 = vpop.f32.mrf.mxu0
  %1046 = vmatprep.mubr.f32.mxu0 0.0
  %1047 = vmatmul.mubr.f32.gmra.mxu0 %v955
  %v1048 = vpop.f32.mrf.mxu0
  %v1049 = vadd.f32 0.0, %v1048
  %v1050 = vpop.f32.mrf.mxu0
  %1051 = vmatprep.mubr.f32.mxu0 0.0
  %1052 = vmatmul.mubr.f32.gmra.mxu0 %v958
  %v1053 = vpop.f32.mrf.mxu0
  %v1054 = vadd.f32 0.0, %v1053
  %v1055 = vpop.f32.mrf.mxu0
  %1056 = vmatprep.mubr.f32.mxu0 0.0
  %1057 = vmatmul.mubr.f32.gmra.mxu0 %v961
  %v1058 = vpop.f32.mrf.mxu0
  %v1059 = vadd.f32 0.0, %v1058
  %v1060 = vpop.f32.mrf.mxu0
  %1061 = vmatprep.mubr.f32.mxu0 0.0
  %1062 = vmatmul.mubr.f32.gmra.mxu0 %v964
  %v1063 = vpop.f32.mrf.mxu0
  %v1064 = vadd.f32 0.0, %v1063
  %v1065 = vpop.f32.mrf.mxu0
  %1066 = vmatprep.mubr.f32.mxu0 0.0
  %1067 = vmatmul.mubr.f32.gmra.mxu0 %v967
  %v1068 = vpop.f32.mrf.mxu0
  %v1069 = vadd.f32 0.0, %v1068
  %v1070 = vpop.f32.mrf.mxu0
  %1071 = vmatprep.mubr.f32.mxu0 0.0
  %1072 = vmatmul.mubr.f32.gmra.mxu0 %v970
  %v1073 = vpop.f32.mrf.mxu0
  %v1074 = vadd.f32 0.0, %v1073
  %v1075 = vpop.f32.mrf.mxu0
  %1076 = vdwg.mxu0
  %v1077 = vmul.f32 %v1039, %v109
  %v1078 = vmul.f32 %v1044, %v110
  %v1079 = vmul.f32 %v1049, %v111
  %v1080 = vmul.f32 %v1054, %v112
  %v1081 = vmul.f32 %v1059, %v113
  %v1082 = vmul.f32 %v1064, %v114
  %v1083 = vmul.f32 %v1069, %v115
  %v1084 = vmul.f32 %v1074, %v116
  %v1086 = vsel %vm859, %v117, 0
  %v1089 = vsel %vm859, %v118, 0
  %1091 = vmatprep.subr.mxu0 0.0
  %1092 = vmatpush1.msra.mxu0 0.0
  %1093 = vmatprep.subr.mxu0 0.0
  %1094 = vmatpush1.msra.mxu0 0.0
  %1095 = vmatprep.subr.mxu0 0.0
  %1096 = vmatpush1.msra.mxu0 0.0
  %1097 = vmatprep.subr.mxu0 0.0
  %1098 = vmatpush1.msra.mxu0 0.0
  %1099 = vmatprep.subr.mxu0 0.0
  %1100 = vmatpush1.msra.mxu0 0.0
  %1101 = vmatprep.subr.mxu0 0.0
  %1102 = vmatpush1.msra.mxu0 0.0
  %1103 = vmatprep.subr.mxu0 0.0
  %1104 = vmatpush1.msra.mxu0 0.0
  %1105 = vmatprep.subr.mxu0 0.0
  %1106 = vmatpush1.msra.mxu0 0.0
  %1107 = vmatprep.subr.mxu0 0.0
  %1108 = vmatpush1.msra.mxu0 %v1084
  %1109 = vmatprep.subr.mxu0 0.0
  %1110 = vmatpush1.msra.mxu0 %v1083
  %1111 = vmatprep.subr.mxu0 0.0
  %1112 = vmatpush1.msra.mxu0 %v1082
  %1113 = vmatprep.subr.mxu0 0.0
  %1114 = vmatpush1.msra.mxu0 %v1081
  %1115 = vmatprep.subr.mxu0 0.0
  %1116 = vmatpush1.msra.mxu0 %v1080
  %1117 = vmatprep.subr.mxu0 0.0
  %1118 = vmatpush1.msra.mxu0 %v1079
  %1119 = vmatprep.subr.mxu0 0.0
  %1120 = vmatpush1.msra.mxu0 %v1078
  %1121 = vmatprep.subr.mxu0 0.0
  %1122 = vmatpush1.msra.mxu0 %v1077
  %1123 = vmatprep.subr.mxu0 0.0
  %1124 = vmatpush2.msra.mxu0 0.0
  %1125 = vmatprep.subr.mxu0 0.0
  %1126 = vmatpush2.msra.mxu0 0.0
  %1127 = vmatprep.subr.mxu0 0.0
  %1128 = vmatpush2.msra.mxu0 0.0
  %1129 = vmatprep.subr.mxu0 0.0
  %1130 = vmatpush2.msra.mxu0 0.0
  %1131 = vmatprep.subr.mxu0 0.0
  %1132 = vmatpush2.msra.mxu0 0.0
  %1133 = vmatprep.subr.mxu0 0.0
  %1134 = vmatpush2.msra.mxu0 0.0
  %1135 = vmatprep.subr.mxu0 0.0
  %1136 = vmatpush2.msra.mxu0 0.0
  %1137 = vmatprep.subr.mxu0 0.0
  %1138 = vmatpush2.msra.mxu0 0.0
  %1139 = vmatprep.subr.mxu0 0.0
  %1140 = vmatpush2.msra.mxu0 0.0
  %1141 = vmatprep.subr.mxu0 0.0
  %1142 = vmatpush2.msra.mxu0 0.0
  %1143 = vmatprep.subr.mxu0 0.0
  %1144 = vmatpush2.msra.mxu0 0.0
  %1145 = vmatprep.subr.mxu0 0.0
  %1146 = vmatpush2.msra.mxu0 0.0
  %1147 = vmatprep.subr.mxu0 0.0
  %1148 = vmatpush2.msra.mxu0 0.0
  %1149 = vmatprep.subr.mxu0 0.0
  %1150 = vmatpush2.msra.mxu0 0.0
  %1151 = vmatprep.subr.mxu0 0.0
  %1152 = vmatpush2.msra.mxu0 0.0
  %1153 = vmatprep.subr.mxu0 0.0
  %1154 = vmatpush2.msra.mxu0 0.0
  %1155 = vmatprep.mubr.f32.mxu0 0.0
  %1156 = vmatmul.mubr.f32.gmra.mxu0 %v1086
  %v1157 = vpop.f32.mrf.mxu0
  %v1158 = vadd.f32 0.0, %v1157
  %v1159 = vpop.f32.mrf.mxu0
  %1160 = vmatprep.mubr.f32.mxu0 0.0
  %1161 = vmatmul.mubr.f32.gmra.mxu0 %v1089
  %v1162 = vpop.f32.mrf.mxu0
  %v1163 = vadd.f32 0.0, %v1162
  %v1164 = vpop.f32.mrf.mxu0
  %1165 = vdwg.mxu0
  %1168 = vrot.lane.b32.xlu0 %v1158, 32
  %v1169 = vpop.permute.xlu0 %1168
  %1170 = vrot.lane.b32.xlu0 %v1163, 32
  %v1171 = vpop.permute.xlu0 %1170
  %v1174 = vsel %vm145, %v119, %v1169
  %v1175 = vsel %vm145, %v120, %v1171
  %v1177 = vlaneseq
  %v1178 = vshrl.u32 %v1177, 7
  %v1179 = vsub.s32 0, %v1178
  %v1180 = vrot.slane %v138, %v1179
  %v1183 = vsel %vm859, %v1174, 0
  %v1186 = vsel %vm859, %v1175, 0
  %1188 = vmatprep.subr.mxu0 0.0
  %1189 = vmatpush1.msra.mxu0 0.0
  %1190 = vmatprep.subr.mxu0 0.0
  %1191 = vmatpush1.msra.mxu0 0.0
  %1192 = vmatprep.subr.mxu0 0.0
  %1193 = vmatpush1.msra.mxu0 0.0
  %1194 = vmatprep.subr.mxu0 0.0
  %1195 = vmatpush1.msra.mxu0 0.0
  %1196 = vmatprep.subr.mxu0 0.0
  %1197 = vmatpush1.msra.mxu0 0.0
  %1198 = vmatprep.subr.mxu0 0.0
  %1199 = vmatpush1.msra.mxu0 0.0
  %1200 = vmatprep.subr.mxu0 0.0
  %1201 = vmatpush1.msra.mxu0 0.0
  %1202 = vmatprep.subr.mxu0 0.0
  %1203 = vmatpush1.msra.mxu0 0.0
  %1204 = vmatprep.subr.mxu0 0.0
  %1205 = vmatpush1.msra.mxu0 %v133
  %1206 = vmatprep.subr.mxu0 0.0
  %1207 = vmatpush1.msra.mxu0 %v132
  %1208 = vmatprep.subr.mxu0 0.0
  %1209 = vmatpush1.msra.mxu0 %v131
  %1210 = vmatprep.subr.mxu0 0.0
  %1211 = vmatpush1.msra.mxu0 %v130
  %1212 = vmatprep.subr.mxu0 0.0
  %1213 = vmatpush1.msra.mxu0 %v129
  %1214 = vmatprep.subr.mxu0 0.0
  %1215 = vmatpush1.msra.mxu0 %v128
  %1216 = vmatprep.subr.mxu0 0.0
  %1217 = vmatpush1.msra.mxu0 %v127
  %1218 = vmatprep.subr.mxu0 0.0
  %1219 = vmatpush1.msra.mxu0 %v126
  %1220 = vmatprep.subr.mxu0 0.0
  %1221 = vmatpush2.msra.mxu0 0.0
  %1222 = vmatprep.subr.mxu0 0.0
  %1223 = vmatpush2.msra.mxu0 0.0
  %1224 = vmatprep.subr.mxu0 0.0
  %1225 = vmatpush2.msra.mxu0 0.0
  %1226 = vmatprep.subr.mxu0 0.0
  %1227 = vmatpush2.msra.mxu0 0.0
  %1228 = vmatprep.subr.mxu0 0.0
  %1229 = vmatpush2.msra.mxu0 0.0
  %1230 = vmatprep.subr.mxu0 0.0
  %1231 = vmatpush2.msra.mxu0 0.0
  %1232 = vmatprep.subr.mxu0 0.0
  %1233 = vmatpush2.msra.mxu0 0.0
  %1234 = vmatprep.subr.mxu0 0.0
  %1235 = vmatpush2.msra.mxu0 0.0
  %1236 = vmatprep.subr.mxu0 0.0
  %1237 = vmatpush2.msra.mxu0 0.0
  %1238 = vmatprep.subr.mxu0 0.0
  %1239 = vmatpush2.msra.mxu0 0.0
  %1240 = vmatprep.subr.mxu0 0.0
  %1241 = vmatpush2.msra.mxu0 0.0
  %1242 = vmatprep.subr.mxu0 0.0
  %1243 = vmatpush2.msra.mxu0 0.0
  %1244 = vmatprep.subr.mxu0 0.0
  %1245 = vmatpush2.msra.mxu0 0.0
  %1246 = vmatprep.subr.mxu0 0.0
  %1247 = vmatpush2.msra.mxu0 0.0
  %1248 = vmatprep.subr.mxu0 0.0
  %1249 = vmatpush2.msra.mxu0 0.0
  %1250 = vmatprep.subr.mxu0 0.0
  %1251 = vmatpush2.msra.mxu0 0.0
  %1252 = vmatprep.mubr.f32.mxu0 0.0
  %1253 = vmatmul.mubr.f32.gmra.mxu0 %v1183
  %v1254 = vpop.f32.mrf.mxu0
  %v1255 = vadd.f32 %v1180, %v1254
  %v1256 = vpop.f32.mrf.mxu0
  %1257 = vmatprep.mubr.f32.mxu0 0.0
  %1258 = vmatmul.mubr.f32.gmra.mxu0 %v1186
  %v1259 = vpop.f32.mrf.mxu0
  %v1260 = vadd.f32 %v1180, %v1259
  %v1261 = vpop.f32.mrf.mxu0
  %1262 = vdwg.mxu0
  %v1264 = vsel %vm145, 0.0, 0
  %1266 = vmatprep.subr.mxu0 0.0
  %1267 = vmatpush1.msra.mxu0 0.0
  %1268 = vmatprep.subr.mxu0 0.0
  %1269 = vmatpush1.msra.mxu0 0.0
  %1270 = vmatprep.subr.mxu0 0.0
  %1271 = vmatpush1.msra.mxu0 0.0
  %1272 = vmatprep.subr.mxu0 0.0
  %1273 = vmatpush1.msra.mxu0 0.0
  %1274 = vmatprep.subr.mxu0 0.0
  %1275 = vmatpush1.msra.mxu0 0.0
  %1276 = vmatprep.subr.mxu0 0.0
  %1277 = vmatpush1.msra.mxu0 0.0
  %1278 = vmatprep.subr.mxu0 0.0
  %1279 = vmatpush1.msra.mxu0 0.0
  %1280 = vmatprep.subr.mxu0 0.0
  %1281 = vmatpush1.msra.mxu0 0.0
  %1282 = vmatprep.subr.mxu0 0.0
  %1283 = vmatpush1.msra.mxu0 0.0
  %1284 = vmatprep.subr.mxu0 0.0
  %1285 = vmatpush1.msra.mxu0 0.0
  %1286 = vmatprep.subr.mxu0 0.0
  %1287 = vmatpush1.msra.mxu0 0.0
  %1288 = vmatprep.subr.mxu0 0.0
  %1289 = vmatpush1.msra.mxu0 0.0
  %1290 = vmatprep.subr.mxu0 0.0
  %1291 = vmatpush1.msra.mxu0 %v137
  %1292 = vmatprep.subr.mxu0 0.0
  %1293 = vmatpush1.msra.mxu0 %v136
  %1294 = vmatprep.subr.mxu0 0.0
  %1295 = vmatpush1.msra.mxu0 %v135
  %1296 = vmatprep.subr.mxu0 0.0
  %1297 = vmatpush1.msra.mxu0 %v134
  %1298 = vmatprep.subr.mxu0 0.0
  %1299 = vmatpush2.msra.mxu0 0.0
  %1300 = vmatprep.subr.mxu0 0.0
  %1301 = vmatpush2.msra.mxu0 0.0
  %1302 = vmatprep.subr.mxu0 0.0
  %1303 = vmatpush2.msra.mxu0 0.0
  %1304 = vmatprep.subr.mxu0 0.0
  %1305 = vmatpush2.msra.mxu0 0.0
  %1306 = vmatprep.subr.mxu0 0.0
  %1307 = vmatpush2.msra.mxu0 0.0
  %1308 = vmatprep.subr.mxu0 0.0
  %1309 = vmatpush2.msra.mxu0 0.0
  %1310 = vmatprep.subr.mxu0 0.0
  %1311 = vmatpush2.msra.mxu0 0.0
  %1312 = vmatprep.subr.mxu0 0.0
  %1313 = vmatpush2.msra.mxu0 0.0
  %1314 = vmatprep.subr.mxu0 0.0
  %1315 = vmatpush2.msra.mxu0 0.0
  %1316 = vmatprep.subr.mxu0 0.0
  %1317 = vmatpush2.msra.mxu0 0.0
  %1318 = vmatprep.subr.mxu0 0.0
  %1319 = vmatpush2.msra.mxu0 0.0
  %1320 = vmatprep.subr.mxu0 0.0
  %1321 = vmatpush2.msra.mxu0 0.0
  %1322 = vmatprep.subr.mxu0 0.0
  %1323 = vmatpush2.msra.mxu0 0.0
  %1324 = vmatprep.subr.mxu0 0.0
  %1325 = vmatpush2.msra.mxu0 0.0
  %1326 = vmatprep.subr.mxu0 0.0
  %1327 = vmatpush2.msra.mxu0 0.0
  %1328 = vmatprep.subr.mxu0 0.0
  %1329 = vmatpush2.msra.mxu0 0.0
  %1330 = vmatprep.mubr.f32.mxu0 0.0
  %1331 = vmatmul.mubr.f32.gmra.mxu0 %v1264
  %v1332 = vpop.f32.mrf.mxu0
  %v1333 = vadd.f32 0.0, %v1332
  %v1334 = vpop.f32.mrf.mxu0
  %1335 = vdwg.mxu0
  %v1336 = vadd.f32 %v1255, %v1333
  %v1337 = vxor.u32 %v1336, 2147483648
  %v1338 = vmul.f32 %v1337, 1.442695
  %v1339 = vpow.pop %v1338
  %v1340 = vadd.f32 %v1339, 1.0
  %v1341 = vrcp.pop %v1340
  %v1342 = vmul.f32 1.0, %v1341
  %v1343 = vtanh.pop %v1336
  %v1344 = vmul.f32 %v1342, 0.0
  %1346 = vrot.lane.b32.xlu0 %v1343, 64
  %v1347 = vpop.permute.xlu0 %1346
  %v1349 = vmul.f32 %v1342, %v1347
  %1351 = vrot.lane.b32.xlu0 %v1349, 32
  %v1352 = vpop.permute.xlu0 %1351
  %v1354 = vadd.f32 %v1344, %v1352
  %v1355 = vtanh.pop %v1354
  %1357 = vrot.lane.b32.xlu0 %v1355, 64
  %v1358 = vpop.permute.xlu0 %1357
  %v1360 = vmul.f32 %v1342, %v1358
  %1362 = vrot.lane.b32.xlu0 %v1360, 32
  %v1363 = vpop.permute.xlu0 %1362
  %v1364 = vsel %vm145, %v1363, 0
  %1366 = vmatprep.subr.mxu0 0.0
  %1367 = vmatpush1.msra.mxu0 0.0
  %1368 = vmatprep.subr.mxu0 0.0
  %1369 = vmatpush1.msra.mxu0 0.0
  %1370 = vmatprep.subr.mxu0 0.0
  %1371 = vmatpush1.msra.mxu0 0.0
  %1372 = vmatprep.subr.mxu0 0.0
  %1373 = vmatpush1.msra.mxu0 0.0
  %1374 = vmatprep.subr.mxu0 0.0
  %1375 = vmatpush1.msra.mxu0 0.0
  %1376 = vmatprep.subr.mxu0 0.0
  %1377 = vmatpush1.msra.mxu0 0.0
  %1378 = vmatprep.subr.mxu0 0.0
  %1379 = vmatpush1.msra.mxu0 0.0
  %1380 = vmatprep.subr.mxu0 0.0
  %1381 = vmatpush1.msra.mxu0 0.0
  %1382 = vmatprep.subr.mxu0 0.0
  %1383 = vmatpush1.msra.mxu0 0.0
  %1384 = vmatprep.subr.mxu0 0.0
  %1385 = vmatpush1.msra.mxu0 0.0
  %1386 = vmatprep.subr.mxu0 0.0
  %1387 = vmatpush1.msra.mxu0 0.0
  %1388 = vmatprep.subr.mxu0 0.0
  %1389 = vmatpush1.msra.mxu0 0.0
  %1390 = vmatprep.subr.mxu0 0.0
  %1391 = vmatpush1.msra.mxu0 %v137
  %1392 = vmatprep.subr.mxu0 0.0
  %1393 = vmatpush1.msra.mxu0 %v136
  %1394 = vmatprep.subr.mxu0 0.0
  %1395 = vmatpush1.msra.mxu0 %v135
  %1396 = vmatprep.subr.mxu0 0.0
  %1397 = vmatpush1.msra.mxu0 %v134
  %1398 = vmatprep.subr.mxu0 0.0
  %1399 = vmatpush2.msra.mxu0 0.0
  %1400 = vmatprep.subr.mxu0 0.0
  %1401 = vmatpush2.msra.mxu0 0.0
  %1402 = vmatprep.subr.mxu0 0.0
  %1403 = vmatpush2.msra.mxu0 0.0
  %1404 = vmatprep.subr.mxu0 0.0
  %1405 = vmatpush2.msra.mxu0 0.0
  %1406 = vmatprep.subr.mxu0 0.0
  %1407 = vmatpush2.msra.mxu0 0.0
  %1408 = vmatprep.subr.mxu0 0.0
  %1409 = vmatpush2.msra.mxu0 0.0
  %1410 = vmatprep.subr.mxu0 0.0
  %1411 = vmatpush2.msra.mxu0 0.0
  %1412 = vmatprep.subr.mxu0 0.0
  %1413 = vmatpush2.msra.mxu0 0.0
  %1414 = vmatprep.subr.mxu0 0.0
  %1415 = vmatpush2.msra.mxu0 0.0
  %1416 = vmatprep.subr.mxu0 0.0
  %1417 = vmatpush2.msra.mxu0 0.0
  %1418 = vmatprep.subr.mxu0 0.0
  %1419 = vmatpush2.msra.mxu0 0.0
  %1420 = vmatprep.subr.mxu0 0.0
  %1421 = vmatpush2.msra.mxu0 0.0
  %1422 = vmatprep.subr.mxu0 0.0
  %1423 = vmatpush2.msra.mxu0 0.0
  %1424 = vmatprep.subr.mxu0 0.0
  %1425 = vmatpush2.msra.mxu0 0.0
  %1426 = vmatprep.subr.mxu0 0.0
  %1427 = vmatpush2.msra.mxu0 0.0
  %1428 = vmatprep.subr.mxu0 0.0
  %1429 = vmatpush2.msra.mxu0 0.0
  %1430 = vmatprep.mubr.f32.mxu0 0.0
  %1431 = vmatmul.mubr.f32.gmra.mxu0 %v1364
  %v1432 = vpop.f32.mrf.mxu0
  %v1433 = vadd.f32 0.0, %v1432
  %v1434 = vpop.f32.mrf.mxu0
  %1435 = vdwg.mxu0
  %v1437 = vrot.slane %v1433, 6
  %v1439 = vadd.f32 %v1255, %v1437
  %v1440 = vxor.u32 %v1439, 2147483648
  %v1441 = vmul.f32 %v1440, 1.442695
  %v1442 = vpow.pop %v1441
  %v1443 = vadd.f32 %v1442, 1.0
  %v1444 = vrcp.pop %v1443
  %v1445 = vmul.f32 1.0, %v1444
  %v1446 = vtanh.pop %v1439
  %v1448 = vrot.slane %v1354, 6
  %v1450 = vmul.f32 %v1445, %v1448
  %1452 = vrot.lane.b32.xlu0 %v1446, 64
  %v1453 = vpop.permute.xlu0 %1452
  %v1455 = vmul.f32 %v1445, %v1453
  %1457 = vrot.lane.b32.xlu0 %v1455, 32
  %v1458 = vpop.permute.xlu0 %1457
  %v1460 = vadd.f32 %v1450, %v1458
  %v1461 = vtanh.pop %v1460
  %1463 = vrot.lane.b32.xlu0 %v1461, 64
  %v1464 = vpop.permute.xlu0 %1463
  %v1466 = vmul.f32 %v1445, %v1464
  %v1468 = vrot.slane %v1466, 2
  %1469 = vrot.lane.b32.xlu0 %v1468, 32
  %v1470 = vpop.permute.xlu0 %1469
  %v1471 = vsel %vm145, %v1470, 0
  %1473 = vmatprep.subr.mxu0 0.0
  %1474 = vmatpush1.msra.mxu0 0.0
  %1475 = vmatprep.subr.mxu0 0.0
  %1476 = vmatpush1.msra.mxu0 0.0
  %1477 = vmatprep.subr.mxu0 0.0
  %1478 = vmatpush1.msra.mxu0 0.0
  %1479 = vmatprep.subr.mxu0 0.0
  %1480 = vmatpush1.msra.mxu0 0.0
  %1481 = vmatprep.subr.mxu0 0.0
  %1482 = vmatpush1.msra.mxu0 0.0
  %1483 = vmatprep.subr.mxu0 0.0
  %1484 = vmatpush1.msra.mxu0 0.0
  %1485 = vmatprep.subr.mxu0 0.0
  %1486 = vmatpush1.msra.mxu0 0.0
  %1487 = vmatprep.subr.mxu0 0.0
  %1488 = vmatpush1.msra.mxu0 0.0
  %1489 = vmatprep.subr.mxu0 0.0
  %1490 = vmatpush1.msra.mxu0 0.0
  %1491 = vmatprep.subr.mxu0 0.0
  %1492 = vmatpush1.msra.mxu0 0.0
  %1493 = vmatprep.subr.mxu0 0.0
  %1494 = vmatpush1.msra.mxu0 0.0
  %1495 = vmatprep.subr.mxu0 0.0
  %1496 = vmatpush1.msra.mxu0 0.0
  %1497 = vmatprep.subr.mxu0 0.0
  %1498 = vmatpush1.msra.mxu0 %v137
  %1499 = vmatprep.subr.mxu0 0.0
  %1500 = vmatpush1.msra.mxu0 %v136
  %1501 = vmatprep.subr.mxu0 0.0
  %1502 = vmatpush1.msra.mxu0 %v135
  %1503 = vmatprep.subr.mxu0 0.0
  %1504 = vmatpush1.msra.mxu0 %v134
  %1505 = vmatprep.subr.mxu0 0.0
  %1506 = vmatpush2.msra.mxu0 0.0
  %1507 = vmatprep.subr.mxu0 0.0
  %1508 = vmatpush2.msra.mxu0 0.0
  %1509 = vmatprep.subr.mxu0 0.0
  %1510 = vmatpush2.msra.mxu0 0.0
  %1511 = vmatprep.subr.mxu0 0.0
  %1512 = vmatpush2.msra.mxu0 0.0
  %1513 = vmatprep.subr.mxu0 0.0
  %1514 = vmatpush2.msra.mxu0 0.0
  %1515 = vmatprep.subr.mxu0 0.0
  %1516 = vmatpush2.msra.mxu0 0.0
  %1517 = vmatprep.subr.mxu0 0.0
  %1518 = vmatpush2.msra.mxu0 0.0
  %1519 = vmatprep.subr.mxu0 0.0
  %1520 = vmatpush2.msra.mxu0 0.0
  %1521 = vmatprep.subr.mxu0 0.0
  %1522 = vmatpush2.msra.mxu0 0.0
  %1523 = vmatprep.subr.mxu0 0.0
  %1524 = vmatpush2.msra.mxu0 0.0
  %1525 = vmatprep.subr.mxu0 0.0
  %1526 = vmatpush2.msra.mxu0 0.0
  %1527 = vmatprep.subr.mxu0 0.0
  %1528 = vmatpush2.msra.mxu0 0.0
  %1529 = vmatprep.subr.mxu0 0.0
  %1530 = vmatpush2.msra.mxu0 0.0
  %1531 = vmatprep.subr.mxu0 0.0
  %1532 = vmatpush2.msra.mxu0 0.0
  %1533 = vmatprep.subr.mxu0 0.0
  %1534 = vmatpush2.msra.mxu0 0.0
  %1535 = vmatprep.subr.mxu0 0.0
  %1536 = vmatpush2.msra.mxu0 0.0
  %1537 = vmatprep.mubr.f32.mxu0 0.0
  %1538 = vmatmul.mubr.f32.gmra.mxu0 %v1471
  %v1539 = vpop.f32.mrf.mxu0
  %v1540 = vadd.f32 0.0, %v1539
  %v1541 = vpop.f32.mrf.mxu0
  %1542 = vdwg.mxu0
  %v1544 = vrot.slane %v1540, 4
  %v1546 = vadd.f32 %v1255, %v1544
  %v1547 = vxor.u32 %v1546, 2147483648
  %v1548 = vmul.f32 %v1547, 1.442695
  %v1549 = vpow.pop %v1548
  %v1550 = vadd.f32 %v1549, 1.0
  %v1551 = vrcp.pop %v1550
  %v1552 = vmul.f32 1.0, %v1551
  %v1553 = vtanh.pop %v1546
  %v1555 = vrot.slane %v1460, 6
  %v1557 = vmul.f32 %v1552, %v1555
  %1559 = vrot.lane.b32.xlu0 %v1553, 64
  %v1560 = vpop.permute.xlu0 %1559
  %v1562 = vmul.f32 %v1552, %v1560
  %1564 = vrot.lane.b32.xlu0 %v1562, 32
  %v1565 = vpop.permute.xlu0 %1564
  %v1567 = vadd.f32 %v1557, %v1565
  %v1568 = vtanh.pop %v1567
  %1570 = vrot.lane.b32.xlu0 %v1568, 64
  %v1571 = vpop.permute.xlu0 %1570
  %v1573 = vmul.f32 %v1552, %v1571
  %v1575 = vrot.slane %v1573, 4
  %1576 = vrot.lane.b32.xlu0 %v1575, 32
  %v1577 = vpop.permute.xlu0 %1576
  %v1578 = vsel %vm145, %v1577, 0
  %1580 = vmatprep.subr.mxu0 0.0
  %1581 = vmatpush1.msra.mxu0 0.0
  %1582 = vmatprep.subr.mxu0 0.0
  %1583 = vmatpush1.msra.mxu0 0.0
  %1584 = vmatprep.subr.mxu0 0.0
  %1585 = vmatpush1.msra.mxu0 0.0
  %1586 = vmatprep.subr.mxu0 0.0
  %1587 = vmatpush1.msra.mxu0 0.0
  %1588 = vmatprep.subr.mxu0 0.0
  %1589 = vmatpush1.msra.mxu0 0.0
  %1590 = vmatprep.subr.mxu0 0.0
  %1591 = vmatpush1.msra.mxu0 0.0
  %1592 = vmatprep.subr.mxu0 0.0
  %1593 = vmatpush1.msra.mxu0 0.0
  %1594 = vmatprep.subr.mxu0 0.0
  %1595 = vmatpush1.msra.mxu0 0.0
  %1596 = vmatprep.subr.mxu0 0.0
  %1597 = vmatpush1.msra.mxu0 0.0
  %1598 = vmatprep.subr.mxu0 0.0
  %1599 = vmatpush1.msra.mxu0 0.0
  %1600 = vmatprep.subr.mxu0 0.0
  %1601 = vmatpush1.msra.mxu0 0.0
  %1602 = vmatprep.subr.mxu0 0.0
  %1603 = vmatpush1.msra.mxu0 0.0
  %1604 = vmatprep.subr.mxu0 0.0
  %1605 = vmatpush1.msra.mxu0 %v137
  %1606 = vmatprep.subr.mxu0 0.0
  %1607 = vmatpush1.msra.mxu0 %v136
  %1608 = vmatprep.subr.mxu0 0.0
  %1609 = vmatpush1.msra.mxu0 %v135
  %1610 = vmatprep.subr.mxu0 0.0
  %1611 = vmatpush1.msra.mxu0 %v134
  %1612 = vmatprep.subr.mxu0 0.0
  %1613 = vmatpush2.msra.mxu0 0.0
  %1614 = vmatprep.subr.mxu0 0.0
  %1615 = vmatpush2.msra.mxu0 0.0
  %1616 = vmatprep.subr.mxu0 0.0
  %1617 = vmatpush2.msra.mxu0 0.0
  %1618 = vmatprep.subr.mxu0 0.0
  %1619 = vmatpush2.msra.mxu0 0.0
  %1620 = vmatprep.subr.mxu0 0.0
  %1621 = vmatpush2.msra.mxu0 0.0
  %1622 = vmatprep.subr.mxu0 0.0
  %1623 = vmatpush2.msra.mxu0 0.0
  %1624 = vmatprep.subr.mxu0 0.0
  %1625 = vmatpush2.msra.mxu0 0.0
  %1626 = vmatprep.subr.mxu0 0.0
  %1627 = vmatpush2.msra.mxu0 0.0
  %1628 = vmatprep.subr.mxu0 0.0
  %1629 = vmatpush2.msra.mxu0 0.0
  %1630 = vmatprep.subr.mxu0 0.0
  %1631 = vmatpush2.msra.mxu0 0.0
  %1632 = vmatprep.subr.mxu0 0.0
  %1633 = vmatpush2.msra.mxu0 0.0
  %1634 = vmatprep.subr.mxu0 0.0
  %1635 = vmatpush2.msra.mxu0 0.0
  %1636 = vmatprep.subr.mxu0 0.0
  %1637 = vmatpush2.msra.mxu0 0.0
  %1638 = vmatprep.subr.mxu0 0.0
  %1639 = vmatpush2.msra.mxu0 0.0
  %1640 = vmatprep.subr.mxu0 0.0
  %1641 = vmatpush2.msra.mxu0 0.0
  %1642 = vmatprep.subr.mxu0 0.0
  %1643 = vmatpush2.msra.mxu0 0.0
  %1644 = vmatprep.mubr.f32.mxu0 0.0
  %1645 = vmatmul.mubr.f32.gmra.mxu0 %v1578
  %v1646 = vpop.f32.mrf.mxu0
  %v1647 = vadd.f32 0.0, %v1646
  %v1648 = vpop.f32.mrf.mxu0
  %1649 = vdwg.mxu0
  %v1651 = vrot.slane %v1647, 2
  %v1653 = vadd.f32 %v1255, %v1651
  %v1654 = vxor.u32 %v1653, 2147483648
  %v1655 = vmul.f32 %v1654, 1.442695
  %v1656 = vpow.pop %v1655
  %v1657 = vadd.f32 %v1656, 1.0
  %v1658 = vrcp.pop %v1657
  %v1659 = vmul.f32 1.0, %v1658
  %v1660 = vtanh.pop %v1653
  %v1662 = vrot.slane %v1567, 6
  %v1664 = vmul.f32 %v1659, %v1662
  %1666 = vrot.lane.b32.xlu0 %v1660, 64
  %v1667 = vpop.permute.xlu0 %1666
  %v1669 = vmul.f32 %v1659, %v1667
  %1671 = vrot.lane.b32.xlu0 %v1669, 32
  %v1672 = vpop.permute.xlu0 %1671
  %v1674 = vadd.f32 %v1664, %v1672
  %v1675 = vtanh.pop %v1674
  %1677 = vrot.lane.b32.xlu0 %v1675, 64
  %v1678 = vpop.permute.xlu0 %1677
  %v1680 = vmul.f32 %v1659, %v1678
  %v1682 = vrot.slane %v1680, 6
  %1683 = vrot.lane.b32.xlu0 %v1682, 32
  %v1684 = vpop.permute.xlu0 %1683
  %v1685 = vsel %vm145, %v1684, 0
  %1687 = vmatprep.subr.mxu0 0.0
  %1688 = vmatpush1.msra.mxu0 0.0
  %1689 = vmatprep.subr.mxu0 0.0
  %1690 = vmatpush1.msra.mxu0 0.0
  %1691 = vmatprep.subr.mxu0 0.0
  %1692 = vmatpush1.msra.mxu0 0.0
  %1693 = vmatprep.subr.mxu0 0.0
  %1694 = vmatpush1.msra.mxu0 0.0
  %1695 = vmatprep.subr.mxu0 0.0
  %1696 = vmatpush1.msra.mxu0 0.0
  %1697 = vmatprep.subr.mxu0 0.0
  %1698 = vmatpush1.msra.mxu0 0.0
  %1699 = vmatprep.subr.mxu0 0.0
  %1700 = vmatpush1.msra.mxu0 0.0
  %1701 = vmatprep.subr.mxu0 0.0
  %1702 = vmatpush1.msra.mxu0 0.0
  %1703 = vmatprep.subr.mxu0 0.0
  %1704 = vmatpush1.msra.mxu0 0.0
  %1705 = vmatprep.subr.mxu0 0.0
  %1706 = vmatpush1.msra.mxu0 0.0
  %1707 = vmatprep.subr.mxu0 0.0
  %1708 = vmatpush1.msra.mxu0 0.0
  %1709 = vmatprep.subr.mxu0 0.0
  %1710 = vmatpush1.msra.mxu0 0.0
  %1711 = vmatprep.subr.mxu0 0.0
  %1712 = vmatpush1.msra.mxu0 %v137
  %1713 = vmatprep.subr.mxu0 0.0
  %1714 = vmatpush1.msra.mxu0 %v136
  %1715 = vmatprep.subr.mxu0 0.0
  %1716 = vmatpush1.msra.mxu0 %v135
  %1717 = vmatprep.subr.mxu0 0.0
  %1718 = vmatpush1.msra.mxu0 %v134
  %1719 = vmatprep.subr.mxu0 0.0
  %1720 = vmatpush2.msra.mxu0 0.0
  %1721 = vmatprep.subr.mxu0 0.0
  %1722 = vmatpush2.msra.mxu0 0.0
  %1723 = vmatprep.subr.mxu0 0.0
  %1724 = vmatpush2.msra.mxu0 0.0
  %1725 = vmatprep.subr.mxu0 0.0
  %1726 = vmatpush2.msra.mxu0 0.0
  %1727 = vmatprep.subr.mxu0 0.0
  %1728 = vmatpush2.msra.mxu0 0.0
  %1729 = vmatprep.subr.mxu0 0.0
  %1730 = vmatpush2.msra.mxu0 0.0
  %1731 = vmatprep.subr.mxu0 0.0
  %1732 = vmatpush2.msra.mxu0 0.0
  %1733 = vmatprep.subr.mxu0 0.0
  %1734 = vmatpush2.msra.mxu0 0.0
  %1735 = vmatprep.subr.mxu0 0.0
  %1736 = vmatpush2.msra.mxu0 0.0
  %1737 = vmatprep.subr.mxu0 0.0
  %1738 = vmatpush2.msra.mxu0 0.0
  %1739 = vmatprep.subr.mxu0 0.0
  %1740 = vmatpush2.msra.mxu0 0.0
  %1741 = vmatprep.subr.mxu0 0.0
  %1742 = vmatpush2.msra.mxu0 0.0
  %1743 = vmatprep.subr.mxu0 0.0
  %1744 = vmatpush2.msra.mxu0 0.0
  %1745 = vmatprep.subr.mxu0 0.0
  %1746 = vmatpush2.msra.mxu0 0.0
  %1747 = vmatprep.subr.mxu0 0.0
  %1748 = vmatpush2.msra.mxu0 0.0
  %1749 = vmatprep.subr.mxu0 0.0
  %1750 = vmatpush2.msra.mxu0 0.0
  %1751 = vmatprep.mubr.f32.mxu0 0.0
  %1752 = vmatmul.mubr.f32.gmra.mxu0 %v1685
  %v1753 = vpop.f32.mrf.mxu0
  %v1754 = vadd.f32 0.0, %v1753
  %v1755 = vpop.f32.mrf.mxu0
  %1756 = vdwg.mxu0
  %v1757 = vadd.f32 %v1260, %v1754
  %v1758 = vxor.u32 %v1757, 2147483648
  %v1759 = vmul.f32 %v1758, 1.442695
  %v1760 = vpow.pop %v1759
  %v1761 = vadd.f32 %v1760, 1.0
  %v1762 = vrcp.pop %v1761
  %v1763 = vmul.f32 1.0, %v1762
  %v1764 = vtanh.pop %v1757
  %v1766 = vrot.slane %v1674, 6
  %v1768 = vmul.f32 %v1763, %v1766
  %1770 = vrot.lane.b32.xlu0 %v1764, 64
  %v1771 = vpop.permute.xlu0 %1770
  %v1773 = vmul.f32 %v1763, %v1771
  %1775 = vrot.lane.b32.xlu0 %v1773, 32
  %v1776 = vpop.permute.xlu0 %1775
  %v1778 = vadd.f32 %v1768, %v1776
  %v1779 = vtanh.pop %v1778
  %1781 = vrot.lane.b32.xlu0 %v1779, 64
  %v1782 = vpop.permute.xlu0 %1781
  %v1784 = vmul.f32 %v1763, %v1782
  %1786 = vrot.lane.b32.xlu0 %v1784, 32
  %v1787 = vpop.permute.xlu0 %1786
  %v1788 = vsel %vm145, %v1787, 0
  %1790 = vmatprep.subr.mxu0 0.0
  %1791 = vmatpush1.msra.mxu0 0.0
  %1792 = vmatprep.subr.mxu0 0.0
  %1793 = vmatpush1.msra.mxu0 0.0
  %1794 = vmatprep.subr.mxu0 0.0
  %1795 = vmatpush1.msra.mxu0 0.0
  %1796 = vmatprep.subr.mxu0 0.0
  %1797 = vmatpush1.msra.mxu0 0.0
  %1798 = vmatprep.subr.mxu0 0.0
  %1799 = vmatpush1.msra.mxu0 0.0
  %1800 = vmatprep.subr.mxu0 0.0
  %1801 = vmatpush1.msra.mxu0 0.0
  %1802 = vmatprep.subr.mxu0 0.0
  %1803 = vmatpush1.msra.mxu0 0.0
  %1804 = vmatprep.subr.mxu0 0.0
  %1805 = vmatpush1.msra.mxu0 0.0
  %1806 = vmatprep.subr.mxu0 0.0
  %1807 = vmatpush1.msra.mxu0 0.0
  %1808 = vmatprep.subr.mxu0 0.0
  %1809 = vmatpush1.msra.mxu0 0.0
  %1810 = vmatprep.subr.mxu0 0.0
  %1811 = vmatpush1.msra.mxu0 0.0
  %1812 = vmatprep.subr.mxu0 0.0
  %1813 = vmatpush1.msra.mxu0 0.0
  %1814 = vmatprep.subr.mxu0 0.0
  %1815 = vmatpush1.msra.mxu0 %v137
  %1816 = vmatprep.subr.mxu0 0.0
  %1817 = vmatpush1.msra.mxu0 %v136
  %1818 = vmatprep.subr.mxu0 0.0
  %1819 = vmatpush1.msra.mxu0 %v135
  %1820 = vmatprep.subr.mxu0 0.0
  %1821 = vmatpush1.msra.mxu0 %v134
  %1822 = vmatprep.subr.mxu0 0.0
  %1823 = vmatpush2.msra.mxu0 0.0
  %1824 = vmatprep.subr.mxu0 0.0
  %1825 = vmatpush2.msra.mxu0 0.0
  %1826 = vmatprep.subr.mxu0 0.0
  %1827 = vmatpush2.msra.mxu0 0.0
  %1828 = vmatprep.subr.mxu0 0.0
  %1829 = vmatpush2.msra.mxu0 0.0
  %1830 = vmatprep.subr.mxu0 0.0
  %1831 = vmatpush2.msra.mxu0 0.0
  %1832 = vmatprep.subr.mxu0 0.0
  %1833 = vmatpush2.msra.mxu0 0.0
  %1834 = vmatprep.subr.mxu0 0.0
  %1835 = vmatpush2.msra.mxu0 0.0
  %1836 = vmatprep.subr.mxu0 0.0
  %1837 = vmatpush2.msra.mxu0 0.0
  %1838 = vmatprep.subr.mxu0 0.0
  %1839 = vmatpush2.msra.mxu0 0.0
  %1840 = vmatprep.subr.mxu0 0.0
  %1841 = vmatpush2.msra.mxu0 0.0
  %1842 = vmatprep.subr.mxu0 0.0
  %1843 = vmatpush2.msra.mxu0 0.0
  %1844 = vmatprep.subr.mxu0 0.0
  %1845 = vmatpush2.msra.mxu0 0.0
  %1846 = vmatprep.subr.mxu0 0.0
  %1847 = vmatpush2.msra.mxu0 0.0
  %1848 = vmatprep.subr.mxu0 0.0
  %1849 = vmatpush2.msra.mxu0 0.0
  %1850 = vmatprep.subr.mxu0 0.0
  %1851 = vmatpush2.msra.mxu0 0.0
  %1852 = vmatprep.subr.mxu0 0.0
  %1853 = vmatpush2.msra.mxu0 0.0
  %1854 = vmatprep.mubr.f32.mxu0 0.0
  %1855 = vmatmul.mubr.f32.gmra.mxu0 %v1788
  %v1856 = vpop.f32.mrf.mxu0
  %v1857 = vadd.f32 0.0, %v1856
  %v1858 = vpop.f32.mrf.mxu0
  %1859 = vdwg.mxu0
  %v1861 = vrot.slane %v1857, 6
  %v1863 = vadd.f32 %v1260, %v1861
  %v1864 = vxor.u32 %v1863, 2147483648
  %v1865 = vmul.f32 %v1864, 1.442695
  %v1866 = vpow.pop %v1865
  %v1867 = vadd.f32 %v1866, 1.0
  %v1868 = vrcp.pop %v1867
  %v1869 = vmul.f32 1.0, %v1868
  %v1870 = vtanh.pop %v1863
  %v1872 = vrot.slane %v1778, 6
  %v1874 = vmul.f32 %v1869, %v1872
  %1876 = vrot.lane.b32.xlu0 %v1870, 64
  %v1877 = vpop.permute.xlu0 %1876
  %v1879 = vmul.f32 %v1869, %v1877
  %1881 = vrot.lane.b32.xlu0 %v1879, 32
  %v1882 = vpop.permute.xlu0 %1881
  %v1884 = vadd.f32 %v1874, %v1882
  %v1885 = vtanh.pop %v1884
  %1887 = vrot.lane.b32.xlu0 %v1885, 64
  %v1888 = vpop.permute.xlu0 %1887
  %v1890 = vmul.f32 %v1869, %v1888
  %v1892 = vrot.slane %v1890, 2
  %1893 = vrot.lane.b32.xlu0 %v1892, 32
  %v1894 = vpop.permute.xlu0 %1893
  %v1895 = vsel %vm145, %v1894, 0
  %1897 = vmatprep.subr.mxu0 0.0
  %1898 = vmatpush1.msra.mxu0 0.0
  %1899 = vmatprep.subr.mxu0 0.0
  %1900 = vmatpush1.msra.mxu0 0.0
  %1901 = vmatprep.subr.mxu0 0.0
  %1902 = vmatpush1.msra.mxu0 0.0
  %1903 = vmatprep.subr.mxu0 0.0
  %1904 = vmatpush1.msra.mxu0 0.0
  %1905 = vmatprep.subr.mxu0 0.0
  %1906 = vmatpush1.msra.mxu0 0.0
  %1907 = vmatprep.subr.mxu0 0.0
  %1908 = vmatpush1.msra.mxu0 0.0
  %1909 = vmatprep.subr.mxu0 0.0
  %1910 = vmatpush1.msra.mxu0 0.0
  %1911 = vmatprep.subr.mxu0 0.0
  %1912 = vmatpush1.msra.mxu0 0.0
  %1913 = vmatprep.subr.mxu0 0.0
  %1914 = vmatpush1.msra.mxu0 0.0
  %1915 = vmatprep.subr.mxu0 0.0
  %1916 = vmatpush1.msra.mxu0 0.0
  %1917 = vmatprep.subr.mxu0 0.0
  %1918 = vmatpush1.msra.mxu0 0.0
  %1919 = vmatprep.subr.mxu0 0.0
  %1920 = vmatpush1.msra.mxu0 0.0
  %1921 = vmatprep.subr.mxu0 0.0
  %1922 = vmatpush1.msra.mxu0 %v137
  %1923 = vmatprep.subr.mxu0 0.0
  %1924 = vmatpush1.msra.mxu0 %v136
  %1925 = vmatprep.subr.mxu0 0.0
  %1926 = vmatpush1.msra.mxu0 %v135
  %1927 = vmatprep.subr.mxu0 0.0
  %1928 = vmatpush1.msra.mxu0 %v134
  %1929 = vmatprep.subr.mxu0 0.0
  %1930 = vmatpush2.msra.mxu0 0.0
  %1931 = vmatprep.subr.mxu0 0.0
  %1932 = vmatpush2.msra.mxu0 0.0
  %1933 = vmatprep.subr.mxu0 0.0
  %1934 = vmatpush2.msra.mxu0 0.0
  %1935 = vmatprep.subr.mxu0 0.0
  %1936 = vmatpush2.msra.mxu0 0.0
  %1937 = vmatprep.subr.mxu0 0.0
  %1938 = vmatpush2.msra.mxu0 0.0
  %1939 = vmatprep.subr.mxu0 0.0
  %1940 = vmatpush2.msra.mxu0 0.0
  %1941 = vmatprep.subr.mxu0 0.0
  %1942 = vmatpush2.msra.mxu0 0.0
  %1943 = vmatprep.subr.mxu0 0.0
  %1944 = vmatpush2.msra.mxu0 0.0
  %1945 = vmatprep.subr.mxu0 0.0
  %1946 = vmatpush2.msra.mxu0 0.0
  %1947 = vmatprep.subr.mxu0 0.0
  %1948 = vmatpush2.msra.mxu0 0.0
  %1949 = vmatprep.subr.mxu0 0.0
  %1950 = vmatpush2.msra.mxu0 0.0
  %1951 = vmatprep.subr.mxu0 0.0
  %1952 = vmatpush2.msra.mxu0 0.0
  %1953 = vmatprep.subr.mxu0 0.0
  %1954 = vmatpush2.msra.mxu0 0.0
  %1955 = vmatprep.subr.mxu0 0.0
  %1956 = vmatpush2.msra.mxu0 0.0
  %1957 = vmatprep.subr.mxu0 0.0
  %1958 = vmatpush2.msra.mxu0 0.0
  %1959 = vmatprep.subr.mxu0 0.0
  %1960 = vmatpush2.msra.mxu0 0.0
  %1961 = vmatprep.mubr.f32.mxu0 0.0
  %1962 = vmatmul.mubr.f32.gmra.mxu0 %v1895
  %v1963 = vpop.f32.mrf.mxu0
  %v1964 = vadd.f32 0.0, %v1963
  %v1965 = vpop.f32.mrf.mxu0
  %1966 = vdwg.mxu0
  %v1968 = vrot.slane %v1964, 4
  %v1970 = vadd.f32 %v1260, %v1968
  %v1971 = vxor.u32 %v1970, 2147483648
  %v1972 = vmul.f32 %v1971, 1.442695
  %v1973 = vpow.pop %v1972
  %v1974 = vadd.f32 %v1973, 1.0
  %v1975 = vrcp.pop %v1974
  %v1976 = vmul.f32 1.0, %v1975
  %v1977 = vtanh.pop %v1970
  %v1979 = vrot.slane %v1884, 6
  %v1981 = vmul.f32 %v1976, %v1979
  %1983 = vrot.lane.b32.xlu0 %v1977, 64
  %v1984 = vpop.permute.xlu0 %1983
  %v1986 = vmul.f32 %v1976, %v1984
  %1988 = vrot.lane.b32.xlu0 %v1986, 32
  %v1989 = vpop.permute.xlu0 %1988
  %v1991 = vadd.f32 %v1981, %v1989
  %v1992 = vtanh.pop %v1991
  %1994 = vrot.lane.b32.xlu0 %v1992, 64
  %v1995 = vpop.permute.xlu0 %1994
  %v1997 = vmul.f32 %v1976, %v1995
  %v1999 = vrot.slane %v1997, 4
  %2000 = vrot.lane.b32.xlu0 %v1999, 32
  %v2001 = vpop.permute.xlu0 %2000
  %v2002 = vsel %vm145, %v2001, 0
  %2004 = vmatprep.subr.mxu0 0.0
  %2005 = vmatpush1.msra.mxu0 0.0
  %2006 = vmatprep.subr.mxu0 0.0
  %2007 = vmatpush1.msra.mxu0 0.0
  %2008 = vmatprep.subr.mxu0 0.0
  %2009 = vmatpush1.msra.mxu0 0.0
  %2010 = vmatprep.subr.mxu0 0.0
  %2011 = vmatpush1.msra.mxu0 0.0
  %2012 = vmatprep.subr.mxu0 0.0
  %2013 = vmatpush1.msra.mxu0 0.0
  %2014 = vmatprep.subr.mxu0 0.0
  %2015 = vmatpush1.msra.mxu0 0.0
  %2016 = vmatprep.subr.mxu0 0.0
  %2017 = vmatpush1.msra.mxu0 0.0
  %2018 = vmatprep.subr.mxu0 0.0
  %2019 = vmatpush1.msra.mxu0 0.0
  %2020 = vmatprep.subr.mxu0 0.0
  %2021 = vmatpush1.msra.mxu0 0.0
  %2022 = vmatprep.subr.mxu0 0.0
  %2023 = vmatpush1.msra.mxu0 0.0
  %2024 = vmatprep.subr.mxu0 0.0
  %2025 = vmatpush1.msra.mxu0 0.0
  %2026 = vmatprep.subr.mxu0 0.0
  %2027 = vmatpush1.msra.mxu0 0.0
  %2028 = vmatprep.subr.mxu0 0.0
  %2029 = vmatpush1.msra.mxu0 %v137
  %2030 = vmatprep.subr.mxu0 0.0
  %2031 = vmatpush1.msra.mxu0 %v136
  %2032 = vmatprep.subr.mxu0 0.0
  %2033 = vmatpush1.msra.mxu0 %v135
  %2034 = vmatprep.subr.mxu0 0.0
  %2035 = vmatpush1.msra.mxu0 %v134
  %2036 = vmatprep.subr.mxu0 0.0
  %2037 = vmatpush2.msra.mxu0 0.0
  %2038 = vmatprep.subr.mxu0 0.0
  %2039 = vmatpush2.msra.mxu0 0.0
  %2040 = vmatprep.subr.mxu0 0.0
  %2041 = vmatpush2.msra.mxu0 0.0
  %2042 = vmatprep.subr.mxu0 0.0
  %2043 = vmatpush2.msra.mxu0 0.0
  %2044 = vmatprep.subr.mxu0 0.0
  %2045 = vmatpush2.msra.mxu0 0.0
  %2046 = vmatprep.subr.mxu0 0.0
  %2047 = vmatpush2.msra.mxu0 0.0
  %2048 = vmatprep.subr.mxu0 0.0
  %2049 = vmatpush2.msra.mxu0 0.0
  %2050 = vmatprep.subr.mxu0 0.0
  %2051 = vmatpush2.msra.mxu0 0.0
  %2052 = vmatprep.subr.mxu0 0.0
  %2053 = vmatpush2.msra.mxu0 0.0
  %2054 = vmatprep.subr.mxu0 0.0
  %2055 = vmatpush2.msra.mxu0 0.0
  %2056 = vmatprep.subr.mxu0 0.0
  %2057 = vmatpush2.msra.mxu0 0.0
  %2058 = vmatprep.subr.mxu0 0.0
  %2059 = vmatpush2.msra.mxu0 0.0
  %2060 = vmatprep.subr.mxu0 0.0
  %2061 = vmatpush2.msra.mxu0 0.0
  %2062 = vmatprep.subr.mxu0 0.0
  %2063 = vmatpush2.msra.mxu0 0.0
  %2064 = vmatprep.subr.mxu0 0.0
  %2065 = vmatpush2.msra.mxu0 0.0
  %2066 = vmatprep.subr.mxu0 0.0
  %2067 = vmatpush2.msra.mxu0 0.0
  %2068 = vmatprep.mubr.f32.mxu0 0.0
  %2069 = vmatmul.mubr.f32.gmra.mxu0 %v2002
  %v2070 = vpop.f32.mrf.mxu0
  %v2071 = vadd.f32 0.0, %v2070
  %v2072 = vpop.f32.mrf.mxu0
  %2073 = vdwg.mxu0
  %v2075 = vrot.slane %v2071, 2
  %v2077 = vadd.f32 %v1260, %v2075
  %v2078 = vxor.u32 %v2077, 2147483648
  %v2079 = vmul.f32 %v2078, 1.442695
  %v2080 = vpow.pop %v2079
  %v2081 = vadd.f32 %v2080, 1.0
  %v2082 = vrcp.pop %v2081
  %v2083 = vmul.f32 1.0, %v2082
  %v2084 = vtanh.pop %v2077
  %v2086 = vrot.slane %v1991, 6
  %v2088 = vmul.f32 %v2083, %v2086
  %2090 = vrot.lane.b32.xlu0 %v2084, 64
  %v2091 = vpop.permute.xlu0 %2090
  %v2093 = vmul.f32 %v2083, %v2091
  %2095 = vrot.lane.b32.xlu0 %v2093, 32
  %v2096 = vpop.permute.xlu0 %2095
  %v2098 = vadd.f32 %v2088, %v2096
  %v2099 = vtanh.pop %v2098
  %2101 = vrot.lane.b32.xlu0 %v2099, 64
  %v2102 = vpop.permute.xlu0 %2101
  %v2104 = vmul.f32 %v2083, %v2102
  %vm2105 = vcmask 1041408
  %v2106 = vsel %vm2105, %v1360, %v1466
  %vm2107 = vcmask 1043456
  %v2108 = vsel %vm2107, %v2106, %v1573
  %vm2109 = vcmask 1045504
  %v2110 = vsel %vm2109, %v2108, %v1680
  %v2111 = vsel %vm2105, %v1784, %v1890
  %v2112 = vsel %vm2107, %v2111, %v1997
  %v2113 = vsel %vm2109, %v2112, %v2104
  %s2114 = scalar_lea.vmem %s1, 32
  %v2115 = vld [vmem:[%s2114] sm:$0xff]
  %v2116 = vld [vmem:[%s2114 + $0x8] sm:$0xff]
  %v2117 = vld [vmem:[%s2114 + $0x10] sm:$0xff]
  %v2118 = vld [vmem:[%s2114 + $0x18] sm:$0xff]
  %s2119 = scalar_lea.vmem %s2, 1
  %v2120 = vld [vmem:[%s2119] sm:$0x1]
  %s2121 = scalar_lea.vmem %s3, 64
  %v2122 = vld [vmem:[%s2121] sm:$0xff]
  %v2123 = vld [vmem:[%s2121 + $0x8] sm:$0xff]
  %v2124 = vld [vmem:[%s2121 + $0x10] sm:$0xff]
  %v2125 = vld [vmem:[%s2121 + $0x18] sm:$0xff]
  %v2126 = vld [vmem:[%s2121 + $0x20] sm:$0xff]
  %v2127 = vld [vmem:[%s2121 + $0x28] sm:$0xff]
  %v2128 = vld [vmem:[%s2121 + $0x30] sm:$0xff]
  %v2129 = vld [vmem:[%s2121 + $0x38] sm:$0xff]
  %s2130 = scalar_lea.vmem %s4, 32
  %v2131 = vld [vmem:[%s2130] sm:$0xff]
  %v2132 = vld [vmem:[%s2130 + $0x8] sm:$0xff]
  %v2133 = vld [vmem:[%s2130 + $0x10] sm:$0xff]
  %v2134 = vld [vmem:[%s2130 + $0x18] sm:$0xff]
  %s2135 = scalar_lea.vmem %s5, 1
  %v2136 = vld [vmem:[%s2135] sm:$0x1]
  %v2138 = vlaneseq
  %v2139 = vshrl.u32 %v2138, 7
  %v2140 = vsub.s32 0, %v2139
  %v2141 = vrot.slane %v2120, %v2140
  %2145 = vrot.lane.b32.xlu0 %v2110, 32
  %v2146 = vpop.permute.xlu0 %2145
  %2147 = vrot.lane.b32.xlu0 %v2113, 32
  %v2148 = vpop.permute.xlu0 %2147
  %v2149 = vsel %vm145, %v2146, 0
  %v2151 = vsel %vm145, %v2148, 0
  %2153 = vmatprep.subr.mxu0 0.0
  %2154 = vmatpush1.msra.mxu0 0.0
  %2155 = vmatprep.subr.mxu0 0.0
  %2156 = vmatpush1.msra.mxu0 0.0
  %2157 = vmatprep.subr.mxu0 0.0
  %2158 = vmatpush1.msra.mxu0 0.0
  %2159 = vmatprep.subr.mxu0 0.0
  %2160 = vmatpush1.msra.mxu0 0.0
  %2161 = vmatprep.subr.mxu0 0.0
  %2162 = vmatpush1.msra.mxu0 0.0
  %2163 = vmatprep.subr.mxu0 0.0
  %2164 = vmatpush1.msra.mxu0 0.0
  %2165 = vmatprep.subr.mxu0 0.0
  %2166 = vmatpush1.msra.mxu0 0.0
  %2167 = vmatprep.subr.mxu0 0.0
  %2168 = vmatpush1.msra.mxu0 0.0
  %2169 = vmatprep.subr.mxu0 0.0
  %2170 = vmatpush1.msra.mxu0 0.0
  %2171 = vmatprep.subr.mxu0 0.0
  %2172 = vmatpush1.msra.mxu0 0.0
  %2173 = vmatprep.subr.mxu0 0.0
  %2174 = vmatpush1.msra.mxu0 0.0
  %2175 = vmatprep.subr.mxu0 0.0
  %2176 = vmatpush1.msra.mxu0 0.0
  %2177 = vmatprep.subr.mxu0 0.0
  %2178 = vmatpush1.msra.mxu0 %v2118
  %2179 = vmatprep.subr.mxu0 0.0
  %2180 = vmatpush1.msra.mxu0 %v2117
  %2181 = vmatprep.subr.mxu0 0.0
  %2182 = vmatpush1.msra.mxu0 %v2116
  %2183 = vmatprep.subr.mxu0 0.0
  %2184 = vmatpush1.msra.mxu0 %v2115
  %2185 = vmatprep.subr.mxu0 0.0
  %2186 = vmatpush2.msra.mxu0 0.0
  %2187 = vmatprep.subr.mxu0 0.0
  %2188 = vmatpush2.msra.mxu0 0.0
  %2189 = vmatprep.subr.mxu0 0.0
  %2190 = vmatpush2.msra.mxu0 0.0
  %2191 = vmatprep.subr.mxu0 0.0
  %2192 = vmatpush2.msra.mxu0 0.0
  %2193 = vmatprep.subr.mxu0 0.0
  %2194 = vmatpush2.msra.mxu0 0.0
  %2195 = vmatprep.subr.mxu0 0.0
  %2196 = vmatpush2.msra.mxu0 0.0
  %2197 = vmatprep.subr.mxu0 0.0
  %2198 = vmatpush2.msra.mxu0 0.0
  %2199 = vmatprep.subr.mxu0 0.0
  %2200 = vmatpush2.msra.mxu0 0.0
  %2201 = vmatprep.subr.mxu0 0.0
  %2202 = vmatpush2.msra.mxu0 0.0
  %2203 = vmatprep.subr.mxu0 0.0
  %2204 = vmatpush2.msra.mxu0 0.0
  %2205 = vmatprep.subr.mxu0 0.0
  %2206 = vmatpush2.msra.mxu0 0.0
  %2207 = vmatprep.subr.mxu0 0.0
  %2208 = vmatpush2.msra.mxu0 0.0
  %2209 = vmatprep.subr.mxu0 0.0
  %2210 = vmatpush2.msra.mxu0 0.0
  %2211 = vmatprep.subr.mxu0 0.0
  %2212 = vmatpush2.msra.mxu0 0.0
  %2213 = vmatprep.subr.mxu0 0.0
  %2214 = vmatpush2.msra.mxu0 0.0
  %2215 = vmatprep.subr.mxu0 0.0
  %2216 = vmatpush2.msra.mxu0 0.0
  %2217 = vmatprep.mubr.f32.mxu0 0.0
  %2218 = vmatmul.mubr.f32.gmra.mxu0 %v2149
  %v2219 = vpop.f32.mrf.mxu0
  %v2220 = vadd.f32 %v2141, %v2219
  %v2221 = vpop.f32.mrf.mxu0
  %2222 = vmatprep.mubr.f32.mxu0 0.0
  %2223 = vmatmul.mubr.f32.gmra.mxu0 %v2151
  %v2224 = vpop.f32.mrf.mxu0
  %v2225 = vadd.f32 %v2141, %v2224
  %v2226 = vpop.f32.mrf.mxu0
  %2227 = vdwg.mxu0
  %2228 = vmatprep.subr.mxu0 0.0
  %2229 = vmatpush1.msra.mxu0 0.0
  %2230 = vmatprep.subr.mxu0 0.0
  %2231 = vmatpush1.msra.mxu0 0.0
  %2232 = vmatprep.subr.mxu0 0.0
  %2233 = vmatpush1.msra.mxu0 0.0
  %2234 = vmatprep.subr.mxu0 0.0
  %2235 = vmatpush1.msra.mxu0 0.0
  %2236 = vmatprep.subr.mxu0 0.0
  %2237 = vmatpush1.msra.mxu0 0.0
  %2238 = vmatprep.subr.mxu0 0.0
  %2239 = vmatpush1.msra.mxu0 0.0
  %2240 = vmatprep.subr.mxu0 0.0
  %2241 = vmatpush1.msra.mxu0 0.0
  %2242 = vmatprep.subr.mxu0 0.0
  %2243 = vmatpush1.msra.mxu0 0.0
  %2244 = vmatprep.subr.mxu0 0.0
  %2245 = vmatpush1.msra.mxu0 0.0
  %2246 = vmatprep.subr.mxu0 0.0
  %2247 = vmatpush1.msra.mxu0 0.0
  %2248 = vmatprep.subr.mxu0 0.0
  %2249 = vmatpush1.msra.mxu0 0.0
  %2250 = vmatprep.subr.mxu0 0.0
  %2251 = vmatpush1.msra.mxu0 0.0
  %2252 = vmatprep.subr.mxu0 0.0
  %2253 = vmatpush1.msra.mxu0 0.0
  %2254 = vmatprep.subr.mxu0 0.0
  %2255 = vmatpush1.msra.mxu0 0.0
  %2256 = vmatprep.subr.mxu0 0.0
  %2257 = vmatpush1.msra.mxu0 %v2225
  %2258 = vmatprep.subr.mxu0 0.0
  %2259 = vmatpush1.msra.mxu0 %v2220
  %2260 = vmatprep.subr.mxu0 0.0
  %2261 = vmatpush2.msra.mxu0 0.0
  %2262 = vmatprep.subr.mxu0 0.0
  %2263 = vmatpush2.msra.mxu0 0.0
  %2264 = vmatprep.subr.mxu0 0.0
  %2265 = vmatpush2.msra.mxu0 0.0
  %2266 = vmatprep.subr.mxu0 0.0
  %2267 = vmatpush2.msra.mxu0 0.0
  %2268 = vmatprep.subr.mxu0 0.0
  %2269 = vmatpush2.msra.mxu0 0.0
  %2270 = vmatprep.subr.mxu0 0.0
  %2271 = vmatpush2.msra.mxu0 0.0
  %2272 = vmatprep.subr.mxu0 0.0
  %2273 = vmatpush2.msra.mxu0 0.0
  %2274 = vmatprep.subr.mxu0 0.0
  %2275 = vmatpush2.msra.mxu0 0.0
  %2276 = vmatprep.subr.mxu0 0.0
  %2277 = vmatpush2.msra.mxu0 0.0
  %2278 = vmatprep.subr.mxu0 0.0
  %2279 = vmatpush2.msra.mxu0 0.0
  %2280 = vmatprep.subr.mxu0 0.0
  %2281 = vmatpush2.msra.mxu0 0.0
  %2282 = vmatprep.subr.mxu0 0.0
  %2283 = vmatpush2.msra.mxu0 0.0
  %2284 = vmatprep.subr.mxu0 0.0
  %2285 = vmatpush2.msra.mxu0 0.0
  %2286 = vmatprep.subr.mxu0 0.0
  %2287 = vmatpush2.msra.mxu0 0.0
  %2288 = vmatprep.subr.mxu0 0.0
  %2289 = vmatpush2.msra.mxu0 0.0
  %2290 = vmatprep.subr.mxu0 0.0
  %2291 = vmatpush2.msra.mxu0 0.0
  %2292 = vmatprep.mubr.f32.mxu0 0.0
  %2293 = vmatmul.mubr.f32.gmra.mxu0 %v229
  %v2294 = vpop.f32.mrf.mxu0
  %v2295 = vadd.f32 0.0, %v2294
  %v2296 = vpop.f32.mrf.mxu0
  %2297 = vmatprep.mubr.f32.mxu0 0.0
  %2298 = vmatmul.mubr.f32.gmra.mxu0 %v232
  %v2299 = vpop.f32.mrf.mxu0
  %v2300 = vadd.f32 0.0, %v2299
  %v2301 = vpop.f32.mrf.mxu0
  %2302 = vmatprep.mubr.f32.mxu0 0.0
  %2303 = vmatmul.mubr.f32.gmra.mxu0 %v235
  %v2304 = vpop.f32.mrf.mxu0
  %v2305 = vadd.f32 0.0, %v2304
  %v2306 = vpop.f32.mrf.mxu0
  %2307 = vmatprep.mubr.f32.mxu0 0.0
  %2308 = vmatmul.mubr.f32.gmra.mxu0 %v238
  %v2309 = vpop.f32.mrf.mxu0
  %v2310 = vadd.f32 0.0, %v2309
  %v2311 = vpop.f32.mrf.mxu0
  %2312 = vmatprep.mubr.f32.mxu0 0.0
  %2313 = vmatmul.mubr.f32.gmra.mxu0 %v241
  %v2314 = vpop.f32.mrf.mxu0
  %v2315 = vadd.f32 0.0, %v2314
  %v2316 = vpop.f32.mrf.mxu0
  %2317 = vmatprep.mubr.f32.mxu0 0.0
  %2318 = vmatmul.mubr.f32.gmra.mxu0 %v244
  %v2319 = vpop.f32.mrf.mxu0
  %v2320 = vadd.f32 0.0, %v2319
  %v2321 = vpop.f32.mrf.mxu0
  %2322 = vmatprep.mubr.f32.mxu0 0.0
  %2323 = vmatmul.mubr.f32.gmra.mxu0 %v247
  %v2324 = vpop.f32.mrf.mxu0
  %v2325 = vadd.f32 0.0, %v2324
  %v2326 = vpop.f32.mrf.mxu0
  %2327 = vmatprep.mubr.f32.mxu0 0.0
  %2328 = vmatmul.mubr.f32.gmra.mxu0 %v250
  %v2329 = vpop.f32.mrf.mxu0
  %v2330 = vadd.f32 0.0, %v2329
  %v2331 = vpop.f32.mrf.mxu0
  %2332 = vdwg.mxu0
  %v2333 = vmul.f32 %v2295, %v57
  %v2334 = vmul.f32 %v2300, %v58
  %v2335 = vmul.f32 %v2305, %v59
  %v2336 = vmul.f32 %v2310, %v60
  %v2337 = vmul.f32 %v2315, %v61
  %v2338 = vmul.f32 %v2320, %v62
  %v2339 = vmul.f32 %v2325, %v63
  %v2340 = vmul.f32 %v2330, %v64
  %v2342 = vsel %vm365, %v2333, 0
  %v2345 = vsel %vm365, %v2334, 0
  %v2348 = vsel %vm365, %v2335, 0
  %v2351 = vsel %vm365, %v2336, 0
  %v2354 = vsel %vm365, %v2337, 0
  %v2357 = vsel %vm365, %v2338, 0
  %v2360 = vsel %vm365, %v2339, 0
  %v2363 = vsel %vm365, %v2340, 0
  %2365 = vmatprep.subr.mxu0 0.0
  %2366 = vmatpush1.msra.mxu0 0.0
  %2367 = vmatprep.subr.mxu0 0.0
  %2368 = vmatpush1.msra.mxu0 0.0
  %2369 = vmatprep.subr.mxu0 0.0
  %2370 = vmatpush1.msra.mxu0 0.0
  %2371 = vmatprep.subr.mxu0 0.0
  %2372 = vmatpush1.msra.mxu0 0.0
  %2373 = vmatprep.subr.mxu0 0.0
  %2374 = vmatpush1.msra.mxu0 %v76
  %2375 = vmatprep.subr.mxu0 0.0
  %2376 = vmatpush1.msra.mxu0 %v75
  %2377 = vmatprep.subr.mxu0 0.0
  %2378 = vmatpush1.msra.mxu0 %v74
  %2379 = vmatprep.subr.mxu0 0.0
  %2380 = vmatpush1.msra.mxu0 %v73
  %2381 = vmatprep.subr.mxu0 0.0
  %2382 = vmatpush1.msra.mxu0 %v72
  %2383 = vmatprep.subr.mxu0 0.0
  %2384 = vmatpush1.msra.mxu0 %v71
  %2385 = vmatprep.subr.mxu0 0.0
  %2386 = vmatpush1.msra.mxu0 %v70
  %2387 = vmatprep.subr.mxu0 0.0
  %2388 = vmatpush1.msra.mxu0 %v69
  %2389 = vmatprep.subr.mxu0 0.0
  %2390 = vmatpush1.msra.mxu0 %v68
  %2391 = vmatprep.subr.mxu0 0.0
  %2392 = vmatpush1.msra.mxu0 %v67
  %2393 = vmatprep.subr.mxu0 0.0
  %2394 = vmatpush1.msra.mxu0 %v66
  %2395 = vmatprep.subr.mxu0 0.0
  %2396 = vmatpush1.msra.mxu0 %v65
  %2397 = vmatprep.subr.mxu0 0.0
  %2398 = vmatpush2.msra.mxu0 0.0
  %2399 = vmatprep.subr.mxu0 0.0
  %2400 = vmatpush2.msra.mxu0 0.0
  %2401 = vmatprep.subr.mxu0 0.0
  %2402 = vmatpush2.msra.mxu0 0.0
  %2403 = vmatprep.subr.mxu0 0.0
  %2404 = vmatpush2.msra.mxu0 0.0
  %2405 = vmatprep.subr.mxu0 0.0
  %2406 = vmatpush2.msra.mxu0 0.0
  %2407 = vmatprep.subr.mxu0 0.0
  %2408 = vmatpush2.msra.mxu0 0.0
  %2409 = vmatprep.subr.mxu0 0.0
  %2410 = vmatpush2.msra.mxu0 0.0
  %2411 = vmatprep.subr.mxu0 0.0
  %2412 = vmatpush2.msra.mxu0 0.0
  %2413 = vmatprep.subr.mxu0 0.0
  %2414 = vmatpush2.msra.mxu0 0.0
  %2415 = vmatprep.subr.mxu0 0.0
  %2416 = vmatpush2.msra.mxu0 0.0
  %2417 = vmatprep.subr.mxu0 0.0
  %2418 = vmatpush2.msra.mxu0 0.0
  %2419 = vmatprep.subr.mxu0 0.0
  %2420 = vmatpush2.msra.mxu0 0.0
  %2421 = vmatprep.subr.mxu0 0.0
  %2422 = vmatpush2.msra.mxu0 0.0
  %2423 = vmatprep.subr.mxu0 0.0
  %2424 = vmatpush2.msra.mxu0 0.0
  %2425 = vmatprep.subr.mxu0 0.0
  %2426 = vmatpush2.msra.mxu0 0.0
  %2427 = vmatprep.subr.mxu0 0.0
  %2428 = vmatpush2.msra.mxu0 0.0
  %2429 = vmatprep.mubr.f32.mxu0 0.0
  %2430 = vmatmul.mubr.f32.gmra.mxu0 %v2342
  %v2431 = vpop.f32.mrf.mxu0
  %v2432 = vadd.f32 0.0, %v2431
  %v2433 = vpop.f32.mrf.mxu0
  %2434 = vmatprep.mubr.f32.mxu0 0.0
  %2435 = vmatmul.mubr.f32.gmra.mxu0 %v2345
  %v2436 = vpop.f32.mrf.mxu0
  %v2437 = vadd.f32 0.0, %v2436
  %v2438 = vpop.f32.mrf.mxu0
  %2439 = vmatprep.mubr.f32.mxu0 0.0
  %2440 = vmatmul.mubr.f32.gmra.mxu0 %v2348
  %v2441 = vpop.f32.mrf.mxu0
  %v2442 = vadd.f32 0.0, %v2441
  %v2443 = vpop.f32.mrf.mxu0
  %2444 = vmatprep.mubr.f32.mxu0 0.0
  %2445 = vmatmul.mubr.f32.gmra.mxu0 %v2351
  %v2446 = vpop.f32.mrf.mxu0
  %v2447 = vadd.f32 0.0, %v2446
  %v2448 = vpop.f32.mrf.mxu0
  %2449 = vmatprep.mubr.f32.mxu0 0.0
  %2450 = vmatmul.mubr.f32.gmra.mxu0 %v2354
  %v2451 = vpop.f32.mrf.mxu0
  %v2452 = vadd.f32 0.0, %v2451
  %v2453 = vpop.f32.mrf.mxu0
  %2454 = vmatprep.mubr.f32.mxu0 0.0
  %2455 = vmatmul.mubr.f32.gmra.mxu0 %v2357
  %v2456 = vpop.f32.mrf.mxu0
  %v2457 = vadd.f32 0.0, %v2456
  %v2458 = vpop.f32.mrf.mxu0
  %2459 = vmatprep.mubr.f32.mxu0 0.0
  %2460 = vmatmul.mubr.f32.gmra.mxu0 %v2360
  %v2461 = vpop.f32.mrf.mxu0
  %v2462 = vadd.f32 0.0, %v2461
  %v2463 = vpop.f32.mrf.mxu0
  %2464 = vmatprep.mubr.f32.mxu0 0.0
  %2465 = vmatmul.mubr.f32.gmra.mxu0 %v2363
  %v2466 = vpop.f32.mrf.mxu0
  %v2467 = vadd.f32 0.0, %v2466
  %v2468 = vpop.f32.mrf.mxu0
  %2469 = vdwg.mxu0
  %2470 = vmatprep.subr.mxu0 0.0
  %2471 = vmatpush1.msra.mxu0 0.0
  %2472 = vmatprep.subr.mxu0 0.0
  %2473 = vmatpush1.msra.mxu0 0.0
  %2474 = vmatprep.subr.mxu0 0.0
  %2475 = vmatpush1.msra.mxu0 0.0
  %2476 = vmatprep.subr.mxu0 0.0
  %2477 = vmatpush1.msra.mxu0 0.0
  %2478 = vmatprep.subr.mxu0 0.0
  %2479 = vmatpush1.msra.mxu0 %v88
  %2480 = vmatprep.subr.mxu0 0.0
  %2481 = vmatpush1.msra.mxu0 %v87
  %2482 = vmatprep.subr.mxu0 0.0
  %2483 = vmatpush1.msra.mxu0 %v86
  %2484 = vmatprep.subr.mxu0 0.0
  %2485 = vmatpush1.msra.mxu0 %v85
  %2486 = vmatprep.subr.mxu0 0.0
  %2487 = vmatpush1.msra.mxu0 %v84
  %2488 = vmatprep.subr.mxu0 0.0
  %2489 = vmatpush1.msra.mxu0 %v83
  %2490 = vmatprep.subr.mxu0 0.0
  %2491 = vmatpush1.msra.mxu0 %v82
  %2492 = vmatprep.subr.mxu0 0.0
  %2493 = vmatpush1.msra.mxu0 %v81
  %2494 = vmatprep.subr.mxu0 0.0
  %2495 = vmatpush1.msra.mxu0 %v80
  %2496 = vmatprep.subr.mxu0 0.0
  %2497 = vmatpush1.msra.mxu0 %v79
  %2498 = vmatprep.subr.mxu0 0.0
  %2499 = vmatpush1.msra.mxu0 %v78
  %2500 = vmatprep.subr.mxu0 0.0
  %2501 = vmatpush1.msra.mxu0 %v77
  %2502 = vmatprep.subr.mxu0 0.0
  %2503 = vmatpush2.msra.mxu0 0.0
  %2504 = vmatprep.subr.mxu0 0.0
  %2505 = vmatpush2.msra.mxu0 0.0
  %2506 = vmatprep.subr.mxu0 0.0
  %2507 = vmatpush2.msra.mxu0 0.0
  %2508 = vmatprep.subr.mxu0 0.0
  %2509 = vmatpush2.msra.mxu0 0.0
  %2510 = vmatprep.subr.mxu0 0.0
  %2511 = vmatpush2.msra.mxu0 0.0
  %2512 = vmatprep.subr.mxu0 0.0
  %2513 = vmatpush2.msra.mxu0 0.0
  %2514 = vmatprep.subr.mxu0 0.0
  %2515 = vmatpush2.msra.mxu0 0.0
  %2516 = vmatprep.subr.mxu0 0.0
  %2517 = vmatpush2.msra.mxu0 0.0
  %2518 = vmatprep.subr.mxu0 0.0
  %2519 = vmatpush2.msra.mxu0 0.0
  %2520 = vmatprep.subr.mxu0 0.0
  %2521 = vmatpush2.msra.mxu0 0.0
  %2522 = vmatprep.subr.mxu0 0.0
  %2523 = vmatpush2.msra.mxu0 0.0
  %2524 = vmatprep.subr.mxu0 0.0
  %2525 = vmatpush2.msra.mxu0 0.0
  %2526 = vmatprep.subr.mxu0 0.0
  %2527 = vmatpush2.msra.mxu0 0.0
  %2528 = vmatprep.subr.mxu0 0.0
  %2529 = vmatpush2.msra.mxu0 0.0
  %2530 = vmatprep.subr.mxu0 0.0
  %2531 = vmatpush2.msra.mxu0 0.0
  %2532 = vmatprep.subr.mxu0 0.0
  %2533 = vmatpush2.msra.mxu0 0.0
  %2534 = vmatprep.mubr.f32.mxu0 0.0
  %2535 = vmatmul.mubr.f32.gmra.mxu0 %v2342
  %v2536 = vpop.f32.mrf.mxu0
  %v2537 = vadd.f32 0.0, %v2536
  %v2538 = vpop.f32.mrf.mxu0
  %2539 = vmatprep.mubr.f32.mxu0 0.0
  %2540 = vmatmul.mubr.f32.gmra.mxu0 %v2345
  %v2541 = vpop.f32.mrf.mxu0
  %v2542 = vadd.f32 0.0, %v2541
  %v2543 = vpop.f32.mrf.mxu0
  %2544 = vmatprep.mubr.f32.mxu0 0.0
  %2545 = vmatmul.mubr.f32.gmra.mxu0 %v2348
  %v2546 = vpop.f32.mrf.mxu0
  %v2547 = vadd.f32 0.0, %v2546
  %v2548 = vpop.f32.mrf.mxu0
  %2549 = vmatprep.mubr.f32.mxu0 0.0
  %2550 = vmatmul.mubr.f32.gmra.mxu0 %v2351
  %v2551 = vpop.f32.mrf.mxu0
  %v2552 = vadd.f32 0.0, %v2551
  %v2553 = vpop.f32.mrf.mxu0
  %2554 = vmatprep.mubr.f32.mxu0 0.0
  %2555 = vmatmul.mubr.f32.gmra.mxu0 %v2354
  %v2556 = vpop.f32.mrf.mxu0
  %v2557 = vadd.f32 0.0, %v2556
  %v2558 = vpop.f32.mrf.mxu0
  %2559 = vmatprep.mubr.f32.mxu0 0.0
  %2560 = vmatmul.mubr.f32.gmra.mxu0 %v2357
  %v2561 = vpop.f32.mrf.mxu0
  %v2562 = vadd.f32 0.0, %v2561
  %v2563 = vpop.f32.mrf.mxu0
  %2564 = vmatprep.mubr.f32.mxu0 0.0
  %2565 = vmatmul.mubr.f32.gmra.mxu0 %v2360
  %v2566 = vpop.f32.mrf.mxu0
  %v2567 = vadd.f32 0.0, %v2566
  %v2568 = vpop.f32.mrf.mxu0
  %2569 = vmatprep.mubr.f32.mxu0 0.0
  %2570 = vmatmul.mubr.f32.gmra.mxu0 %v2363
  %v2571 = vpop.f32.mrf.mxu0
  %v2572 = vadd.f32 0.0, %v2571
  %v2573 = vpop.f32.mrf.mxu0
  %2574 = vdwg.mxu0
  %2575 = vmatprep.subr.mxu0 0.0
  %2576 = vmatpush1.msra.mxu0 0.0
  %2577 = vmatprep.subr.mxu0 0.0
  %2578 = vmatpush1.msra.mxu0 0.0
  %2579 = vmatprep.subr.mxu0 0.0
  %2580 = vmatpush1.msra.mxu0 0.0
  %2581 = vmatprep.subr.mxu0 0.0
  %2582 = vmatpush1.msra.mxu0 0.0
  %2583 = vmatprep.subr.mxu0 0.0
  %2584 = vmatpush1.msra.mxu0 %v100
  %2585 = vmatprep.subr.mxu0 0.0
  %2586 = vmatpush1.msra.mxu0 %v99
  %2587 = vmatprep.subr.mxu0 0.0
  %2588 = vmatpush1.msra.mxu0 %v98
  %2589 = vmatprep.subr.mxu0 0.0
  %2590 = vmatpush1.msra.mxu0 %v97
  %2591 = vmatprep.subr.mxu0 0.0
  %2592 = vmatpush1.msra.mxu0 %v96
  %2593 = vmatprep.subr.mxu0 0.0
  %2594 = vmatpush1.msra.mxu0 %v95
  %2595 = vmatprep.subr.mxu0 0.0
  %2596 = vmatpush1.msra.mxu0 %v94
  %2597 = vmatprep.subr.mxu0 0.0
  %2598 = vmatpush1.msra.mxu0 %v93
  %2599 = vmatprep.subr.mxu0 0.0
  %2600 = vmatpush1.msra.mxu0 %v92
  %2601 = vmatprep.subr.mxu0 0.0
  %2602 = vmatpush1.msra.mxu0 %v91
  %2603 = vmatprep.subr.mxu0 0.0
  %2604 = vmatpush1.msra.mxu0 %v90
  %2605 = vmatprep.subr.mxu0 0.0
  %2606 = vmatpush1.msra.mxu0 %v89
  %2607 = vmatprep.subr.mxu0 0.0
  %2608 = vmatpush2.msra.mxu0 0.0
  %2609 = vmatprep.subr.mxu0 0.0
  %2610 = vmatpush2.msra.mxu0 0.0
  %2611 = vmatprep.subr.mxu0 0.0
  %2612 = vmatpush2.msra.mxu0 0.0
  %2613 = vmatprep.subr.mxu0 0.0
  %2614 = vmatpush2.msra.mxu0 0.0
  %2615 = vmatprep.subr.mxu0 0.0
  %2616 = vmatpush2.msra.mxu0 0.0
  %2617 = vmatprep.subr.mxu0 0.0
  %2618 = vmatpush2.msra.mxu0 0.0
  %2619 = vmatprep.subr.mxu0 0.0
  %2620 = vmatpush2.msra.mxu0 0.0
  %2621 = vmatprep.subr.mxu0 0.0
  %2622 = vmatpush2.msra.mxu0 0.0
  %2623 = vmatprep.subr.mxu0 0.0
  %2624 = vmatpush2.msra.mxu0 0.0
  %2625 = vmatprep.subr.mxu0 0.0
  %2626 = vmatpush2.msra.mxu0 0.0
  %2627 = vmatprep.subr.mxu0 0.0
  %2628 = vmatpush2.msra.mxu0 0.0
  %2629 = vmatprep.subr.mxu0 0.0
  %2630 = vmatpush2.msra.mxu0 0.0
  %2631 = vmatprep.subr.mxu0 0.0
  %2632 = vmatpush2.msra.mxu0 0.0
  %2633 = vmatprep.subr.mxu0 0.0
  %2634 = vmatpush2.msra.mxu0 0.0
  %2635 = vmatprep.subr.mxu0 0.0
  %2636 = vmatpush2.msra.mxu0 0.0
  %2637 = vmatprep.subr.mxu0 0.0
  %2638 = vmatpush2.msra.mxu0 0.0
  %2639 = vmatprep.mubr.f32.mxu0 0.0
  %2640 = vmatmul.mubr.f32.gmra.mxu0 %v2342
  %v2641 = vpop.f32.mrf.mxu0
  %v2642 = vadd.f32 0.0, %v2641
  %v2643 = vpop.f32.mrf.mxu0
  %2644 = vmatprep.mubr.f32.mxu0 0.0
  %2645 = vmatmul.mubr.f32.gmra.mxu0 %v2345
  %v2646 = vpop.f32.mrf.mxu0
  %v2647 = vadd.f32 0.0, %v2646
  %v2648 = vpop.f32.mrf.mxu0
  %2649 = vmatprep.mubr.f32.mxu0 0.0
  %2650 = vmatmul.mubr.f32.gmra.mxu0 %v2348
  %v2651 = vpop.f32.mrf.mxu0
  %v2652 = vadd.f32 0.0, %v2651
  %v2653 = vpop.f32.mrf.mxu0
  %2654 = vmatprep.mubr.f32.mxu0 0.0
  %2655 = vmatmul.mubr.f32.gmra.mxu0 %v2351
  %v2656 = vpop.f32.mrf.mxu0
  %v2657 = vadd.f32 0.0, %v2656
  %v2658 = vpop.f32.mrf.mxu0
  %2659 = vmatprep.mubr.f32.mxu0 0.0
  %2660 = vmatmul.mubr.f32.gmra.mxu0 %v2354
  %v2661 = vpop.f32.mrf.mxu0
  %v2662 = vadd.f32 0.0, %v2661
  %v2663 = vpop.f32.mrf.mxu0
  %2664 = vmatprep.mubr.f32.mxu0 0.0
  %2665 = vmatmul.mubr.f32.gmra.mxu0 %v2357
  %v2666 = vpop.f32.mrf.mxu0
  %v2667 = vadd.f32 0.0, %v2666
  %v2668 = vpop.f32.mrf.mxu0
  %2669 = vmatprep.mubr.f32.mxu0 0.0
  %2670 = vmatmul.mubr.f32.gmra.mxu0 %v2360
  %v2671 = vpop.f32.mrf.mxu0
  %v2672 = vadd.f32 0.0, %v2671
  %v2673 = vpop.f32.mrf.mxu0
  %2674 = vmatprep.mubr.f32.mxu0 0.0
  %2675 = vmatmul.mubr.f32.gmra.mxu0 %v2363
  %v2676 = vpop.f32.mrf.mxu0
  %v2677 = vadd.f32 0.0, %v2676
  %v2678 = vpop.f32.mrf.mxu0
  %2679 = vdwg.mxu0
  %v2681 = vsel %vm705, %v2432, 0
  %v2684 = vsel %vm705, %v2437, 0
  %v2687 = vsel %vm705, %v2442, 0
  %v2690 = vsel %vm705, %v2447, 0
  %v2693 = vsel %vm705, %v2452, 0
  %v2696 = vsel %vm705, %v2457, 0
  %v2699 = vsel %vm705, %v2462, 0
  %v2702 = vsel %vm705, %v2467, 0
  %v2705 = vsel %vm705, %v2537, 0
  %v2708 = vsel %vm705, %v2542, 0
  %v2711 = vsel %vm705, %v2547, 0
  %v2714 = vsel %vm705, %v2552, 0
  %v2717 = vsel %vm705, %v2557, 0
  %v2720 = vsel %vm705, %v2562, 0
  %v2723 = vsel %vm705, %v2567, 0
  %v2726 = vsel %vm705, %v2572, 0
  %2728 = vmatprep.subr.mxu0 0.0
  %2729 = vmatpush1.xpose.msra.mxu0 0.0
  %2730 = vmatprep.subr.mxu0 0.0
  %2731 = vmatpush1.xpose.msra.mxu0 0.0
  %2732 = vmatprep.subr.mxu0 0.0
  %2733 = vmatpush1.xpose.msra.mxu0 0.0
  %2734 = vmatprep.subr.mxu0 0.0
  %2735 = vmatpush1.xpose.msra.mxu0 0.0
  %2736 = vmatprep.subr.mxu0 0.0
  %2737 = vmatpush1.xpose.msra.mxu0 0.0
  %2738 = vmatprep.subr.mxu0 0.0
  %2739 = vmatpush1.xpose.msra.mxu0 0.0
  %2740 = vmatprep.subr.mxu0 0.0
  %2741 = vmatpush1.xpose.msra.mxu0 0.0
  %2742 = vmatprep.subr.mxu0 0.0
  %2743 = vmatpush1.xpose.msra.mxu0 0.0
  %2744 = vmatprep.subr.mxu0 0.0
  %2745 = vmatpush1.xpose.msra.mxu0 %v2726
  %2746 = vmatprep.subr.mxu0 0.0
  %2747 = vmatpush1.xpose.msra.mxu0 %v2723
  %2748 = vmatprep.subr.mxu0 0.0
  %2749 = vmatpush1.xpose.msra.mxu0 %v2720
  %2750 = vmatprep.subr.mxu0 0.0
  %2751 = vmatpush1.xpose.msra.mxu0 %v2717
  %2752 = vmatprep.subr.mxu0 0.0
  %2753 = vmatpush1.xpose.msra.mxu0 %v2714
  %2754 = vmatprep.subr.mxu0 0.0
  %2755 = vmatpush1.xpose.msra.mxu0 %v2711
  %2756 = vmatprep.subr.mxu0 0.0
  %2757 = vmatpush1.xpose.msra.mxu0 %v2708
  %2758 = vmatprep.subr.mxu0 0.0
  %2759 = vmatpush1.xpose.msra.mxu0 %v2705
  %2760 = vmatprep.subr.mxu0 0.0
  %2761 = vmatpush2.xpose.msra.mxu0 0.0
  %2762 = vmatprep.subr.mxu0 0.0
  %2763 = vmatpush2.xpose.msra.mxu0 0.0
  %2764 = vmatprep.subr.mxu0 0.0
  %2765 = vmatpush2.xpose.msra.mxu0 0.0
  %2766 = vmatprep.subr.mxu0 0.0
  %2767 = vmatpush2.xpose.msra.mxu0 0.0
  %2768 = vmatprep.subr.mxu0 0.0
  %2769 = vmatpush2.xpose.msra.mxu0 0.0
  %2770 = vmatprep.subr.mxu0 0.0
  %2771 = vmatpush2.xpose.msra.mxu0 0.0
  %2772 = vmatprep.subr.mxu0 0.0
  %2773 = vmatpush2.xpose.msra.mxu0 0.0
  %2774 = vmatprep.subr.mxu0 0.0
  %2775 = vmatpush2.xpose.msra.mxu0 0.0
  %2776 = vmatprep.subr.mxu0 0.0
  %2777 = vmatpush2.xpose.msra.mxu0 0.0
  %2778 = vmatprep.subr.mxu0 0.0
  %2779 = vmatpush2.xpose.msra.mxu0 0.0
  %2780 = vmatprep.subr.mxu0 0.0
  %2781 = vmatpush2.xpose.msra.mxu0 0.0
  %2782 = vmatprep.subr.mxu0 0.0
  %2783 = vmatpush2.xpose.msra.mxu0 0.0
  %2784 = vmatprep.subr.mxu0 0.0
  %2785 = vmatpush2.xpose.msra.mxu0 0.0
  %2786 = vmatprep.subr.mxu0 0.0
  %2787 = vmatpush2.xpose.msra.mxu0 0.0
  %2788 = vmatprep.subr.mxu0 0.0
  %2789 = vmatpush2.xpose.msra.mxu0 0.0
  %2790 = vmatprep.subr.mxu0 0.0
  %2791 = vmatpush2.xpose.msra.mxu0 0.0
  %2792 = vmatprep.mubr.f32.mxu0 0.0
  %2793 = vmatmul.mubr.f32.gmra.mxu0 %v2681
  %v2794 = vpop.f32.mrf.mxu0
  %v2795 = vadd.f32 %v101, %v2794
  %v2796 = vpop.f32.mrf.mxu0
  %2797 = vmatprep.mubr.f32.mxu0 0.0
  %2798 = vmatmul.mubr.f32.gmra.mxu0 %v2684
  %v2799 = vpop.f32.mrf.mxu0
  %v2800 = vadd.f32 %v102, %v2799
  %v2801 = vpop.f32.mrf.mxu0
  %2802 = vmatprep.mubr.f32.mxu0 0.0
  %2803 = vmatmul.mubr.f32.gmra.mxu0 %v2687
  %v2804 = vpop.f32.mrf.mxu0
  %v2805 = vadd.f32 %v103, %v2804
  %v2806 = vpop.f32.mrf.mxu0
  %2807 = vmatprep.mubr.f32.mxu0 0.0
  %2808 = vmatmul.mubr.f32.gmra.mxu0 %v2690
  %v2809 = vpop.f32.mrf.mxu0
  %v2810 = vadd.f32 %v104, %v2809
  %v2811 = vpop.f32.mrf.mxu0
  %2812 = vmatprep.mubr.f32.mxu0 0.0
  %2813 = vmatmul.mubr.f32.gmra.mxu0 %v2693
  %v2814 = vpop.f32.mrf.mxu0
  %v2815 = vadd.f32 %v105, %v2814
  %v2816 = vpop.f32.mrf.mxu0
  %2817 = vmatprep.mubr.f32.mxu0 0.0
  %2818 = vmatmul.mubr.f32.gmra.mxu0 %v2696
  %v2819 = vpop.f32.mrf.mxu0
  %v2820 = vadd.f32 %v106, %v2819
  %v2821 = vpop.f32.mrf.mxu0
  %2822 = vmatprep.mubr.f32.mxu0 0.0
  %2823 = vmatmul.mubr.f32.gmra.mxu0 %v2699
  %v2824 = vpop.f32.mrf.mxu0
  %v2825 = vadd.f32 %v107, %v2824
  %v2826 = vpop.f32.mrf.mxu0
  %2827 = vmatprep.mubr.f32.mxu0 0.0
  %2828 = vmatmul.mubr.f32.gmra.mxu0 %v2702
  %v2829 = vpop.f32.mrf.mxu0
  %v2830 = vadd.f32 %v108, %v2829
  %v2831 = vpop.f32.mrf.mxu0
  %2832 = vdwg.mxu0
  %v2833 = vsel %vm859, %v2795, -inf
  %2834 = vmax.xlane.f32.xlu0 %v2833
  %v2835 = vpop.xlane.xlu0 %2834
  %v2836 = vsel %vm859, %v2800, -inf
  %2837 = vmax.xlane.f32.xlu0 %v2836
  %v2838 = vpop.xlane.xlu0 %2837
  %v2839 = vsel %vm859, %v2805, -inf
  %2840 = vmax.xlane.f32.xlu0 %v2839
  %v2841 = vpop.xlane.xlu0 %2840
  %v2842 = vsel %vm859, %v2810, -inf
  %2843 = vmax.xlane.f32.xlu0 %v2842
  %v2844 = vpop.xlane.xlu0 %2843
  %v2845 = vsel %vm859, %v2815, -inf
  %2846 = vmax.xlane.f32.xlu0 %v2845
  %v2847 = vpop.xlane.xlu0 %2846
  %v2848 = vsel %vm859, %v2820, -inf
  %2849 = vmax.xlane.f32.xlu0 %v2848
  %v2850 = vpop.xlane.xlu0 %2849
  %v2851 = vsel %vm859, %v2825, -inf
  %2852 = vmax.xlane.f32.xlu0 %v2851
  %v2853 = vpop.xlane.xlu0 %2852
  %v2854 = vsel %vm859, %v2830, -inf
  %2855 = vmax.xlane.f32.xlu0 %v2854
  %v2856 = vpop.xlane.xlu0 %2855
  %v2857 = vsub.f32 %v2795, %v2835
  %v2858 = vsub.f32 %v2800, %v2838
  %v2859 = vsub.f32 %v2805, %v2841
  %v2860 = vsub.f32 %v2810, %v2844
  %v2861 = vsub.f32 %v2815, %v2847
  %v2862 = vsub.f32 %v2820, %v2850
  %v2863 = vsub.f32 %v2825, %v2853
  %v2864 = vsub.f32 %v2830, %v2856
  %v2865 = vmul.f32 %v2857, 1.442695
  %v2866 = vpow.pop %v2865
  %v2867 = vmul.f32 %v2858, 1.442695
  %v2868 = vpow.pop %v2867
  %v2869 = vmul.f32 %v2859, 1.442695
  %v2870 = vpow.pop %v2869
  %v2871 = vmul.f32 %v2860, 1.442695
  %v2872 = vpow.pop %v2871
  %v2873 = vmul.f32 %v2861, 1.442695
  %v2874 = vpow.pop %v2873
  %v2875 = vmul.f32 %v2862, 1.442695
  %v2876 = vpow.pop %v2875
  %v2877 = vmul.f32 %v2863, 1.442695
  %v2878 = vpow.pop %v2877
  %v2879 = vmul.f32 %v2864, 1.442695
  %v2880 = vpow.pop %v2879
  %v2881 = vsel %vm859, %v2866, 0.0
  %2882 = vadd.xlane.f32.xlu0 %v2881
  %v2883 = vpop.xlane.xlu0 %2882
  %v2884 = vsel %vm859, %v2868, 0.0
  %2885 = vadd.xlane.f32.xlu0 %v2884
  %v2886 = vpop.xlane.xlu0 %2885
  %v2887 = vsel %vm859, %v2870, 0.0
  %2888 = vadd.xlane.f32.xlu0 %v2887
  %v2889 = vpop.xlane.xlu0 %2888
  %v2890 = vsel %vm859, %v2872, 0.0
  %2891 = vadd.xlane.f32.xlu0 %v2890
  %v2892 = vpop.xlane.xlu0 %2891
  %v2893 = vsel %vm859, %v2874, 0.0
  %2894 = vadd.xlane.f32.xlu0 %v2893
  %v2895 = vpop.xlane.xlu0 %2894
  %v2896 = vsel %vm859, %v2876, 0.0
  %2897 = vadd.xlane.f32.xlu0 %v2896
  %v2898 = vpop.xlane.xlu0 %2897
  %v2899 = vsel %vm859, %v2878, 0.0
  %2900 = vadd.xlane.f32.xlu0 %v2899
  %v2901 = vpop.xlane.xlu0 %2900
  %v2902 = vsel %vm859, %v2880, 0.0
  %2903 = vadd.xlane.f32.xlu0 %v2902
  %v2904 = vpop.xlane.xlu0 %2903
  %v2905 = vrcp.pop %v2883
  %v2906 = vrcp.pop %v2886
  %v2907 = vrcp.pop %v2889
  %v2908 = vrcp.pop %v2892
  %v2909 = vrcp.pop %v2895
  %v2910 = vrcp.pop %v2898
  %v2911 = vrcp.pop %v2901
  %v2912 = vrcp.pop %v2904
  %v2913 = vmul.f32 %v2866, %v2905
  %v2914 = vmul.f32 %v2868, %v2906
  %v2915 = vmul.f32 %v2870, %v2907
  %v2916 = vmul.f32 %v2872, %v2908
  %v2917 = vmul.f32 %v2874, %v2909
  %v2918 = vmul.f32 %v2876, %v2910
  %v2919 = vmul.f32 %v2878, %v2911
  %v2920 = vmul.f32 %v2880, %v2912
  %2921 = vst.msk [vmem:[%s15] sm:$0xff] %vm859, %v2913
  %2922 = vst.msk [vmem:[%s15 + $0x8] sm:$0xff] %vm859, %v2914
  %2923 = vst.msk [vmem:[%s15 + $0x10] sm:$0xff] %vm859, %v2915
  %2924 = vst.msk [vmem:[%s15 + $0x18] sm:$0xff] %vm859, %v2916
  %2925 = vst.msk [vmem:[%s15 + $0x20] sm:$0xff] %vm859, %v2917
  %2926 = vst.msk [vmem:[%s15 + $0x28] sm:$0xff] %vm859, %v2918
  %2927 = vst.msk [vmem:[%s15 + $0x30] sm:$0xff] %vm859, %v2919
  %2928 = vst.msk [vmem:[%s15 + $0x38] sm:$0xff] %vm859, %v2920
  %v2930 = vsel %vm859, %v2913, 0
  %v2933 = vsel %vm859, %v2914, 0
  %v2936 = vsel %vm859, %v2915, 0
  %v2939 = vsel %vm859, %v2916, 0
  %v2942 = vsel %vm859, %v2917, 0
  %v2945 = vsel %vm859, %v2918, 0
  %v2948 = vsel %vm859, %v2919, 0
  %v2951 = vsel %vm859, %v2920, 0
  %2953 = vmatprep.subr.mxu0 0.0
  %2954 = vmatpush1.msra.mxu0 0.0
  %2955 = vmatprep.subr.mxu0 0.0
  %2956 = vmatpush1.msra.mxu0 0.0
  %2957 = vmatprep.subr.mxu0 0.0
  %2958 = vmatpush1.msra.mxu0 0.0
  %2959 = vmatprep.subr.mxu0 0.0
  %2960 = vmatpush1.msra.mxu0 0.0
  %2961 = vmatprep.subr.mxu0 0.0
  %2962 = vmatpush1.msra.mxu0 0.0
  %2963 = vmatprep.subr.mxu0 0.0
  %2964 = vmatpush1.msra.mxu0 0.0
  %2965 = vmatprep.subr.mxu0 0.0
  %2966 = vmatpush1.msra.mxu0 0.0
  %2967 = vmatprep.subr.mxu0 0.0
  %2968 = vmatpush1.msra.mxu0 0.0
  %2969 = vmatprep.subr.mxu0 0.0
  %2970 = vmatpush1.msra.mxu0 %v2677
  %2971 = vmatprep.subr.mxu0 0.0
  %2972 = vmatpush1.msra.mxu0 %v2672
  %2973 = vmatprep.subr.mxu0 0.0
  %2974 = vmatpush1.msra.mxu0 %v2667
  %2975 = vmatprep.subr.mxu0 0.0
  %2976 = vmatpush1.msra.mxu0 %v2662
  %2977 = vmatprep.subr.mxu0 0.0
  %2978 = vmatpush1.msra.mxu0 %v2657
  %2979 = vmatprep.subr.mxu0 0.0
  %2980 = vmatpush1.msra.mxu0 %v2652
  %2981 = vmatprep.subr.mxu0 0.0
  %2982 = vmatpush1.msra.mxu0 %v2647
  %2983 = vmatprep.subr.mxu0 0.0
  %2984 = vmatpush1.msra.mxu0 %v2642
  %2985 = vmatprep.subr.mxu0 0.0
  %2986 = vmatpush2.msra.mxu0 0.0
  %2987 = vmatprep.subr.mxu0 0.0
  %2988 = vmatpush2.msra.mxu0 0.0
  %2989 = vmatprep.subr.mxu0 0.0
  %2990 = vmatpush2.msra.mxu0 0.0
  %2991 = vmatprep.subr.mxu0 0.0
  %2992 = vmatpush2.msra.mxu0 0.0
  %2993 = vmatprep.subr.mxu0 0.0
  %2994 = vmatpush2.msra.mxu0 0.0
  %2995 = vmatprep.subr.mxu0 0.0
  %2996 = vmatpush2.msra.mxu0 0.0
  %2997 = vmatprep.subr.mxu0 0.0
  %2998 = vmatpush2.msra.mxu0 0.0
  %2999 = vmatprep.subr.mxu0 0.0
  %3000 = vmatpush2.msra.mxu0 0.0
  %3001 = vmatprep.subr.mxu0 0.0
  %3002 = vmatpush2.msra.mxu0 0.0
  %3003 = vmatprep.subr.mxu0 0.0
  %3004 = vmatpush2.msra.mxu0 0.0
  %3005 = vmatprep.subr.mxu0 0.0
  %3006 = vmatpush2.msra.mxu0 0.0
  %3007 = vmatprep.subr.mxu0 0.0
  %3008 = vmatpush2.msra.mxu0 0.0
  %3009 = vmatprep.subr.mxu0 0.0
  %3010 = vmatpush2.msra.mxu0 0.0
  %3011 = vmatprep.subr.mxu0 0.0
  %3012 = vmatpush2.msra.mxu0 0.0
  %3013 = vmatprep.subr.mxu0 0.0
  %3014 = vmatpush2.msra.mxu0 0.0
  %3015 = vmatprep.subr.mxu0 0.0
  %3016 = vmatpush2.msra.mxu0 0.0
  %3017 = vmatprep.mubr.f32.mxu0 0.0
  %3018 = vmatmul.mubr.f32.gmra.mxu0 %v2930
  %v3019 = vpop.f32.mrf.mxu0
  %v3020 = vadd.f32 0.0, %v3019
  %v3021 = vpop.f32.mrf.mxu0
  %3022 = vmatprep.mubr.f32.mxu0 0.0
  %3023 = vmatmul.mubr.f32.gmra.mxu0 %v2933
  %v3024 = vpop.f32.mrf.mxu0
  %v3025 = vadd.f32 0.0, %v3024
  %v3026 = vpop.f32.mrf.mxu0
  %3027 = vmatprep.mubr.f32.mxu0 0.0
  %3028 = vmatmul.mubr.f32.gmra.mxu0 %v2936
  %v3029 = vpop.f32.mrf.mxu0
  %v3030 = vadd.f32 0.0, %v3029
  %v3031 = vpop.f32.mrf.mxu0
  %3032 = vmatprep.mubr.f32.mxu0 0.0
  %3033 = vmatmul.mubr.f32.gmra.mxu0 %v2939
  %v3034 = vpop.f32.mrf.mxu0
  %v3035 = vadd.f32 0.0, %v3034
  %v3036 = vpop.f32.mrf.mxu0
  %3037 = vmatprep.mubr.f32.mxu0 0.0
  %3038 = vmatmul.mubr.f32.gmra.mxu0 %v2942
  %v3039 = vpop.f32.mrf.mxu0
  %v3040 = vadd.f32 0.0, %v3039
  %v3041 = vpop.f32.mrf.mxu0
  %3042 = vmatprep.mubr.f32.mxu0 0.0
  %3043 = vmatmul.mubr.f32.gmra.mxu0 %v2945
  %v3044 = vpop.f32.mrf.mxu0
  %v3045 = vadd.f32 0.0, %v3044
  %v3046 = vpop.f32.mrf.mxu0
  %3047 = vmatprep.mubr.f32.mxu0 0.0
  %3048 = vmatmul.mubr.f32.gmra.mxu0 %v2948
  %v3049 = vpop.f32.mrf.mxu0
  %v3050 = vadd.f32 0.0, %v3049
  %v3051 = vpop.f32.mrf.mxu0
  %3052 = vmatprep.mubr.f32.mxu0 0.0
  %3053 = vmatmul.mubr.f32.gmra.mxu0 %v2951
  %v3054 = vpop.f32.mrf.mxu0
  %v3055 = vadd.f32 0.0, %v3054
  %v3056 = vpop.f32.mrf.mxu0
  %3057 = vdwg.mxu0
  %v3058 = vmul.f32 %v3020, %v109
  %v3059 = vmul.f32 %v3025, %v110
  %v3060 = vmul.f32 %v3030, %v111
  %v3061 = vmul.f32 %v3035, %v112
  %v3062 = vmul.f32 %v3040, %v113
  %v3063 = vmul.f32 %v3045, %v114
  %v3064 = vmul.f32 %v3050, %v115
  %v3065 = vmul.f32 %v3055, %v116
  %3066 = vmatprep.subr.mxu0 0.0
  %3067 = vmatpush1.msra.mxu0 0.0
  %3068 = vmatprep.subr.mxu0 0.0
  %3069 = vmatpush1.msra.mxu0 0.0
  %3070 = vmatprep.subr.mxu0 0.0
  %3071 = vmatpush1.msra.mxu0 0.0
  %3072 = vmatprep.subr.mxu0 0.0
  %3073 = vmatpush1.msra.mxu0 0.0
  %3074 = vmatprep.subr.mxu0 0.0
  %3075 = vmatpush1.msra.mxu0 0.0
  %3076 = vmatprep.subr.mxu0 0.0
  %3077 = vmatpush1.msra.mxu0 0.0
  %3078 = vmatprep.subr.mxu0 0.0
  %3079 = vmatpush1.msra.mxu0 0.0
  %3080 = vmatprep.subr.mxu0 0.0
  %3081 = vmatpush1.msra.mxu0 0.0
  %3082 = vmatprep.subr.mxu0 0.0
  %3083 = vmatpush1.msra.mxu0 %v3065
  %3084 = vmatprep.subr.mxu0 0.0
  %3085 = vmatpush1.msra.mxu0 %v3064
  %3086 = vmatprep.subr.mxu0 0.0
  %3087 = vmatpush1.msra.mxu0 %v3063
  %3088 = vmatprep.subr.mxu0 0.0
  %3089 = vmatpush1.msra.mxu0 %v3062
  %3090 = vmatprep.subr.mxu0 0.0
  %3091 = vmatpush1.msra.mxu0 %v3061
  %3092 = vmatprep.subr.mxu0 0.0
  %3093 = vmatpush1.msra.mxu0 %v3060
  %3094 = vmatprep.subr.mxu0 0.0
  %3095 = vmatpush1.msra.mxu0 %v3059
  %3096 = vmatprep.subr.mxu0 0.0
  %3097 = vmatpush1.msra.mxu0 %v3058
  %3098 = vmatprep.subr.mxu0 0.0
  %3099 = vmatpush2.msra.mxu0 0.0
  %3100 = vmatprep.subr.mxu0 0.0
  %3101 = vmatpush2.msra.mxu0 0.0
  %3102 = vmatprep.subr.mxu0 0.0
  %3103 = vmatpush2.msra.mxu0 0.0
  %3104 = vmatprep.subr.mxu0 0.0
  %3105 = vmatpush2.msra.mxu0 0.0
  %3106 = vmatprep.subr.mxu0 0.0
  %3107 = vmatpush2.msra.mxu0 0.0
  %3108 = vmatprep.subr.mxu0 0.0
  %3109 = vmatpush2.msra.mxu0 0.0
  %3110 = vmatprep.subr.mxu0 0.0
  %3111 = vmatpush2.msra.mxu0 0.0
  %3112 = vmatprep.subr.mxu0 0.0
  %3113 = vmatpush2.msra.mxu0 0.0
  %3114 = vmatprep.subr.mxu0 0.0
  %3115 = vmatpush2.msra.mxu0 0.0
  %3116 = vmatprep.subr.mxu0 0.0
  %3117 = vmatpush2.msra.mxu0 0.0
  %3118 = vmatprep.subr.mxu0 0.0
  %3119 = vmatpush2.msra.mxu0 0.0
  %3120 = vmatprep.subr.mxu0 0.0
  %3121 = vmatpush2.msra.mxu0 0.0
  %3122 = vmatprep.subr.mxu0 0.0
  %3123 = vmatpush2.msra.mxu0 0.0
  %3124 = vmatprep.subr.mxu0 0.0
  %3125 = vmatpush2.msra.mxu0 0.0
  %3126 = vmatprep.subr.mxu0 0.0
  %3127 = vmatpush2.msra.mxu0 0.0
  %3128 = vmatprep.subr.mxu0 0.0
  %3129 = vmatpush2.msra.mxu0 0.0
  %3130 = vmatprep.mubr.f32.mxu0 0.0
  %3131 = vmatmul.mubr.f32.gmra.mxu0 %v1086
  %v3132 = vpop.f32.mrf.mxu0
  %v3133 = vadd.f32 0.0, %v3132
  %v3134 = vpop.f32.mrf.mxu0
  %3135 = vmatprep.mubr.f32.mxu0 0.0
  %3136 = vmatmul.mubr.f32.gmra.mxu0 %v1089
  %v3137 = vpop.f32.mrf.mxu0
  %v3138 = vadd.f32 0.0, %v3137
  %v3139 = vpop.f32.mrf.mxu0
  %3140 = vdwg.mxu0
  %3145 = vrot.lane.b32.xlu0 %v3133, 32
  %v3146 = vpop.permute.xlu0 %3145
  %3147 = vrot.lane.b32.xlu0 %v3138, 32
  %v3148 = vpop.permute.xlu0 %3147
  %v3151 = vsel %vm145, %v2146, %v3146
  %v3152 = vsel %vm145, %v2148, %v3148
  %v3154 = vlaneseq
  %v3155 = vshrl.u32 %v3154, 7
  %v3156 = vsub.s32 0, %v3155
  %v3157 = vrot.slane %v2136, %v3156
  %v3160 = vsel %vm859, %v3151, 0
  %v3163 = vsel %vm859, %v3152, 0
  %3165 = vmatprep.subr.mxu0 0.0
  %3166 = vmatpush1.msra.mxu0 0.0
  %3167 = vmatprep.subr.mxu0 0.0
  %3168 = vmatpush1.msra.mxu0 0.0
  %3169 = vmatprep.subr.mxu0 0.0
  %3170 = vmatpush1.msra.mxu0 0.0
  %3171 = vmatprep.subr.mxu0 0.0
  %3172 = vmatpush1.msra.mxu0 0.0
  %3173 = vmatprep.subr.mxu0 0.0
  %3174 = vmatpush1.msra.mxu0 0.0
  %3175 = vmatprep.subr.mxu0 0.0
  %3176 = vmatpush1.msra.mxu0 0.0
  %3177 = vmatprep.subr.mxu0 0.0
  %3178 = vmatpush1.msra.mxu0 0.0
  %3179 = vmatprep.subr.mxu0 0.0
  %3180 = vmatpush1.msra.mxu0 0.0
  %3181 = vmatprep.subr.mxu0 0.0
  %3182 = vmatpush1.msra.mxu0 %v2129
  %3183 = vmatprep.subr.mxu0 0.0
  %3184 = vmatpush1.msra.mxu0 %v2128
  %3185 = vmatprep.subr.mxu0 0.0
  %3186 = vmatpush1.msra.mxu0 %v2127
  %3187 = vmatprep.subr.mxu0 0.0
  %3188 = vmatpush1.msra.mxu0 %v2126
  %3189 = vmatprep.subr.mxu0 0.0
  %3190 = vmatpush1.msra.mxu0 %v2125
  %3191 = vmatprep.subr.mxu0 0.0
  %3192 = vmatpush1.msra.mxu0 %v2124
  %3193 = vmatprep.subr.mxu0 0.0
  %3194 = vmatpush1.msra.mxu0 %v2123
  %3195 = vmatprep.subr.mxu0 0.0
  %3196 = vmatpush1.msra.mxu0 %v2122
  %3197 = vmatprep.subr.mxu0 0.0
  %3198 = vmatpush2.msra.mxu0 0.0
  %3199 = vmatprep.subr.mxu0 0.0
  %3200 = vmatpush2.msra.mxu0 0.0
  %3201 = vmatprep.subr.mxu0 0.0
  %3202 = vmatpush2.msra.mxu0 0.0
  %3203 = vmatprep.subr.mxu0 0.0
  %3204 = vmatpush2.msra.mxu0 0.0
  %3205 = vmatprep.subr.mxu0 0.0
  %3206 = vmatpush2.msra.mxu0 0.0
  %3207 = vmatprep.subr.mxu0 0.0
  %3208 = vmatpush2.msra.mxu0 0.0
  %3209 = vmatprep.subr.mxu0 0.0
  %3210 = vmatpush2.msra.mxu0 0.0
  %3211 = vmatprep.subr.mxu0 0.0
  %3212 = vmatpush2.msra.mxu0 0.0
  %3213 = vmatprep.subr.mxu0 0.0
  %3214 = vmatpush2.msra.mxu0 0.0
  %3215 = vmatprep.subr.mxu0 0.0
  %3216 = vmatpush2.msra.mxu0 0.0
  %3217 = vmatprep.subr.mxu0 0.0
  %3218 = vmatpush2.msra.mxu0 0.0
  %3219 = vmatprep.subr.mxu0 0.0
  %3220 = vmatpush2.msra.mxu0 0.0
  %3221 = vmatprep.subr.mxu0 0.0
  %3222 = vmatpush2.msra.mxu0 0.0
  %3223 = vmatprep.subr.mxu0 0.0
  %3224 = vmatpush2.msra.mxu0 0.0
  %3225 = vmatprep.subr.mxu0 0.0
  %3226 = vmatpush2.msra.mxu0 0.0
  %3227 = vmatprep.subr.mxu0 0.0
  %3228 = vmatpush2.msra.mxu0 0.0
  %3229 = vmatprep.mubr.f32.mxu0 0.0
  %3230 = vmatmul.mubr.f32.gmra.mxu0 %v3160
  %v3231 = vpop.f32.mrf.mxu0
  %v3232 = vadd.f32 %v3157, %v3231
  %v3233 = vpop.f32.mrf.mxu0
  %3234 = vmatprep.mubr.f32.mxu0 0.0
  %3235 = vmatmul.mubr.f32.gmra.mxu0 %v3163
  %v3236 = vpop.f32.mrf.mxu0
  %v3237 = vadd.f32 %v3157, %v3236
  %v3238 = vpop.f32.mrf.mxu0
  %3239 = vdwg.mxu0
  %3240 = vmatprep.subr.mxu0 0.0
  %3241 = vmatpush1.msra.mxu0 0.0
  %3242 = vmatprep.subr.mxu0 0.0
  %3243 = vmatpush1.msra.mxu0 0.0
  %3244 = vmatprep.subr.mxu0 0.0
  %3245 = vmatpush1.msra.mxu0 0.0
  %3246 = vmatprep.subr.mxu0 0.0
  %3247 = vmatpush1.msra.mxu0 0.0
  %3248 = vmatprep.subr.mxu0 0.0
  %3249 = vmatpush1.msra.mxu0 0.0
  %3250 = vmatprep.subr.mxu0 0.0
  %3251 = vmatpush1.msra.mxu0 0.0
  %3252 = vmatprep.subr.mxu0 0.0
  %3253 = vmatpush1.msra.mxu0 0.0
  %3254 = vmatprep.subr.mxu0 0.0
  %3255 = vmatpush1.msra.mxu0 0.0
  %3256 = vmatprep.subr.mxu0 0.0
  %3257 = vmatpush1.msra.mxu0 0.0
  %3258 = vmatprep.subr.mxu0 0.0
  %3259 = vmatpush1.msra.mxu0 0.0
  %3260 = vmatprep.subr.mxu0 0.0
  %3261 = vmatpush1.msra.mxu0 0.0
  %3262 = vmatprep.subr.mxu0 0.0
  %3263 = vmatpush1.msra.mxu0 0.0
  %3264 = vmatprep.subr.mxu0 0.0
  %3265 = vmatpush1.msra.mxu0 %v2134
  %3266 = vmatprep.subr.mxu0 0.0
  %3267 = vmatpush1.msra.mxu0 %v2133
  %3268 = vmatprep.subr.mxu0 0.0
  %3269 = vmatpush1.msra.mxu0 %v2132
  %3270 = vmatprep.subr.mxu0 0.0
  %3271 = vmatpush1.msra.mxu0 %v2131
  %3272 = vmatprep.subr.mxu0 0.0
  %3273 = vmatpush2.msra.mxu0 0.0
  %3274 = vmatprep.subr.mxu0 0.0
  %3275 = vmatpush2.msra.mxu0 0.0
  %3276 = vmatprep.subr.mxu0 0.0
  %3277 = vmatpush2.msra.mxu0 0.0
  %3278 = vmatprep.subr.mxu0 0.0
  %3279 = vmatpush2.msra.mxu0 0.0
  %3280 = vmatprep.subr.mxu0 0.0
  %3281 = vmatpush2.msra.mxu0 0.0
  %3282 = vmatprep.subr.mxu0 0.0
  %3283 = vmatpush2.msra.mxu0 0.0
  %3284 = vmatprep.subr.mxu0 0.0
  %3285 = vmatpush2.msra.mxu0 0.0
  %3286 = vmatprep.subr.mxu0 0.0
  %3287 = vmatpush2.msra.mxu0 0.0
  %3288 = vmatprep.subr.mxu0 0.0
  %3289 = vmatpush2.msra.mxu0 0.0
  %3290 = vmatprep.subr.mxu0 0.0
  %3291 = vmatpush2.msra.mxu0 0.0
  %3292 = vmatprep.subr.mxu0 0.0
  %3293 = vmatpush2.msra.mxu0 0.0
  %3294 = vmatprep.subr.mxu0 0.0
  %3295 = vmatpush2.msra.mxu0 0.0
  %3296 = vmatprep.subr.mxu0 0.0
  %3297 = vmatpush2.msra.mxu0 0.0
  %3298 = vmatprep.subr.mxu0 0.0
  %3299 = vmatpush2.msra.mxu0 0.0
  %3300 = vmatprep.subr.mxu0 0.0
  %3301 = vmatpush2.msra.mxu0 0.0
  %3302 = vmatprep.subr.mxu0 0.0
  %3303 = vmatpush2.msra.mxu0 0.0
  %3304 = vmatprep.mubr.f32.mxu0 0.0
  %3305 = vmatmul.mubr.f32.gmra.mxu0 %v1264
  %v3306 = vpop.f32.mrf.mxu0
  %v3307 = vadd.f32 0.0, %v3306
  %v3308 = vpop.f32.mrf.mxu0
  %3309 = vdwg.mxu0
  %v3310 = vadd.f32 %v3232, %v3307
  %v3311 = vxor.u32 %v3310, 2147483648
  %v3312 = vmul.f32 %v3311, 1.442695
  %v3313 = vpow.pop %v3312
  %v3314 = vadd.f32 %v3313, 1.0
  %v3315 = vrcp.pop %v3314
  %v3316 = vmul.f32 1.0, %v3315
  %v3317 = vtanh.pop %v3310
  %v3318 = vmul.f32 %v3316, 0.0
  %3320 = vrot.lane.b32.xlu0 %v3317, 64
  %v3321 = vpop.permute.xlu0 %3320
  %v3323 = vmul.f32 %v3316, %v3321
  %3325 = vrot.lane.b32.xlu0 %v3323, 32
  %v3326 = vpop.permute.xlu0 %3325
  %v3328 = vadd.f32 %v3318, %v3326
  %v3329 = vtanh.pop %v3328
  %3331 = vrot.lane.b32.xlu0 %v3329, 64
  %v3332 = vpop.permute.xlu0 %3331
  %v3334 = vmul.f32 %v3316, %v3332
  %3336 = vrot.lane.b32.xlu0 %v3334, 32
  %v3337 = vpop.permute.xlu0 %3336
  %v3338 = vsel %vm145, %v3337, 0
  %3340 = vmatprep.subr.mxu0 0.0
  %3341 = vmatpush1.msra.mxu0 0.0
  %3342 = vmatprep.subr.mxu0 0.0
  %3343 = vmatpush1.msra.mxu0 0.0
  %3344 = vmatprep.subr.mxu0 0.0
  %3345 = vmatpush1.msra.mxu0 0.0
  %3346 = vmatprep.subr.mxu0 0.0
  %3347 = vmatpush1.msra.mxu0 0.0
  %3348 = vmatprep.subr.mxu0 0.0
  %3349 = vmatpush1.msra.mxu0 0.0
  %3350 = vmatprep.subr.mxu0 0.0
  %3351 = vmatpush1.msra.mxu0 0.0
  %3352 = vmatprep.subr.mxu0 0.0
  %3353 = vmatpush1.msra.mxu0 0.0
  %3354 = vmatprep.subr.mxu0 0.0
  %3355 = vmatpush1.msra.mxu0 0.0
  %3356 = vmatprep.subr.mxu0 0.0
  %3357 = vmatpush1.msra.mxu0 0.0
  %3358 = vmatprep.subr.mxu0 0.0
  %3359 = vmatpush1.msra.mxu0 0.0
  %3360 = vmatprep.subr.mxu0 0.0
  %3361 = vmatpush1.msra.mxu0 0.0
  %3362 = vmatprep.subr.mxu0 0.0
  %3363 = vmatpush1.msra.mxu0 0.0
  %3364 = vmatprep.subr.mxu0 0.0
  %3365 = vmatpush1.msra.mxu0 %v2134
  %3366 = vmatprep.subr.mxu0 0.0
  %3367 = vmatpush1.msra.mxu0 %v2133
  %3368 = vmatprep.subr.mxu0 0.0
  %3369 = vmatpush1.msra.mxu0 %v2132
  %3370 = vmatprep.subr.mxu0 0.0
  %3371 = vmatpush1.msra.mxu0 %v2131
  %3372 = vmatprep.subr.mxu0 0.0
  %3373 = vmatpush2.msra.mxu0 0.0
  %3374 = vmatprep.subr.mxu0 0.0
  %3375 = vmatpush2.msra.mxu0 0.0
  %3376 = vmatprep.subr.mxu0 0.0
  %3377 = vmatpush2.msra.mxu0 0.0
  %3378 = vmatprep.subr.mxu0 0.0
  %3379 = vmatpush2.msra.mxu0 0.0
  %3380 = vmatprep.subr.mxu0 0.0
  %3381 = vmatpush2.msra.mxu0 0.0
  %3382 = vmatprep.subr.mxu0 0.0
  %3383 = vmatpush2.msra.mxu0 0.0
  %3384 = vmatprep.subr.mxu0 0.0
  %3385 = vmatpush2.msra.mxu0 0.0
  %3386 = vmatprep.subr.mxu0 0.0
  %3387 = vmatpush2.msra.mxu0 0.0
  %3388 = vmatprep.subr.mxu0 0.0
  %3389 = vmatpush2.msra.mxu0 0.0
  %3390 = vmatprep.subr.mxu0 0.0
  %3391 = vmatpush2.msra.mxu0 0.0
  %3392 = vmatprep.subr.mxu0 0.0
  %3393 = vmatpush2.msra.mxu0 0.0
  %3394 = vmatprep.subr.mxu0 0.0
  %3395 = vmatpush2.msra.mxu0 0.0
  %3396 = vmatprep.subr.mxu0 0.0
  %3397 = vmatpush2.msra.mxu0 0.0
  %3398 = vmatprep.subr.mxu0 0.0
  %3399 = vmatpush2.msra.mxu0 0.0
  %3400 = vmatprep.subr.mxu0 0.0
  %3401 = vmatpush2.msra.mxu0 0.0
  %3402 = vmatprep.subr.mxu0 0.0
  %3403 = vmatpush2.msra.mxu0 0.0
  %3404 = vmatprep.mubr.f32.mxu0 0.0
  %3405 = vmatmul.mubr.f32.gmra.mxu0 %v3338
  %v3406 = vpop.f32.mrf.mxu0
  %v3407 = vadd.f32 0.0, %v3406
  %v3408 = vpop.f32.mrf.mxu0
  %3409 = vdwg.mxu0
  %v3411 = vrot.slane %v3407, 6
  %v3413 = vadd.f32 %v3232, %v3411
  %v3414 = vxor.u32 %v3413, 2147483648
  %v3415 = vmul.f32 %v3414, 1.442695
  %v3416 = vpow.pop %v3415
  %v3417 = vadd.f32 %v3416, 1.0
  %v3418 = vrcp.pop %v3417
  %v3419 = vmul.f32 1.0, %v3418
  %v3420 = vtanh.pop %v3413
  %v3422 = vrot.slane %v3328, 6
  %v3424 = vmul.f32 %v3419, %v3422
  %3426 = vrot.lane.b32.xlu0 %v3420, 64
  %v3427 = vpop.permute.xlu0 %3426
  %v3429 = vmul.f32 %v3419, %v3427
  %3431 = vrot.lane.b32.xlu0 %v3429, 32
  %v3432 = vpop.permute.xlu0 %3431
  %v3434 = vadd.f32 %v3424, %v3432
  %v3435 = vtanh.pop %v3434
  %3437 = vrot.lane.b32.xlu0 %v3435, 64
  %v3438 = vpop.permute.xlu0 %3437
  %v3440 = vmul.f32 %v3419, %v3438
  %v3442 = vrot.slane %v3440, 2
  %3443 = vrot.lane.b32.xlu0 %v3442, 32
  %v3444 = vpop.permute.xlu0 %3443
  %v3445 = vsel %vm145, %v3444, 0
  %3447 = vmatprep.subr.mxu0 0.0
  %3448 = vmatpush1.msra.mxu0 0.0
  %3449 = vmatprep.subr.mxu0 0.0
  %3450 = vmatpush1.msra.mxu0 0.0
  %3451 = vmatprep.subr.mxu0 0.0
  %3452 = vmatpush1.msra.mxu0 0.0
  %3453 = vmatprep.subr.mxu0 0.0
  %3454 = vmatpush1.msra.mxu0 0.0
  %3455 = vmatprep.subr.mxu0 0.0
  %3456 = vmatpush1.msra.mxu0 0.0
  %3457 = vmatprep.subr.mxu0 0.0
  %3458 = vmatpush1.msra.mxu0 0.0
  %3459 = vmatprep.subr.mxu0 0.0
  %3460 = vmatpush1.msra.mxu0 0.0
  %3461 = vmatprep.subr.mxu0 0.0
  %3462 = vmatpush1.msra.mxu0 0.0
  %3463 = vmatprep.subr.mxu0 0.0
  %3464 = vmatpush1.msra.mxu0 0.0
  %3465 = vmatprep.subr.mxu0 0.0
  %3466 = vmatpush1.msra.mxu0 0.0
  %3467 = vmatprep.subr.mxu0 0.0
  %3468 = vmatpush1.msra.mxu0 0.0
  %3469 = vmatprep.subr.mxu0 0.0
  %3470 = vmatpush1.msra.mxu0 0.0
  %3471 = vmatprep.subr.mxu0 0.0
  %3472 = vmatpush1.msra.mxu0 %v2134
  %3473 = vmatprep.subr.mxu0 0.0
  %3474 = vmatpush1.msra.mxu0 %v2133
  %3475 = vmatprep.subr.mxu0 0.0
  %3476 = vmatpush1.msra.mxu0 %v2132
  %3477 = vmatprep.subr.mxu0 0.0
  %3478 = vmatpush1.msra.mxu0 %v2131
  %3479 = vmatprep.subr.mxu0 0.0
  %3480 = vmatpush2.msra.mxu0 0.0
  %3481 = vmatprep.subr.mxu0 0.0
  %3482 = vmatpush2.msra.mxu0 0.0
  %3483 = vmatprep.subr.mxu0 0.0
  %3484 = vmatpush2.msra.mxu0 0.0
  %3485 = vmatprep.subr.mxu0 0.0
  %3486 = vmatpush2.msra.mxu0 0.0
  %3487 = vmatprep.subr.mxu0 0.0
  %3488 = vmatpush2.msra.mxu0 0.0
  %3489 = vmatprep.subr.mxu0 0.0
  %3490 = vmatpush2.msra.mxu0 0.0
  %3491 = vmatprep.subr.mxu0 0.0
  %3492 = vmatpush2.msra.mxu0 0.0
  %3493 = vmatprep.subr.mxu0 0.0
  %3494 = vmatpush2.msra.mxu0 0.0
  %3495 = vmatprep.subr.mxu0 0.0
  %3496 = vmatpush2.msra.mxu0 0.0
  %3497 = vmatprep.subr.mxu0 0.0
  %3498 = vmatpush2.msra.mxu0 0.0
  %3499 = vmatprep.subr.mxu0 0.0
  %3500 = vmatpush2.msra.mxu0 0.0
  %3501 = vmatprep.subr.mxu0 0.0
  %3502 = vmatpush2.msra.mxu0 0.0
  %3503 = vmatprep.subr.mxu0 0.0
  %3504 = vmatpush2.msra.mxu0 0.0
  %3505 = vmatprep.subr.mxu0 0.0
  %3506 = vmatpush2.msra.mxu0 0.0
  %3507 = vmatprep.subr.mxu0 0.0
  %3508 = vmatpush2.msra.mxu0 0.0
  %3509 = vmatprep.subr.mxu0 0.0
  %3510 = vmatpush2.msra.mxu0 0.0
  %3511 = vmatprep.mubr.f32.mxu0 0.0
  %3512 = vmatmul.mubr.f32.gmra.mxu0 %v3445
  %v3513 = vpop.f32.mrf.mxu0
  %v3514 = vadd.f32 0.0, %v3513
  %v3515 = vpop.f32.mrf.mxu0
  %3516 = vdwg.mxu0
  %v3518 = vrot.slane %v3514, 4
  %v3520 = vadd.f32 %v3232, %v3518
  %v3521 = vxor.u32 %v3520, 2147483648
  %v3522 = vmul.f32 %v3521, 1.442695
  %v3523 = vpow.pop %v3522
  %v3524 = vadd.f32 %v3523, 1.0
  %v3525 = vrcp.pop %v3524
  %v3526 = vmul.f32 1.0, %v3525
  %v3527 = vtanh.pop %v3520
  %v3529 = vrot.slane %v3434, 6
  %v3531 = vmul.f32 %v3526, %v3529
  %3533 = vrot.lane.b32.xlu0 %v3527, 64
  %v3534 = vpop.permute.xlu0 %3533
  %v3536 = vmul.f32 %v3526, %v3534
  %3538 = vrot.lane.b32.xlu0 %v3536, 32
  %v3539 = vpop.permute.xlu0 %3538
  %v3541 = vadd.f32 %v3531, %v3539
  %v3542 = vtanh.pop %v3541
  %3544 = vrot.lane.b32.xlu0 %v3542, 64
  %v3545 = vpop.permute.xlu0 %3544
  %v3547 = vmul.f32 %v3526, %v3545
  %v3549 = vrot.slane %v3547, 4
  %3550 = vrot.lane.b32.xlu0 %v3549, 32
  %v3551 = vpop.permute.xlu0 %3550
  %v3552 = vsel %vm145, %v3551, 0
  %3554 = vmatprep.subr.mxu0 0.0
  %3555 = vmatpush1.msra.mxu0 0.0
  %3556 = vmatprep.subr.mxu0 0.0
  %3557 = vmatpush1.msra.mxu0 0.0
  %3558 = vmatprep.subr.mxu0 0.0
  %3559 = vmatpush1.msra.mxu0 0.0
  %3560 = vmatprep.subr.mxu0 0.0
  %3561 = vmatpush1.msra.mxu0 0.0
  %3562 = vmatprep.subr.mxu0 0.0
  %3563 = vmatpush1.msra.mxu0 0.0
  %3564 = vmatprep.subr.mxu0 0.0
  %3565 = vmatpush1.msra.mxu0 0.0
  %3566 = vmatprep.subr.mxu0 0.0
  %3567 = vmatpush1.msra.mxu0 0.0
  %3568 = vmatprep.subr.mxu0 0.0
  %3569 = vmatpush1.msra.mxu0 0.0
  %3570 = vmatprep.subr.mxu0 0.0
  %3571 = vmatpush1.msra.mxu0 0.0
  %3572 = vmatprep.subr.mxu0 0.0
  %3573 = vmatpush1.msra.mxu0 0.0
  %3574 = vmatprep.subr.mxu0 0.0
  %3575 = vmatpush1.msra.mxu0 0.0
  %3576 = vmatprep.subr.mxu0 0.0
  %3577 = vmatpush1.msra.mxu0 0.0
  %3578 = vmatprep.subr.mxu0 0.0
  %3579 = vmatpush1.msra.mxu0 %v2134
  %3580 = vmatprep.subr.mxu0 0.0
  %3581 = vmatpush1.msra.mxu0 %v2133
  %3582 = vmatprep.subr.mxu0 0.0
  %3583 = vmatpush1.msra.mxu0 %v2132
  %3584 = vmatprep.subr.mxu0 0.0
  %3585 = vmatpush1.msra.mxu0 %v2131
  %3586 = vmatprep.subr.mxu0 0.0
  %3587 = vmatpush2.msra.mxu0 0.0
  %3588 = vmatprep.subr.mxu0 0.0
  %3589 = vmatpush2.msra.mxu0 0.0
  %3590 = vmatprep.subr.mxu0 0.0
  %3591 = vmatpush2.msra.mxu0 0.0
  %3592 = vmatprep.subr.mxu0 0.0
  %3593 = vmatpush2.msra.mxu0 0.0
  %3594 = vmatprep.subr.mxu0 0.0
  %3595 = vmatpush2.msra.mxu0 0.0
  %3596 = vmatprep.subr.mxu0 0.0
  %3597 = vmatpush2.msra.mxu0 0.0
  %3598 = vmatprep.subr.mxu0 0.0
  %3599 = vmatpush2.msra.mxu0 0.0
  %3600 = vmatprep.subr.mxu0 0.0
  %3601 = vmatpush2.msra.mxu0 0.0
  %3602 = vmatprep.subr.mxu0 0.0
  %3603 = vmatpush2.msra.mxu0 0.0
  %3604 = vmatprep.subr.mxu0 0.0
  %3605 = vmatpush2.msra.mxu0 0.0
  %3606 = vmatprep.subr.mxu0 0.0
  %3607 = vmatpush2.msra.mxu0 0.0
  %3608 = vmatprep.subr.mxu0 0.0
  %3609 = vmatpush2.msra.mxu0 0.0
  %3610 = vmatprep.subr.mxu0 0.0
  %3611 = vmatpush2.msra.mxu0 0.0
  %3612 = vmatprep.subr.mxu0 0.0
  %3613 = vmatpush2.msra.mxu0 0.0
  %3614 = vmatprep.subr.mxu0 0.0
  %3615 = vmatpush2.msra.mxu0 0.0
  %3616 = vmatprep.subr.mxu0 0.0
  %3617 = vmatpush2.msra.mxu0 0.0
  %3618 = vmatprep.mubr.f32.mxu0 0.0
  %3619 = vmatmul.mubr.f32.gmra.mxu0 %v3552
  %v3620 = vpop.f32.mrf.mxu0
  %v3621 = vadd.f32 0.0, %v3620
  %v3622 = vpop.f32.mrf.mxu0
  %3623 = vdwg.mxu0
  %v3625 = vrot.slane %v3621, 2
  %v3627 = vadd.f32 %v3232, %v3625
  %v3628 = vxor.u32 %v3627, 2147483648
  %v3629 = vmul.f32 %v3628, 1.442695
  %v3630 = vpow.pop %v3629
  %v3631 = vadd.f32 %v3630, 1.0
  %v3632 = vrcp.pop %v3631
  %v3633 = vmul.f32 1.0, %v3632
  %v3634 = vtanh.pop %v3627
  %v3636 = vrot.slane %v3541, 6
  %v3638 = vmul.f32 %v3633, %v3636
  %3640 = vrot.lane.b32.xlu0 %v3634, 64
  %v3641 = vpop.permute.xlu0 %3640
  %v3643 = vmul.f32 %v3633, %v3641
  %3645 = vrot.lane.b32.xlu0 %v3643, 32
  %v3646 = vpop.permute.xlu0 %3645
  %v3648 = vadd.f32 %v3638, %v3646
  %v3649 = vtanh.pop %v3648
  %3651 = vrot.lane.b32.xlu0 %v3649, 64
  %v3652 = vpop.permute.xlu0 %3651
  %v3654 = vmul.f32 %v3633, %v3652
  %v3656 = vrot.slane %v3654, 6
  %3657 = vrot.lane.b32.xlu0 %v3656, 32
  %v3658 = vpop.permute.xlu0 %3657
  %v3659 = vsel %vm145, %v3658, 0
  %3661 = vmatprep.subr.mxu0 0.0
  %3662 = vmatpush1.msra.mxu0 0.0
  %3663 = vmatprep.subr.mxu0 0.0
  %3664 = vmatpush1.msra.mxu0 0.0
  %3665 = vmatprep.subr.mxu0 0.0
  %3666 = vmatpush1.msra.mxu0 0.0
  %3667 = vmatprep.subr.mxu0 0.0
  %3668 = vmatpush1.msra.mxu0 0.0
  %3669 = vmatprep.subr.mxu0 0.0
  %3670 = vmatpush1.msra.mxu0 0.0
  %3671 = vmatprep.subr.mxu0 0.0
  %3672 = vmatpush1.msra.mxu0 0.0
  %3673 = vmatprep.subr.mxu0 0.0
  %3674 = vmatpush1.msra.mxu0 0.0
  %3675 = vmatprep.subr.mxu0 0.0
  %3676 = vmatpush1.msra.mxu0 0.0
  %3677 = vmatprep.subr.mxu0 0.0
  %3678 = vmatpush1.msra.mxu0 0.0
  %3679 = vmatprep.subr.mxu0 0.0
  %3680 = vmatpush1.msra.mxu0 0.0
  %3681 = vmatprep.subr.mxu0 0.0
  %3682 = vmatpush1.msra.mxu0 0.0
  %3683 = vmatprep.subr.mxu0 0.0
  %3684 = vmatpush1.msra.mxu0 0.0
  %3685 = vmatprep.subr.mxu0 0.0
  %3686 = vmatpush1.msra.mxu0 %v2134
  %3687 = vmatprep.subr.mxu0 0.0
  %3688 = vmatpush1.msra.mxu0 %v2133
  %3689 = vmatprep.subr.mxu0 0.0
  %3690 = vmatpush1.msra.mxu0 %v2132
  %3691 = vmatprep.subr.mxu0 0.0
  %3692 = vmatpush1.msra.mxu0 %v2131
  %3693 = vmatprep.subr.mxu0 0.0
  %3694 = vmatpush2.msra.mxu0 0.0
  %3695 = vmatprep.subr.mxu0 0.0
  %3696 = vmatpush2.msra.mxu0 0.0
  %3697 = vmatprep.subr.mxu0 0.0
  %3698 = vmatpush2.msra.mxu0 0.0
  %3699 = vmatprep.subr.mxu0 0.0
  %3700 = vmatpush2.msra.mxu0 0.0
  %3701 = vmatprep.subr.mxu0 0.0
  %3702 = vmatpush2.msra.mxu0 0.0
  %3703 = vmatprep.subr.mxu0 0.0
  %3704 = vmatpush2.msra.mxu0 0.0
  %3705 = vmatprep.subr.mxu0 0.0
  %3706 = vmatpush2.msra.mxu0 0.0
  %3707 = vmatprep.subr.mxu0 0.0
  %3708 = vmatpush2.msra.mxu0 0.0
  %3709 = vmatprep.subr.mxu0 0.0
  %3710 = vmatpush2.msra.mxu0 0.0
  %3711 = vmatprep.subr.mxu0 0.0
  %3712 = vmatpush2.msra.mxu0 0.0
  %3713 = vmatprep.subr.mxu0 0.0
  %3714 = vmatpush2.msra.mxu0 0.0
  %3715 = vmatprep.subr.mxu0 0.0
  %3716 = vmatpush2.msra.mxu0 0.0
  %3717 = vmatprep.subr.mxu0 0.0
  %3718 = vmatpush2.msra.mxu0 0.0
  %3719 = vmatprep.subr.mxu0 0.0
  %3720 = vmatpush2.msra.mxu0 0.0
  %3721 = vmatprep.subr.mxu0 0.0
  %3722 = vmatpush2.msra.mxu0 0.0
  %3723 = vmatprep.subr.mxu0 0.0
  %3724 = vmatpush2.msra.mxu0 0.0
  %3725 = vmatprep.mubr.f32.mxu0 0.0
  %3726 = vmatmul.mubr.f32.gmra.mxu0 %v3659
  %v3727 = vpop.f32.mrf.mxu0
  %v3728 = vadd.f32 0.0, %v3727
  %v3729 = vpop.f32.mrf.mxu0
  %3730 = vdwg.mxu0
  %v3731 = vadd.f32 %v3237, %v3728
  %v3732 = vxor.u32 %v3731, 2147483648
  %v3733 = vmul.f32 %v3732, 1.442695
  %v3734 = vpow.pop %v3733
  %v3735 = vadd.f32 %v3734, 1.0
  %v3736 = vrcp.pop %v3735
  %v3737 = vmul.f32 1.0, %v3736
  %v3738 = vtanh.pop %v3731
  %v3740 = vrot.slane %v3648, 6
  %v3742 = vmul.f32 %v3737, %v3740
  %3744 = vrot.lane.b32.xlu0 %v3738, 64
  %v3745 = vpop.permute.xlu0 %3744
  %v3747 = vmul.f32 %v3737, %v3745
  %3749 = vrot.lane.b32.xlu0 %v3747, 32
  %v3750 = vpop.permute.xlu0 %3749
  %v3752 = vadd.f32 %v3742, %v3750
  %v3753 = vtanh.pop %v3752
  %3755 = vrot.lane.b32.xlu0 %v3753, 64
  %v3756 = vpop.permute.xlu0 %3755
  %v3758 = vmul.f32 %v3737, %v3756
  %3760 = vrot.lane.b32.xlu0 %v3758, 32
  %v3761 = vpop.permute.xlu0 %3760
  %v3762 = vsel %vm145, %v3761, 0
  %3764 = vmatprep.subr.mxu0 0.0
  %3765 = vmatpush1.msra.mxu0 0.0
  %3766 = vmatprep.subr.mxu0 0.0
  %3767 = vmatpush1.msra.mxu0 0.0
  %3768 = vmatprep.subr.mxu0 0.0
  %3769 = vmatpush1.msra.mxu0 0.0
  %3770 = vmatprep.subr.mxu0 0.0
  %3771 = vmatpush1.msra.mxu0 0.0
  %3772 = vmatprep.subr.mxu0 0.0
  %3773 = vmatpush1.msra.mxu0 0.0
  %3774 = vmatprep.subr.mxu0 0.0
  %3775 = vmatpush1.msra.mxu0 0.0
  %3776 = vmatprep.subr.mxu0 0.0
  %3777 = vmatpush1.msra.mxu0 0.0
  %3778 = vmatprep.subr.mxu0 0.0
  %3779 = vmatpush1.msra.mxu0 0.0
  %3780 = vmatprep.subr.mxu0 0.0
  %3781 = vmatpush1.msra.mxu0 0.0
  %3782 = vmatprep.subr.mxu0 0.0
  %3783 = vmatpush1.msra.mxu0 0.0
  %3784 = vmatprep.subr.mxu0 0.0
  %3785 = vmatpush1.msra.mxu0 0.0
  %3786 = vmatprep.subr.mxu0 0.0
  %3787 = vmatpush1.msra.mxu0 0.0
  %3788 = vmatprep.subr.mxu0 0.0
  %3789 = vmatpush1.msra.mxu0 %v2134
  %3790 = vmatprep.subr.mxu0 0.0
  %3791 = vmatpush1.msra.mxu0 %v2133
  %3792 = vmatprep.subr.mxu0 0.0
  %3793 = vmatpush1.msra.mxu0 %v2132
  %3794 = vmatprep.subr.mxu0 0.0
  %3795 = vmatpush1.msra.mxu0 %v2131
  %3796 = vmatprep.subr.mxu0 0.0
  %3797 = vmatpush2.msra.mxu0 0.0
  %3798 = vmatprep.subr.mxu0 0.0
  %3799 = vmatpush2.msra.mxu0 0.0
  %3800 = vmatprep.subr.mxu0 0.0
  %3801 = vmatpush2.msra.mxu0 0.0
  %3802 = vmatprep.subr.mxu0 0.0
  %3803 = vmatpush2.msra.mxu0 0.0
  %3804 = vmatprep.subr.mxu0 0.0
  %3805 = vmatpush2.msra.mxu0 0.0
  %3806 = vmatprep.subr.mxu0 0.0
  %3807 = vmatpush2.msra.mxu0 0.0
  %3808 = vmatprep.subr.mxu0 0.0
  %3809 = vmatpush2.msra.mxu0 0.0
  %3810 = vmatprep.subr.mxu0 0.0
  %3811 = vmatpush2.msra.mxu0 0.0
  %3812 = vmatprep.subr.mxu0 0.0
  %3813 = vmatpush2.msra.mxu0 0.0
  %3814 = vmatprep.subr.mxu0 0.0
  %3815 = vmatpush2.msra.mxu0 0.0
  %3816 = vmatprep.subr.mxu0 0.0
  %3817 = vmatpush2.msra.mxu0 0.0
  %3818 = vmatprep.subr.mxu0 0.0
  %3819 = vmatpush2.msra.mxu0 0.0
  %3820 = vmatprep.subr.mxu0 0.0
  %3821 = vmatpush2.msra.mxu0 0.0
  %3822 = vmatprep.subr.mxu0 0.0
  %3823 = vmatpush2.msra.mxu0 0.0
  %3824 = vmatprep.subr.mxu0 0.0
  %3825 = vmatpush2.msra.mxu0 0.0
  %3826 = vmatprep.subr.mxu0 0.0
  %3827 = vmatpush2.msra.mxu0 0.0
  %3828 = vmatprep.mubr.f32.mxu0 0.0
  %3829 = vmatmul.mubr.f32.gmra.mxu0 %v3762
  %v3830 = vpop.f32.mrf.mxu0
  %v3831 = vadd.f32 0.0, %v3830
  %v3832 = vpop.f32.mrf.mxu0
  %3833 = vdwg.mxu0
  %v3835 = vrot.slane %v3831, 6
  %v3837 = vadd.f32 %v3237, %v3835
  %v3838 = vxor.u32 %v3837, 2147483648
  %v3839 = vmul.f32 %v3838, 1.442695
  %v3840 = vpow.pop %v3839
  %v3841 = vadd.f32 %v3840, 1.0
  %v3842 = vrcp.pop %v3841
  %v3843 = vmul.f32 1.0, %v3842
  %v3844 = vtanh.pop %v3837
  %v3846 = vrot.slane %v3752, 6
  %v3848 = vmul.f32 %v3843, %v3846
  %3850 = vrot.lane.b32.xlu0 %v3844, 64
  %v3851 = vpop.permute.xlu0 %3850
  %v3853 = vmul.f32 %v3843, %v3851
  %3855 = vrot.lane.b32.xlu0 %v3853, 32
  %v3856 = vpop.permute.xlu0 %3855
  %v3858 = vadd.f32 %v3848, %v3856
  %v3859 = vtanh.pop %v3858
  %3861 = vrot.lane.b32.xlu0 %v3859, 64
  %v3862 = vpop.permute.xlu0 %3861
  %v3864 = vmul.f32 %v3843, %v3862
  %v3866 = vrot.slane %v3864, 2
  %3867 = vrot.lane.b32.xlu0 %v3866, 32
  %v3868 = vpop.permute.xlu0 %3867
  %v3869 = vsel %vm145, %v3868, 0
  %3871 = vmatprep.subr.mxu0 0.0
  %3872 = vmatpush1.msra.mxu0 0.0
  %3873 = vmatprep.subr.mxu0 0.0
  %3874 = vmatpush1.msra.mxu0 0.0
  %3875 = vmatprep.subr.mxu0 0.0
  %3876 = vmatpush1.msra.mxu0 0.0
  %3877 = vmatprep.subr.mxu0 0.0
  %3878 = vmatpush1.msra.mxu0 0.0
  %3879 = vmatprep.subr.mxu0 0.0
  %3880 = vmatpush1.msra.mxu0 0.0
  %3881 = vmatprep.subr.mxu0 0.0
  %3882 = vmatpush1.msra.mxu0 0.0
  %3883 = vmatprep.subr.mxu0 0.0
  %3884 = vmatpush1.msra.mxu0 0.0
  %3885 = vmatprep.subr.mxu0 0.0
  %3886 = vmatpush1.msra.mxu0 0.0
  %3887 = vmatprep.subr.mxu0 0.0
  %3888 = vmatpush1.msra.mxu0 0.0
  %3889 = vmatprep.subr.mxu0 0.0
  %3890 = vmatpush1.msra.mxu0 0.0
  %3891 = vmatprep.subr.mxu0 0.0
  %3892 = vmatpush1.msra.mxu0 0.0
  %3893 = vmatprep.subr.mxu0 0.0
  %3894 = vmatpush1.msra.mxu0 0.0
  %3895 = vmatprep.subr.mxu0 0.0
  %3896 = vmatpush1.msra.mxu0 %v2134
  %3897 = vmatprep.subr.mxu0 0.0
  %3898 = vmatpush1.msra.mxu0 %v2133
  %3899 = vmatprep.subr.mxu0 0.0
  %3900 = vmatpush1.msra.mxu0 %v2132
  %3901 = vmatprep.subr.mxu0 0.0
  %3902 = vmatpush1.msra.mxu0 %v2131
  %3903 = vmatprep.subr.mxu0 0.0
  %3904 = vmatpush2.msra.mxu0 0.0
  %3905 = vmatprep.subr.mxu0 0.0
  %3906 = vmatpush2.msra.mxu0 0.0
  %3907 = vmatprep.subr.mxu0 0.0
  %3908 = vmatpush2.msra.mxu0 0.0
  %3909 = vmatprep.subr.mxu0 0.0
  %3910 = vmatpush2.msra.mxu0 0.0
  %3911 = vmatprep.subr.mxu0 0.0
  %3912 = vmatpush2.msra.mxu0 0.0
  %3913 = vmatprep.subr.mxu0 0.0
  %3914 = vmatpush2.msra.mxu0 0.0
  %3915 = vmatprep.subr.mxu0 0.0
  %3916 = vmatpush2.msra.mxu0 0.0
  %3917 = vmatprep.subr.mxu0 0.0
  %3918 = vmatpush2.msra.mxu0 0.0
  %3919 = vmatprep.subr.mxu0 0.0
  %3920 = vmatpush2.msra.mxu0 0.0
  %3921 = vmatprep.subr.mxu0 0.0
  %3922 = vmatpush2.msra.mxu0 0.0
  %3923 = vmatprep.subr.mxu0 0.0
  %3924 = vmatpush2.msra.mxu0 0.0
  %3925 = vmatprep.subr.mxu0 0.0
  %3926 = vmatpush2.msra.mxu0 0.0
  %3927 = vmatprep.subr.mxu0 0.0
  %3928 = vmatpush2.msra.mxu0 0.0
  %3929 = vmatprep.subr.mxu0 0.0
  %3930 = vmatpush2.msra.mxu0 0.0
  %3931 = vmatprep.subr.mxu0 0.0
  %3932 = vmatpush2.msra.mxu0 0.0
  %3933 = vmatprep.subr.mxu0 0.0
  %3934 = vmatpush2.msra.mxu0 0.0
  %3935 = vmatprep.mubr.f32.mxu0 0.0
  %3936 = vmatmul.mubr.f32.gmra.mxu0 %v3869
  %v3937 = vpop.f32.mrf.mxu0
  %v3938 = vadd.f32 0.0, %v3937
  %v3939 = vpop.f32.mrf.mxu0
  %3940 = vdwg.mxu0
  %v3942 = vrot.slane %v3938, 4
  %v3944 = vadd.f32 %v3237, %v3942
  %v3945 = vxor.u32 %v3944, 2147483648
  %v3946 = vmul.f32 %v3945, 1.442695
  %v3947 = vpow.pop %v3946
  %v3948 = vadd.f32 %v3947, 1.0
  %v3949 = vrcp.pop %v3948
  %v3950 = vmul.f32 1.0, %v3949
  %v3951 = vtanh.pop %v3944
  %v3953 = vrot.slane %v3858, 6
  %v3955 = vmul.f32 %v3950, %v3953
  %3957 = vrot.lane.b32.xlu0 %v3951, 64
  %v3958 = vpop.permute.xlu0 %3957
  %v3960 = vmul.f32 %v3950, %v3958
  %3962 = vrot.lane.b32.xlu0 %v3960, 32
  %v3963 = vpop.permute.xlu0 %3962
  %v3965 = vadd.f32 %v3955, %v3963
  %v3966 = vtanh.pop %v3965
  %3968 = vrot.lane.b32.xlu0 %v3966, 64
  %v3969 = vpop.permute.xlu0 %3968
  %v3971 = vmul.f32 %v3950, %v3969
  %v3973 = vrot.slane %v3971, 4
  %3974 = vrot.lane.b32.xlu0 %v3973, 32
  %v3975 = vpop.permute.xlu0 %3974
  %v3976 = vsel %vm145, %v3975, 0
  %3978 = vmatprep.subr.mxu0 0.0
  %3979 = vmatpush1.msra.mxu0 0.0
  %3980 = vmatprep.subr.mxu0 0.0
  %3981 = vmatpush1.msra.mxu0 0.0
  %3982 = vmatprep.subr.mxu0 0.0
  %3983 = vmatpush1.msra.mxu0 0.0
  %3984 = vmatprep.subr.mxu0 0.0
  %3985 = vmatpush1.msra.mxu0 0.0
  %3986 = vmatprep.subr.mxu0 0.0
  %3987 = vmatpush1.msra.mxu0 0.0
  %3988 = vmatprep.subr.mxu0 0.0
  %3989 = vmatpush1.msra.mxu0 0.0
  %3990 = vmatprep.subr.mxu0 0.0
  %3991 = vmatpush1.msra.mxu0 0.0
  %3992 = vmatprep.subr.mxu0 0.0
  %3993 = vmatpush1.msra.mxu0 0.0
  %3994 = vmatprep.subr.mxu0 0.0
  %3995 = vmatpush1.msra.mxu0 0.0
  %3996 = vmatprep.subr.mxu0 0.0
  %3997 = vmatpush1.msra.mxu0 0.0
  %3998 = vmatprep.subr.mxu0 0.0
  %3999 = vmatpush1.msra.mxu0 0.0
  %4000 = vmatprep.subr.mxu0 0.0
  %4001 = vmatpush1.msra.mxu0 0.0
  %4002 = vmatprep.subr.mxu0 0.0
  %4003 = vmatpush1.msra.mxu0 %v2134
  %4004 = vmatprep.subr.mxu0 0.0
  %4005 = vmatpush1.msra.mxu0 %v2133
  %4006 = vmatprep.subr.mxu0 0.0
  %4007 = vmatpush1.msra.mxu0 %v2132
  %4008 = vmatprep.subr.mxu0 0.0
  %4009 = vmatpush1.msra.mxu0 %v2131
  %4010 = vmatprep.subr.mxu0 0.0
  %4011 = vmatpush2.msra.mxu0 0.0
  %4012 = vmatprep.subr.mxu0 0.0
  %4013 = vmatpush2.msra.mxu0 0.0
  %4014 = vmatprep.subr.mxu0 0.0
  %4015 = vmatpush2.msra.mxu0 0.0
  %4016 = vmatprep.subr.mxu0 0.0
  %4017 = vmatpush2.msra.mxu0 0.0
  %4018 = vmatprep.subr.mxu0 0.0
  %4019 = vmatpush2.msra.mxu0 0.0
  %4020 = vmatprep.subr.mxu0 0.0
  %4021 = vmatpush2.msra.mxu0 0.0
  %4022 = vmatprep.subr.mxu0 0.0
  %4023 = vmatpush2.msra.mxu0 0.0
  %4024 = vmatprep.subr.mxu0 0.0
  %4025 = vmatpush2.msra.mxu0 0.0
  %4026 = vmatprep.subr.mxu0 0.0
  %4027 = vmatpush2.msra.mxu0 0.0
  %4028 = vmatprep.subr.mxu0 0.0
  %4029 = vmatpush2.msra.mxu0 0.0
  %4030 = vmatprep.subr.mxu0 0.0
  %4031 = vmatpush2.msra.mxu0 0.0
  %4032 = vmatprep.subr.mxu0 0.0
  %4033 = vmatpush2.msra.mxu0 0.0
  %4034 = vmatprep.subr.mxu0 0.0
  %4035 = vmatpush2.msra.mxu0 0.0
  %4036 = vmatprep.subr.mxu0 0.0
  %4037 = vmatpush2.msra.mxu0 0.0
  %4038 = vmatprep.subr.mxu0 0.0
  %4039 = vmatpush2.msra.mxu0 0.0
  %4040 = vmatprep.subr.mxu0 0.0
  %4041 = vmatpush2.msra.mxu0 0.0
  %4042 = vmatprep.mubr.f32.mxu0 0.0
  %4043 = vmatmul.mubr.f32.gmra.mxu0 %v3976
  %v4044 = vpop.f32.mrf.mxu0
  %v4045 = vadd.f32 0.0, %v4044
  %v4046 = vpop.f32.mrf.mxu0
  %4047 = vdwg.mxu0
  %v4049 = vrot.slane %v4045, 2
  %v4051 = vadd.f32 %v3237, %v4049
  %v4052 = vxor.u32 %v4051, 2147483648
  %v4053 = vmul.f32 %v4052, 1.442695
  %v4054 = vpow.pop %v4053
  %v4055 = vadd.f32 %v4054, 1.0
  %v4056 = vrcp.pop %v4055
  %v4057 = vmul.f32 1.0, %v4056
  %v4058 = vtanh.pop %v4051
  %v4060 = vrot.slane %v3965, 6
  %v4062 = vmul.f32 %v4057, %v4060
  %4064 = vrot.lane.b32.xlu0 %v4058, 64
  %v4065 = vpop.permute.xlu0 %4064
  %v4067 = vmul.f32 %v4057, %v4065
  %4069 = vrot.lane.b32.xlu0 %v4067, 32
  %v4070 = vpop.permute.xlu0 %4069
  %v4072 = vadd.f32 %v4062, %v4070
  %v4073 = vtanh.pop %v4072
  %4075 = vrot.lane.b32.xlu0 %v4073, 64
  %v4076 = vpop.permute.xlu0 %4075
  %v4078 = vmul.f32 %v4057, %v4076
  %v4079 = vsel %vm2105, %v3334, %v3440
  %v4080 = vsel %vm2107, %v4079, %v3547
  %v4081 = vsel %vm2109, %v4080, %v3654
  %v4082 = vsel %vm2105, %v3758, %v3864
  %v4083 = vsel %vm2107, %v4082, %v3971
  %v4084 = vsel %vm2109, %v4083, %v4078
  %4087 = vrot.lane.b32.xlu0 %v4081, 32
  %v4088 = vpop.permute.xlu0 %4087
  %4089 = vrot.lane.b32.xlu0 %v4084, 32
  %v4090 = vpop.permute.xlu0 %4089
  %4093 = vst.msk [vmem:[%s14] sm:$0xff] %vm145, %v4088
  %4094 = vst.msk [vmem:[%s14 + $0x8] sm:$0xff] %vm145, %v4090
  // Predicated region
  $region58: #{encoder_forward.1} parent=0 // pred_check
    _
  $region59: #{encoder_forward.1} parent=0 // pred_check_branch
    %4096 = sbr.rel (0) target = $region61
  $region60: #{encoder_forward.1} parent=0 // pred_region
    _
  $region61: #{encoder_forward.1} parent=0 // pred_fallthru
    _
  // Predicated region
  $region62: #{encoder_forward.1} parent=0 // pred_check
    _
  $region63: #{encoder_forward.1} parent=0 // pred_check_branch
    %4098 = sbr.rel (0) target = $region65
  $region64: #{encoder_forward.1} parent=0 // pred_region
    _
  $region65: #{encoder_forward.1} parent=0 // pred_fallthru
    _
  // Predicated region
  $region66: #{encoder_forward.1} parent=0 // pred_check
    _
  $region67: #{encoder_forward.1} parent=0 // pred_check_branch
    %4100 = sbr.rel (0) target = $region69
  $region68: #{encoder_forward.1} parent=0 // pred_region
    _
  $region69: #{encoder_forward.1} parent=0 // pred_fallthru
    _
  // Predicated region
  $region70: #{encoder_forward.1} parent=0 // pred_check
    _
  $region71: #{encoder_forward.1} parent=0 // pred_check_branch
    %4102 = sbr.rel (0) target = $region73
  $region72: #{encoder_forward.1} parent=0 // pred_region
    _
  $region73: #{encoder_forward.1} parent=0 // pred_fallthru
    _

</llo_original>
